<compile_context>
chip_gen: v5e
topology: v5e:2x2
jax: 0.10.0
libtpu: 0.0.40
codegen_flags: <defaults>
</compile_context>

<pallas_src>
import numpy as np
import jax
import jax.numpy as jnp
from jax.experimental import pallas as pl
from jax.experimental.pallas import tpu as pltpu

EPS = 1e-5
KS = 5          # conv kernel size
STRIDE = 2      # conv stride
NTAPS = KS * KS


def conv2d_size_out(size, kernel_size=KS, stride=STRIDE):
    return (size - (kernel_size - 1) - 1) // stride + 1


def _vmem_full(shape):
    # whole-array block resident in VMEM (no grid; shapes are small)
    return pl.BlockSpec(shape, lambda: (0,) * len(shape),
                        memory_space=pltpu.MemorySpace.VMEM)


# --------------------------------------------------------------------------------
# Static planning (pure numpy, runs at trace time).
# --------------------------------------------------------------------------------

def build_plan(n, h, w):
    h1, w1 = conv2d_size_out(h), conv2d_size_out(w)
    h2, w2 = conv2d_size_out(h1), conv2d_size_out(w1)
    h3, w3 = conv2d_size_out(h2), conv2d_size_out(w2)
    assert min(h1, w1, h2, w2, h3, w3) >= 1, "input too small for the 3 DQN convs"
    r1, r2, r3 = n * h1 * w1, n * h2 * w2, n * h3 * w3
    p3 = h3 * w3

    # conv3-output row ordering: spatial-position-major, batch-minor, so the head
    # consumes per-position column blocks whose rows are the batch dimension.
    r3_y = np.repeat(np.arange(h3), w3 * n)
    r3_x = np.tile(np.repeat(np.arange(w3), n), h3)
    r3_n = np.tile(np.arange(n), p3)

    # Slot layout (conv3-tap-major, conv3-row-minor): slot block t3 holds exactly
    # the conv2-output rows conv3 tap t3 needs -> conv3 uses contiguous row slices.
    c2rows = np.concatenate([
        r3_n * (h2 * w2) + (STRIDE * r3_y + ky) * w2 + (STRIDE * r3_x + kx)
        for ky in range(KS) for kx in range(KS)])
    s2 = int(c2rows.size)                       # = NTAPS * r3
    s2p = -(-s2 // 8) * 8                       # pad to a sublane multiple

    # BN2 statistics come from the slot matrix with 1/multiplicity weights;
    # requires every conv2-output row to be covered by >= 1 conv3 tap.
    counts = np.bincount(c2rows, minlength=r2)
    if counts.min() < 1:
        raise NotImplementedError(
            "conv3 taps do not cover all conv2 rows; natural-order BN2 stats "
            "fallback not implemented")  # TODO(synk): see header
    bn2_w = np.zeros((s2p, 1), np.float32)
    bn2_w[:s2, 0] = 1.0 / counts[c2rows]

    # conv1-output (== patches1) row feeding each slot row, per conv2 tap; padded
    # with row 0 up to s2p (pad rows are masked out of BN2 stats, never read later).
    sn = c2rows // (h2 * w2)
    sy = (c2rows % (h2 * w2)) // w2
    sx = c2rows % w2
    idx = np.stack([
        sn * (h1 * w1) + (STRIDE * sy + ky) * w1 + (STRIDE * sx + kx)
        for ky in range(KS) for kx in range(KS)]).astype(np.int32)   # (25, s2)
    idx_pad = np.zeros((NTAPS, s2p), np.int32)
    idx_pad[:, :s2] = idx

    return dict(n=n, hw1=(h1, w1), r1=r1, r2=r2, r3=r3,
                s2=s2, s2p=s2p, p3=p3, idx_pad=idx_pad, bn2_weights=bn2_w)


# --------------------------------------------------------------------------------
# The fused Pallas kernel.
# --------------------------------------------------------------------------------

def make_kernel(plan, use_bf16_matmul=False):
    n, r1, r2, r3 = plan["n"], plan["r1"], plan["r2"], plan["r3"]
    s2p, p3 = plan["s2p"], plan["p3"]
    mm_dtype = jnp.bfloat16 if use_bf16_matmul else jnp.float32

    def mm(a, b):
        return jnp.dot(a, b, preferred_element_type=jnp.float32)

    def bn_affine(x, gamma, beta, count, weights=None):
        # Training-mode batch-norm folded to y = x*scale + shift.
        # Shifted (cancellation-safe) sums; the two reductions are fused into one
        # XLU pass by lane-concatenating [w*z, w*z*z].
        c = x.shape[1]
        k0 = x[0:1, :]                          # per-channel shift (any real row)
        z = x - k0
        zw = z if weights is None else z * weights
        s = jnp.sum(jnp.concatenate([zw, zw * z], axis=1), axis=0, keepdims=True)
        inv = 1.0 / count
        dmean = s[:, :c] * inv                  # E[x] - k0
        var = jnp.maximum(s[:, c:] * inv - dmean * dmean, 0.0)
        scale = gamma * jax.lax.rsqrt(var + EPS)
        return scale, beta - (k0 + dmean) * scale

    def kernel(x_ref, w1_ref, w2_ref, w3_ref, wh_ref,
               g1_ref, b1_ref, g2_ref, b2_ref, g3_ref, b3_ref,
               bh_ref, bn2w_ref, o_ref):
        # ---- stage 1: conv1 for BN1 stats + every conv2-needed row, in ONE dot.
        #      (conv biases dropped: exactly cancelled by training-mode BN.)
        a1 = mm(x_ref[...], w1_ref[...])                       # (r1 + 25*s2p, C1)
        sc1, sh1 = bn_affine(a1[:r1, :], g1_ref[...], b1_ref[...], r1)
        act = jnp.maximum(a1[r1:, :] * sc1 + sh1, 0.0)         # BN1+ReLU, one pass
        act = act.astype(mm_dtype)                             # cast once (if bf16)

        # ---- conv2: 25 back-to-back dots into one f32 accumulator; per-tap
        #      slices are 8-row aligned (s2p multiple of 8, r1 aligned at 32x32).
        c2 = w2_ref.shape[2]
        acc2 = jnp.zeros((s2p, c2), jnp.float32)
        for t in range(NTAPS):
            acc2 = acc2 + mm(act[t * s2p:(t + 1) * s2p, :], w2_ref[t])
        sc2, sh2 = bn_affine(acc2, g2_ref[...], b2_ref[...], r2,
                             weights=bn2w_ref[...])
        a2 = jnp.maximum(acc2 * sc2 + sh2, 0.0)                # (s2p, C2)

        # ---- conv3: lane-concat the per-tap (r3, C2) blocks -> ONE K=25*C2 dot.
        wide = jnp.concatenate(
            [a2[t * r3:(t + 1) * r3, :] for t in range(NTAPS)], axis=1)
        acc3 = mm(wide.astype(mm_dtype), w3_ref[...])          # (r3, C3)
        sc3, sh3 = bn_affine(acc3, g3_ref[...], b3_ref[...], r3)
        a3 = jnp.maximum(acc3 * sc3 + sh3, 0.0)                # rows = (pos, batch)

        # ---- head: ONE dot (lane-concat spatial positions when p3 > 1).
        if p3 == 1:
            flat = a3
        else:
            flat = jnp.concatenate(
                [a3[p * n:(p + 1) * n, :] for p in range(p3)], axis=1)
        o_ref[...] = bh_ref[...] + mm(flat.astype(mm_dtype), wh_ref[...])

    return kernel


# --------------------------------------------------------------------------------
# Host-side glue (runs under jit as plain XLA, once per forward).
# --------------------------------------------------------------------------------

def im2col_taps(x_nhwc, ho, wo):
    # (N, H, W, C) -> (N*ho*wo, 25*C), columns ordered (tap-major, channel-minor).
    n, _, _, c = x_nhwc.shape
    slabs = [x_nhwc[:, ky:ky + STRIDE * ho:STRIDE, kx:kx + STRIDE * wo:STRIDE, :]
             for ky in range(KS) for kx in range(KS)]
    p = jnp.stack(slabs, axis=3)                      # (N, ho, wo, 25, C)
    return p.reshape(n * ho * wo, NTAPS * c)


def prepare_params(params, h, w, use_bf16_matmul=False):
    """One-time conversion of PyTorch-layout parameters to matmul-ready layouts."""
    h3 = conv2d_size_out(conv2d_size_out(conv2d_size_out(h)))
    w3 = conv2d_size_out(conv2d_size_out(conv2d_size_out(w)))
    p3 = h3 * w3
    outputs = params["head_w"].shape[0]
    mm_dtype = jnp.bfloat16 if use_bf16_matmul else jnp.float32

    def conv_taps(wt):        # (C_out, C_in, kh, kw) -> (kh*kw, C_in, C_out)
        co, ci, kh, kw = wt.shape
        return jnp.transpose(wt, (2, 3, 1, 0)).reshape(kh * kw, ci, co)

    w1 = conv_taps(params["conv1_w"])
    w3f = conv_taps(params["conv3_w"])
    wh = jnp.transpose(params["head_w"].reshape(outputs, -1, p3), (2, 1, 0))
    return {
        # conv1 folded to (25*C_in, C_out), matching the patch column order.
        "w1": w1.reshape(-1, w1.shape[-1]).astype(mm_dtype),
        "w2": conv_taps(params["conv2_w"]).astype(mm_dtype),
        # conv3 pre-flattened to (25*C2, C3) for the single wide dot.
        "w3": w3f.reshape(-1, w3f.shape[-1]).astype(mm_dtype),
        # conv biases intentionally dropped: cancelled by training-mode BN.
        "g1": params["bn1_g"].reshape(1, -1), "b1": params["bn1_b"].reshape(1, -1),
        "g2": params["bn2_g"].reshape(1, -1), "b2": params["bn2_b"].reshape(1, -1),
        "g3": params["bn3_g"].reshape(1, -1), "b3": params["bn3_b"].reshape(1, -1),
        # head regrouped per spatial position and flattened to (p3*C3, outputs).
        "wh": wh.reshape(-1, outputs).astype(mm_dtype),
        "bh": params["head_b"].reshape(1, -1),
    }


def dqn_forward(kparams, x, *, use_bf16_matmul=False):
    # x: (N, 3, H, W) float32 NCHW, like the PyTorch module.
    n, _, h, w = x.shape
    plan = build_plan(n, h, w)
    ho1, wo1 = plan["hw1"]
    mm_dtype = jnp.bfloat16 if use_bf16_matmul else jnp.float32

    x_nhwc = jnp.transpose(x, (0, 2, 3, 1))
    patches1 = im2col_taps(x_nhwc, ho1, wo1).astype(mm_dtype)   # (r1, 75)

    # Host-side gather (XLA) of the conv1-patch rows conv2 needs, grouped per conv2
    # tap, row-permuted into conv3 "slot" order and 8-row padded, then concatenated
    # with patches1 so the kernel does ONE stage-1 matmul and only static slices.
    pg = jnp.take(patches1, jnp.asarray(plan["idx_pad"]).reshape(-1), axis=0)
    xin = jnp.concatenate([patches1, pg], axis=0)               # (r1 + 25*s2p, 75)

    bn2w = jnp.asarray(plan["bn2_weights"])                     # (s2p, 1)
    args = [xin] + [kparams[k] for k in
                    ("w1", "w2", "w3", "wh",
                     "g1", "b1", "g2", "b2", "g3", "b3", "bh")] + [bn2w]

    outputs = kparams["bh"].shape[1]
    return pl.pallas_call(
        make_kernel(plan, use_bf16_matmul=use_bf16_matmul),
        out_shape=jax.ShapeDtypeStruct((n, outputs), jnp.float32),
        in_specs=[_vmem_full(a.shape) for a in args],
        out_specs=_vmem_full((n, outputs)),
    )(*args)


# --------------------------------------------------------------------------------
# Parameters (PyTorch layouts / default inits) and a pure-JAX reference.
# --------------------------------------------------------------------------------

def init_params(h, w, outputs, key):
    def uniform(key, shape, fan_in):
        bound = 1.0 / (fan_in ** 0.5)
        return jax.random.uniform(key, shape, jnp.float32, -bound, bound)

    ks = jax.random.split(key, 8)
    lin_in = (conv2d_size_out(conv2d_size_out(conv2d_size_out(w)))
              * conv2d_size_out(conv2d_size_out(conv2d_size_out(h))) * 32)
    return {
        "conv1_w": uniform(ks[0], (16, 3, 5, 5), 3 * 25),
        "conv1_b": uniform(ks[1], (16,), 3 * 25),      # unused by kernel (BN cancels it)
        "conv2_w": uniform(ks[2], (32, 16, 5, 5), 16 * 25),
        "conv2_b": uniform(ks[3], (32,), 16 * 25),     # unused by kernel
        "conv3_w": uniform(ks[4], (32, 32, 5, 5), 32 * 25),
        "conv3_b": uniform(ks[5], (32,), 32 * 25),     # unused by kernel
        "bn1_g": jnp.ones((16,), jnp.float32), "bn1_b": jnp.zeros((16,), jnp.float32),
        "bn2_g": jnp.ones((32,), jnp.float32), "bn2_b": jnp.zeros((32,), jnp.float32),
        "bn3_g": jnp.ones((32,), jnp.float32), "bn3_b": jnp.zeros((32,), jnp.float32),
        "head_w": uniform(ks[6], (outputs, lin_in), lin_in),
        "head_b": uniform(ks[7], (outputs,), lin_in),
    }


def dqn_reference(params, x):
    # Pure-JAX/XLA reference mirroring the PyTorch module (training-mode BN).
    def conv(y, wt, b):
        y = jax.lax.conv_general_dilated(
            y, wt, (STRIDE, STRIDE), "VALID",
            dimension_numbers=("NCHW", "OIHW", "NCHW"))
        return y + b.reshape(1, -1, 1, 1)

    def bn(y, g, be):
        mean = jnp.mean(y, axis=(0, 2, 3), keepdims=True)
        var = jnp.mean((y - mean) ** 2, axis=(0, 2, 3), keepdims=True)
        return (y - mean) * jax.lax.rsqrt(var + EPS) * g.reshape(1, -1, 1, 1) \
            + be.reshape(1, -1, 1, 1)

    y = jax.nn.relu(bn(conv(x, params["conv1_w"], params["conv1_b"]),
                       params["bn1_g"], params["bn1_b"]))
    y = jax.nn.relu(bn(conv(y, params["conv2_w"], params["conv2_b"]),
                       params["bn2_g"], params["bn2_b"]))
    y = jax.nn.relu(bn(conv(y, params["conv3_w"], params["conv3_b"]),
                       params["bn3_g"], params["bn3_b"]))
    flat = y.reshape(y.shape[0], -1)
    return flat @ params["head_w"].T + params["head_b"]


if __name__ == "__main__":
    H, W, OUTPUTS, BATCH = 32, 32, 4, 2
    key = jax.random.PRNGKey(0)
    k_x, k_p = jax.random.split(key)
    x = jax.random.normal(k_x, (BATCH, 3, H, W), jnp.float32)     # NCHW input
    params = init_params(H, W, OUTPUTS, k_p)
    kparams = prepare_params(params, H, W)                        # one-time re-layout

    fwd = jax.jit(dqn_forward)
    out = jax.block_until_ready(fwd(kparams, x))
    assert out.shape == (BATCH, OUTPUTS), out.shape
    assert bool(jnp.all(jnp.isfinite(out)))

    ref = jax.block_until_ready(dqn_reference(params, x))
    np.testing.assert_allclose(np.asarray(out), np.asarray(ref), rtol=2e-3, atol=2e-3)

    print("KERNEL_OK")
</pallas_src>

<mosaic_0001>
module attributes {stable_mosaic.version = 11 : i64} {
  func.func @kernel(%arg0: memref<1792x75xf32, #tpu.memory_space<vmem>>, %arg1: memref<75x16xf32, #tpu.memory_space<vmem>>, %arg2: memref<25x16x32xf32, #tpu.memory_space<vmem>>, %arg3: memref<800x32xf32, #tpu.memory_space<vmem>>, %arg4: memref<32x4xf32, #tpu.memory_space<vmem>>, %arg5: memref<1x16xf32, #tpu.memory_space<vmem>>, %arg6: memref<1x16xf32, #tpu.memory_space<vmem>>, %arg7: memref<1x32xf32, #tpu.memory_space<vmem>>, %arg8: memref<1x32xf32, #tpu.memory_space<vmem>>, %arg9: memref<1x32xf32, #tpu.memory_space<vmem>>, %arg10: memref<1x32xf32, #tpu.memory_space<vmem>>, %arg11: memref<1x4xf32, #tpu.memory_space<vmem>>, %arg12: memref<56x1xf32, #tpu.memory_space<vmem>>, %arg13: memref<2x4xf32, #tpu.memory_space<vmem>>) attributes {dimension_semantics = [], scalar_prefetch = 0 : i64, scratch_operands = 0 : i64, tpu.core_type = #tpu.core_type<tc>} {
    %c0 = arith.constant 0 : index
    %c0_0 = arith.constant 0 : index
    %0 = vector.load %arg0[%c0, %c0_0] : memref<1792x75xf32, #tpu.memory_space<vmem>>, vector<1792x75xf32>
    %c0_1 = arith.constant 0 : index
    %c0_2 = arith.constant 0 : index
    %1 = vector.load %arg1[%c0_1, %c0_2] : memref<75x16xf32, #tpu.memory_space<vmem>>, vector<75x16xf32>
    %cst = arith.constant dense<0.000000e+00> : vector<1792x16xf32>
    %2 = tpu.matmul %0, %1, %cst {dimension_numbers = #tpu.dot_dimension_numbers<[1], [0], [0], [1], [0, 0, 1, 1], [], []>} : vector<1792x75xf32>, vector<75x16xf32>, vector<1792x16xf32> -> vector<1792x16xf32>
    %3 = vector.extract_strided_slice %2 {offsets = [0, 0], sizes = [392, 16], strides = [1, 1]} : vector<1792x16xf32> to vector<392x16xf32>
    %c0_3 = arith.constant 0 : index
    %c0_4 = arith.constant 0 : index
    %4 = vector.load %arg5[%c0_3, %c0_4] : memref<1x16xf32, #tpu.memory_space<vmem>>, vector<1x16xf32>
    %c0_5 = arith.constant 0 : index
    %c0_6 = arith.constant 0 : index
    %5 = vector.load %arg6[%c0_5, %c0_6] : memref<1x16xf32, #tpu.memory_space<vmem>>, vector<1x16xf32>
    %6 = vector.extract_strided_slice %3 {offsets = [0, 0], sizes = [1, 16], strides = [1, 1]} : vector<392x16xf32> to vector<1x16xf32>
    %7 = vector.broadcast %6 : vector<1x16xf32> to vector<392x16xf32>
    %8 = arith.subf %3, %7 : vector<392x16xf32>
    %9 = arith.mulf %8, %8 : vector<392x16xf32>
    %10 = tpu.concatenate %8, %9 in 1 : vector<392x16xf32>, vector<392x16xf32> -> vector<392x32xf32>
    %cst_7 = arith.constant dense<0.000000e+00> : vector<32xf32>
    %11 = vector.multi_reduction <add>, %10, %cst_7 [0] : vector<392x32xf32> to vector<32xf32>
    %12 = vector.shape_cast %11 : vector<32xf32> to vector<1x32xf32>
    %13 = vector.extract_strided_slice %12 {offsets = [0, 0], sizes = [1, 16], strides = [1, 1]} : vector<1x32xf32> to vector<1x16xf32>
    %cst_8 = arith.constant 0.00255102036 : f32
    %14 = vector.broadcast %cst_8 : f32 to vector<1x16xf32>
    %15 = arith.mulf %13, %14 : vector<1x16xf32>
    %16 = vector.extract_strided_slice %12 {offsets = [0, 16], sizes = [1, 16], strides = [1, 1]} : vector<1x32xf32> to vector<1x16xf32>
    %cst_9 = arith.constant 0.00255102036 : f32
    %17 = vector.broadcast %cst_9 : f32 to vector<1x16xf32>
    %18 = arith.mulf %16, %17 : vector<1x16xf32>
    %19 = arith.mulf %15, %15 : vector<1x16xf32>
    %20 = arith.subf %18, %19 : vector<1x16xf32>
    %cst_10 = arith.constant 0.000000e+00 : f32
    %21 = vector.broadcast %cst_10 : f32 to vector<1x16xf32>
    %22 = arith.maximumf %20, %21 : vector<1x16xf32>
    %cst_11 = arith.constant 9.99999974E-6 : f32
    %23 = vector.broadcast %cst_11 : f32 to vector<1x16xf32>
    %24 = arith.addf %22, %23 : vector<1x16xf32>
    %25 = math.rsqrt %24 : vector<1x16xf32>
    %26 = arith.mulf %4, %25 : vector<1x16xf32>
    %27 = arith.addf %6, %15 : vector<1x16xf32>
    %28 = arith.mulf %27, %26 : vector<1x16xf32>
    %29 = arith.subf %5, %28 : vector<1x16xf32>
    %30 = vector.extract_strided_slice %2 {offsets = [392, 0], sizes = [1400, 16], strides = [1, 1]} : vector<1792x16xf32> to vector<1400x16xf32>
    %31 = vector.broadcast %26 : vector<1x16xf32> to vector<1400x16xf32>
    %32 = arith.mulf %30, %31 : vector<1400x16xf32>
    %33 = vector.broadcast %29 : vector<1x16xf32> to vector<1400x16xf32>
    %34 = arith.addf %32, %33 : vector<1400x16xf32>
    %cst_12 = arith.constant 0.000000e+00 : f32
    %35 = vector.broadcast %cst_12 : f32 to vector<1400x16xf32>
    %36 = arith.maximumf %34, %35 : vector<1400x16xf32>
    %cst_13 = arith.constant 0.000000e+00 : f32
    %37 = vector.broadcast %cst_13 : f32 to vector<56x32xf32>
    %38 = vector.extract_strided_slice %36 {offsets = [0, 0], sizes = [56, 16], strides = [1, 1]} : vector<1400x16xf32> to vector<56x16xf32>
    %c0_14 = arith.constant 0 : index
    %c0_15 = arith.constant 0 : index
    %c0_16 = arith.constant 0 : index
    %39 = vector.load %arg2[%c0_14, %c0_15, %c0_16] : memref<25x16x32xf32, #tpu.memory_space<vmem>>, vector<1x16x32xf32>
    %40 = vector.shape_cast %39 : vector<1x16x32xf32> to vector<16x32xf32>
    %cst_17 = arith.constant dense<0.000000e+00> : vector<56x32xf32>
    %41 = tpu.matmul %38, %40, %cst_17 {dimension_numbers = #tpu.dot_dimension_numbers<[1], [0], [0], [1], [0, 0, 1, 1], [], []>} : vector<56x16xf32>, vector<16x32xf32>, vector<56x32xf32> -> vector<56x32xf32>
    %42 = arith.addf %37, %41 : vector<56x32xf32>
    %43 = vector.extract_strided_slice %36 {offsets = [56, 0], sizes = [56, 16], strides = [1, 1]} : vector<1400x16xf32> to vector<56x16xf32>
    %c1 = arith.constant 1 : index
    %c0_18 = arith.constant 0 : index
    %c0_19 = arith.constant 0 : index
    %44 = vector.load %arg2[%c1, %c0_18, %c0_19] : memref<25x16x32xf32, #tpu.memory_space<vmem>>, vector<1x16x32xf32>
    %45 = vector.shape_cast %44 : vector<1x16x32xf32> to vector<16x32xf32>
    %cst_20 = arith.constant dense<0.000000e+00> : vector<56x32xf32>
    %46 = tpu.matmul %43, %45, %cst_20 {dimension_numbers = #tpu.dot_dimension_numbers<[1], [0], [0], [1], [0, 0, 1, 1], [], []>} : vector<56x16xf32>, vector<16x32xf32>, vector<56x32xf32> -> vector<56x32xf32>
    %47 = arith.addf %42, %46 : vector<56x32xf32>
    %48 = vector.extract_strided_slice %36 {offsets = [112, 0], sizes = [56, 16], strides = [1, 1]} : vector<1400x16xf32> to vector<56x16xf32>
    %c2 = arith.constant 2 : index
    %c0_21 = arith.constant 0 : index
    %c0_22 = arith.constant 0 : index
    %49 = vector.load %arg2[%c2, %c0_21, %c0_22] : memref<25x16x32xf32, #tpu.memory_space<vmem>>, vector<1x16x32xf32>
    %50 = vector.shape_cast %49 : vector<1x16x32xf32> to vector<16x32xf32>
    %cst_23 = arith.constant dense<0.000000e+00> : vector<56x32xf32>
    %51 = tpu.matmul %48, %50, %cst_23 {dimension_numbers = #tpu.dot_dimension_numbers<[1], [0], [0], [1], [0, 0, 1, 1], [], []>} : vector<56x16xf32>, vector<16x32xf32>, vector<56x32xf32> -> vector<56x32xf32>
    %52 = arith.addf %47, %51 : vector<56x32xf32>
    %53 = vector.extract_strided_slice %36 {offsets = [168, 0], sizes = [56, 16], strides = [1, 1]} : vector<1400x16xf32> to vector<56x16xf32>
    %c3 = arith.constant 3 : index
    %c0_24 = arith.constant 0 : index
    %c0_25 = arith.constant 0 : index
    %54 = vector.load %arg2[%c3, %c0_24, %c0_25] : memref<25x16x32xf32, #tpu.memory_space<vmem>>, vector<1x16x32xf32>
    %55 = vector.shape_cast %54 : vector<1x16x32xf32> to vector<16x32xf32>
    %cst_26 = arith.constant dense<0.000000e+00> : vector<56x32xf32>
    %56 = tpu.matmul %53, %55, %cst_26 {dimension_numbers = #tpu.dot_dimension_numbers<[1], [0], [0], [1], [0, 0, 1, 1], [], []>} : vector<56x16xf32>, vector<16x32xf32>, vector<56x32xf32> -> vector<56x32xf32>
    %57 = arith.addf %52, %56 : vector<56x32xf32>
    %58 = vector.extract_strided_slice %36 {offsets = [224, 0], sizes = [56, 16], strides = [1, 1]} : vector<1400x16xf32> to vector<56x16xf32>
    %c4 = arith.constant 4 : index
    %c0_27 = arith.constant 0 : index
    %c0_28 = arith.constant 0 : index
    %59 = vector.load %arg2[%c4, %c0_27, %c0_28] : memref<25x16x32xf32, #tpu.memory_space<vmem>>, vector<1x16x32xf32>
    %60 = vector.shape_cast %59 : vector<1x16x32xf32> to vector<16x32xf32>
    %cst_29 = arith.constant dense<0.000000e+00> : vector<56x32xf32>
    %61 = tpu.matmul %58, %60, %cst_29 {dimension_numbers = #tpu.dot_dimension_numbers<[1], [0], [0], [1], [0, 0, 1, 1], [], []>} : vector<56x16xf32>, vector<16x32xf32>, vector<56x32xf32> -> vector<56x32xf32>
    %62 = arith.addf %57, %61 : vector<56x32xf32>
    %63 = vector.extract_strided_slice %36 {offsets = [280, 0], sizes = [56, 16], strides = [1, 1]} : vector<1400x16xf32> to vector<56x16xf32>
    %c5 = arith.constant 5 : index
    %c0_30 = arith.constant 0 : index
    %c0_31 = arith.constant 0 : index
    %64 = vector.load %arg2[%c5, %c0_30, %c0_31] : memref<25x16x32xf32, #tpu.memory_space<vmem>>, vector<1x16x32xf32>
    %65 = vector.shape_cast %64 : vector<1x16x32xf32> to vector<16x32xf32>
    %cst_32 = arith.constant dense<0.000000e+00> : vector<56x32xf32>
    %66 = tpu.matmul %63, %65, %cst_32 {dimension_numbers = #tpu.dot_dimension_numbers<[1], [0], [0], [1], [0, 0, 1, 1], [], []>} : vector<56x16xf32>, vector<16x32xf32>, vector<56x32xf32> -> vector<56x32xf32>
    %67 = arith.addf %62, %66 : vector<56x32xf32>
    %68 = vector.extract_strided_slice %36 {offsets = [336, 0], sizes = [56, 16], strides = [1, 1]} : vector<1400x16xf32> to vector<56x16xf32>
    %c6 = arith.constant 6 : index
    %c0_33 = arith.constant 0 : index
    %c0_34 = arith.constant 0 : index
    %69 = vector.load %arg2[%c6, %c0_33, %c0_34] : memref<25x16x32xf32, #tpu.memory_space<vmem>>, vector<1x16x32xf32>
    %70 = vector.shape_cast %69 : vector<1x16x32xf32> to vector<16x32xf32>
    %cst_35 = arith.constant dense<0.000000e+00> : vector<56x32xf32>
    %71 = tpu.matmul %68, %70, %cst_35 {dimension_numbers = #tpu.dot_dimension_numbers<[1], [0], [0], [1], [0, 0, 1, 1], [], []>} : vector<56x16xf32>, vector<16x32xf32>, vector<56x32xf32> -> vector<56x32xf32>
    %72 = arith.addf %67, %71 : vector<56x32xf32>
    %73 = vector.extract_strided_slice %36 {offsets = [392, 0], sizes = [56, 16], strides = [1, 1]} : vector<1400x16xf32> to vector<56x16xf32>
    %c7 = arith.constant 7 : index
    %c0_36 = arith.constant 0 : index
    %c0_37 = arith.constant 0 : index
    %74 = vector.load %arg2[%c7, %c0_36, %c0_37] : memref<25x16x32xf32, #tpu.memory_space<vmem>>, vector<1x16x32xf32>
    %75 = vector.shape_cast %74 : vector<1x16x32xf32> to vector<16x32xf32>
    %cst_38 = arith.constant dense<0.000000e+00> : vector<56x32xf32>
    %76 = tpu.matmul %73, %75, %cst_38 {dimension_numbers = #tpu.dot_dimension_numbers<[1], [0], [0], [1], [0, 0, 1, 1], [], []>} : vector<56x16xf32>, vector<16x32xf32>, vector<56x32xf32> -> vector<56x32xf32>
    %77 = arith.addf %72, %76 : vector<56x32xf32>
    %78 = vector.extract_strided_slice %36 {offsets = [448, 0], sizes = [56, 16], strides = [1, 1]} : vector<1400x16xf32> to vector<56x16xf32>
    %c8 = arith.constant 8 : index
    %c0_39 = arith.constant 0 : index
    %c0_40 = arith.constant 0 : index
    %79 = vector.load %arg2[%c8, %c0_39, %c0_40] : memref<25x16x32xf32, #tpu.memory_space<vmem>>, vector<1x16x32xf32>
    %80 = vector.shape_cast %79 : vector<1x16x32xf32> to vector<16x32xf32>
    %cst_41 = arith.constant dense<0.000000e+00> : vector<56x32xf32>
    %81 = tpu.matmul %78, %80, %cst_41 {dimension_numbers = #tpu.dot_dimension_numbers<[1], [0], [0], [1], [0, 0, 1, 1], [], []>} : vector<56x16xf32>, vector<16x32xf32>, vector<56x32xf32> -> vector<56x32xf32>
    %82 = arith.addf %77, %81 : vector<56x32xf32>
    %83 = vector.extract_strided_slice %36 {offsets = [504, 0], sizes = [56, 16], strides = [1, 1]} : vector<1400x16xf32> to vector<56x16xf32>
    %c9 = arith.constant 9 : index
    %c0_42 = arith.constant 0 : index
    %c0_43 = arith.constant 0 : index
    %84 = vector.load %arg2[%c9, %c0_42, %c0_43] : memref<25x16x32xf32, #tpu.memory_space<vmem>>, vector<1x16x32xf32>
    %85 = vector.shape_cast %84 : vector<1x16x32xf32> to vector<16x32xf32>
    %cst_44 = arith.constant dense<0.000000e+00> : vector<56x32xf32>
    %86 = tpu.matmul %83, %85, %cst_44 {dimension_numbers = #tpu.dot_dimension_numbers<[1], [0], [0], [1], [0, 0, 1, 1], [], []>} : vector<56x16xf32>, vector<16x32xf32>, vector<56x32xf32> -> vector<56x32xf32>
    %87 = arith.addf %82, %86 : vector<56x32xf32>
    %88 = vector.extract_strided_slice %36 {offsets = [560, 0], sizes = [56, 16], strides = [1, 1]} : vector<1400x16xf32> to vector<56x16xf32>
    %c10 = arith.constant 10 : index
    %c0_45 = arith.constant 0 : index
    %c0_46 = arith.constant 0 : index
    %89 = vector.load %arg2[%c10, %c0_45, %c0_46] : memref<25x16x32xf32, #tpu.memory_space<vmem>>, vector<1x16x32xf32>
    %90 = vector.shape_cast %89 : vector<1x16x32xf32> to vector<16x32xf32>
    %cst_47 = arith.constant dense<0.000000e+00> : vector<56x32xf32>
    %91 = tpu.matmul %88, %90, %cst_47 {dimension_numbers = #tpu.dot_dimension_numbers<[1], [0], [0], [1], [0, 0, 1, 1], [], []>} : vector<56x16xf32>, vector<16x32xf32>, vector<56x32xf32> -> vector<56x32xf32>
    %92 = arith.addf %87, %91 : vector<56x32xf32>
    %93 = vector.extract_strided_slice %36 {offsets = [616, 0], sizes = [56, 16], strides = [1, 1]} : vector<1400x16xf32> to vector<56x16xf32>
    %c11 = arith.constant 11 : index
    %c0_48 = arith.constant 0 : index
    %c0_49 = arith.constant 0 : index
    %94 = vector.load %arg2[%c11, %c0_48, %c0_49] : memref<25x16x32xf32, #tpu.memory_space<vmem>>, vector<1x16x32xf32>
    %95 = vector.shape_cast %94 : vector<1x16x32xf32> to vector<16x32xf32>
    %cst_50 = arith.constant dense<0.000000e+00> : vector<56x32xf32>
    %96 = tpu.matmul %93, %95, %cst_50 {dimension_numbers = #tpu.dot_dimension_numbers<[1], [0], [0], [1], [0, 0, 1, 1], [], []>} : vector<56x16xf32>, vector<16x32xf32>, vector<56x32xf32> -> vector<56x32xf32>
    %97 = arith.addf %92, %96 : vector<56x32xf32>
    %98 = vector.extract_strided_slice %36 {offsets = [672, 0], sizes = [56, 16], strides = [1, 1]} : vector<1400x16xf32> to vector<56x16xf32>
    %c12 = arith.constant 12 : index
    %c0_51 = arith.constant 0 : index
    %c0_52 = arith.constant 0 : index
    %99 = vector.load %arg2[%c12, %c0_51, %c0_52] : memref<25x16x32xf32, #tpu.memory_space<vmem>>, vector<1x16x32xf32>
    %100 = vector.shape_cast %99 : vector<1x16x32xf32> to vector<16x32xf32>
    %cst_53 = arith.constant dense<0.000000e+00> : vector<56x32xf32>
    %101 = tpu.matmul %98, %100, %cst_53 {dimension_numbers = #tpu.dot_dimension_numbers<[1], [0], [0], [1], [0, 0, 1, 1], [], []>} : vector<56x16xf32>, vector<16x32xf32>, vector<56x32xf32> -> vector<56x32xf32>
    %102 = arith.addf %97, %101 : vector<56x32xf32>
    %103 = vector.extract_strided_slice %36 {offsets = [728, 0], sizes = [56, 16], strides = [1, 1]} : vector<1400x16xf32> to vector<56x16xf32>
    %c13 = arith.constant 13 : index
    %c0_54 = arith.constant 0 : index
    %c0_55 = arith.constant 0 : index
    %104 = vector.load %arg2[%c13, %c0_54, %c0_55] : memref<25x16x32xf32, #tpu.memory_space<vmem>>, vector<1x16x32xf32>
    %105 = vector.shape_cast %104 : vector<1x16x32xf32> to vector<16x32xf32>
    %cst_56 = arith.constant dense<0.000000e+00> : vector<56x32xf32>
    %106 = tpu.matmul %103, %105, %cst_56 {dimension_numbers = #tpu.dot_dimension_numbers<[1], [0], [0], [1], [0, 0, 1, 1], [], []>} : vector<56x16xf32>, vector<16x32xf32>, vector<56x32xf32> -> vector<56x32xf32>
    %107 = arith.addf %102, %106 : vector<56x32xf32>
    %108 = vector.extract_strided_slice %36 {offsets = [784, 0], sizes = [56, 16], strides = [1, 1]} : vector<1400x16xf32> to vector<56x16xf32>
    %c14 = arith.constant 14 : index
    %c0_57 = arith.constant 0 : index
    %c0_58 = arith.constant 0 : index
    %109 = vector.load %arg2[%c14, %c0_57, %c0_58] : memref<25x16x32xf32, #tpu.memory_space<vmem>>, vector<1x16x32xf32>
    %110 = vector.shape_cast %109 : vector<1x16x32xf32> to vector<16x32xf32>
    %cst_59 = arith.constant dense<0.000000e+00> : vector<56x32xf32>
    %111 = tpu.matmul %108, %110, %cst_59 {dimension_numbers = #tpu.dot_dimension_numbers<[1], [0], [0], [1], [0, 0, 1, 1], [], []>} : vector<56x16xf32>, vector<16x32xf32>, vector<56x32xf32> -> vector<56x32xf32>
    %112 = arith.addf %107, %111 : vector<56x32xf32>
    %113 = vector.extract_strided_slice %36 {offsets = [840, 0], sizes = [56, 16], strides = [1, 1]} : vector<1400x16xf32> to vector<56x16xf32>
    %c15 = arith.constant 15 : index
    %c0_60 = arith.constant 0 : index
    %c0_61 = arith.constant 0 : index
    %114 = vector.load %arg2[%c15, %c0_60, %c0_61] : memref<25x16x32xf32, #tpu.memory_space<vmem>>, vector<1x16x32xf32>
    %115 = vector.shape_cast %114 : vector<1x16x32xf32> to vector<16x32xf32>
    %cst_62 = arith.constant dense<0.000000e+00> : vector<56x32xf32>
    %116 = tpu.matmul %113, %115, %cst_62 {dimension_numbers = #tpu.dot_dimension_numbers<[1], [0], [0], [1], [0, 0, 1, 1], [], []>} : vector<56x16xf32>, vector<16x32xf32>, vector<56x32xf32> -> vector<56x32xf32>
    %117 = arith.addf %112, %116 : vector<56x32xf32>
    %118 = vector.extract_strided_slice %36 {offsets = [896, 0], sizes = [56, 16], strides = [1, 1]} : vector<1400x16xf32> to vector<56x16xf32>
    %c16 = arith.constant 16 : index
    %c0_63 = arith.constant 0 : index
    %c0_64 = arith.constant 0 : index
    %119 = vector.load %arg2[%c16, %c0_63, %c0_64] : memref<25x16x32xf32, #tpu.memory_space<vmem>>, vector<1x16x32xf32>
    %120 = vector.shape_cast %119 : vector<1x16x32xf32> to vector<16x32xf32>
    %cst_65 = arith.constant dense<0.000000e+00> : vector<56x32xf32>
    %121 = tpu.matmul %118, %120, %cst_65 {dimension_numbers = #tpu.dot_dimension_numbers<[1], [0], [0], [1], [0, 0, 1, 1], [], []>} : vector<56x16xf32>, vector<16x32xf32>, vector<56x32xf32> -> vector<56x32xf32>
    %122 = arith.addf %117, %121 : vector<56x32xf32>
    %123 = vector.extract_strided_slice %36 {offsets = [952, 0], sizes = [56, 16], strides = [1, 1]} : vector<1400x16xf32> to vector<56x16xf32>
    %c17 = arith.constant 17 : index
    %c0_66 = arith.constant 0 : index
    %c0_67 = arith.constant 0 : index
    %124 = vector.load %arg2[%c17, %c0_66, %c0_67] : memref<25x16x32xf32, #tpu.memory_space<vmem>>, vector<1x16x32xf32>
    %125 = vector.shape_cast %124 : vector<1x16x32xf32> to vector<16x32xf32>
    %cst_68 = arith.constant dense<0.000000e+00> : vector<56x32xf32>
    %126 = tpu.matmul %123, %125, %cst_68 {dimension_numbers = #tpu.dot_dimension_numbers<[1], [0], [0], [1], [0, 0, 1, 1], [], []>} : vector<56x16xf32>, vector<16x32xf32>, vector<56x32xf32> -> vector<56x32xf32>
    %127 = arith.addf %122, %126 : vector<56x32xf32>
    %128 = vector.extract_strided_slice %36 {offsets = [1008, 0], sizes = [56, 16], strides = [1, 1]} : vector<1400x16xf32> to vector<56x16xf32>
    %c18 = arith.constant 18 : index
    %c0_69 = arith.constant 0 : index
    %c0_70 = arith.constant 0 : index
    %129 = vector.load %arg2[%c18, %c0_69, %c0_70] : memref<25x16x32xf32, #tpu.memory_space<vmem>>, vector<1x16x32xf32>
    %130 = vector.shape_cast %129 : vector<1x16x32xf32> to vector<16x32xf32>
    %cst_71 = arith.constant dense<0.000000e+00> : vector<56x32xf32>
    %131 = tpu.matmul %128, %130, %cst_71 {dimension_numbers = #tpu.dot_dimension_numbers<[1], [0], [0], [1], [0, 0, 1, 1], [], []>} : vector<56x16xf32>, vector<16x32xf32>, vector<56x32xf32> -> vector<56x32xf32>
    %132 = arith.addf %127, %131 : vector<56x32xf32>
    %133 = vector.extract_strided_slice %36 {offsets = [1064, 0], sizes = [56, 16], strides = [1, 1]} : vector<1400x16xf32> to vector<56x16xf32>
    %c19 = arith.constant 19 : index
    %c0_72 = arith.constant 0 : index
    %c0_73 = arith.constant 0 : index
    %134 = vector.load %arg2[%c19, %c0_72, %c0_73] : memref<25x16x32xf32, #tpu.memory_space<vmem>>, vector<1x16x32xf32>
    %135 = vector.shape_cast %134 : vector<1x16x32xf32> to vector<16x32xf32>
    %cst_74 = arith.constant dense<0.000000e+00> : vector<56x32xf32>
    %136 = tpu.matmul %133, %135, %cst_74 {dimension_numbers = #tpu.dot_dimension_numbers<[1], [0], [0], [1], [0, 0, 1, 1], [], []>} : vector<56x16xf32>, vector<16x32xf32>, vector<56x32xf32> -> vector<56x32xf32>
    %137 = arith.addf %132, %136 : vector<56x32xf32>
    %138 = vector.extract_strided_slice %36 {offsets = [1120, 0], sizes = [56, 16], strides = [1, 1]} : vector<1400x16xf32> to vector<56x16xf32>
    %c20 = arith.constant 20 : index
    %c0_75 = arith.constant 0 : index
    %c0_76 = arith.constant 0 : index
    %139 = vector.load %arg2[%c20, %c0_75, %c0_76] : memref<25x16x32xf32, #tpu.memory_space<vmem>>, vector<1x16x32xf32>
    %140 = vector.shape_cast %139 : vector<1x16x32xf32> to vector<16x32xf32>
    %cst_77 = arith.constant dense<0.000000e+00> : vector<56x32xf32>
    %141 = tpu.matmul %138, %140, %cst_77 {dimension_numbers = #tpu.dot_dimension_numbers<[1], [0], [0], [1], [0, 0, 1, 1], [], []>} : vector<56x16xf32>, vector<16x32xf32>, vector<56x32xf32> -> vector<56x32xf32>
    %142 = arith.addf %137, %141 : vector<56x32xf32>
    %143 = vector.extract_strided_slice %36 {offsets = [1176, 0], sizes = [56, 16], strides = [1, 1]} : vector<1400x16xf32> to vector<56x16xf32>
    %c21 = arith.constant 21 : index
    %c0_78 = arith.constant 0 : index
    %c0_79 = arith.constant 0 : index
    %144 = vector.load %arg2[%c21, %c0_78, %c0_79] : memref<25x16x32xf32, #tpu.memory_space<vmem>>, vector<1x16x32xf32>
    %145 = vector.shape_cast %144 : vector<1x16x32xf32> to vector<16x32xf32>
    %cst_80 = arith.constant dense<0.000000e+00> : vector<56x32xf32>
    %146 = tpu.matmul %143, %145, %cst_80 {dimension_numbers = #tpu.dot_dimension_numbers<[1], [0], [0], [1], [0, 0, 1, 1], [], []>} : vector<56x16xf32>, vector<16x32xf32>, vector<56x32xf32> -> vector<56x32xf32>
    %147 = arith.addf %142, %146 : vector<56x32xf32>
    %148 = vector.extract_strided_slice %36 {offsets = [1232, 0], sizes = [56, 16], strides = [1, 1]} : vector<1400x16xf32> to vector<56x16xf32>
    %c22 = arith.constant 22 : index
    %c0_81 = arith.constant 0 : index
    %c0_82 = arith.constant 0 : index
    %149 = vector.load %arg2[%c22, %c0_81, %c0_82] : memref<25x16x32xf32, #tpu.memory_space<vmem>>, vector<1x16x32xf32>
    %150 = vector.shape_cast %149 : vector<1x16x32xf32> to vector<16x32xf32>
    %cst_83 = arith.constant dense<0.000000e+00> : vector<56x32xf32>
    %151 = tpu.matmul %148, %150, %cst_83 {dimension_numbers = #tpu.dot_dimension_numbers<[1], [0], [0], [1], [0, 0, 1, 1], [], []>} : vector<56x16xf32>, vector<16x32xf32>, vector<56x32xf32> -> vector<56x32xf32>
    %152 = arith.addf %147, %151 : vector<56x32xf32>
    %153 = vector.extract_strided_slice %36 {offsets = [1288, 0], sizes = [56, 16], strides = [1, 1]} : vector<1400x16xf32> to vector<56x16xf32>
    %c23 = arith.constant 23 : index
    %c0_84 = arith.constant 0 : index
    %c0_85 = arith.constant 0 : index
    %154 = vector.load %arg2[%c23, %c0_84, %c0_85] : memref<25x16x32xf32, #tpu.memory_space<vmem>>, vector<1x16x32xf32>
    %155 = vector.shape_cast %154 : vector<1x16x32xf32> to vector<16x32xf32>
    %cst_86 = arith.constant dense<0.000000e+00> : vector<56x32xf32>
    %156 = tpu.matmul %153, %155, %cst_86 {dimension_numbers = #tpu.dot_dimension_numbers<[1], [0], [0], [1], [0, 0, 1, 1], [], []>} : vector<56x16xf32>, vector<16x32xf32>, vector<56x32xf32> -> vector<56x32xf32>
    %157 = arith.addf %152, %156 : vector<56x32xf32>
    %158 = vector.extract_strided_slice %36 {offsets = [1344, 0], sizes = [56, 16], strides = [1, 1]} : vector<1400x16xf32> to vector<56x16xf32>
    %c24 = arith.constant 24 : index
    %c0_87 = arith.constant 0 : index
    %c0_88 = arith.constant 0 : index
    %159 = vector.load %arg2[%c24, %c0_87, %c0_88] : memref<25x16x32xf32, #tpu.memory_space<vmem>>, vector<1x16x32xf32>
    %160 = vector.shape_cast %159 : vector<1x16x32xf32> to vector<16x32xf32>
    %cst_89 = arith.constant dense<0.000000e+00> : vector<56x32xf32>
    %161 = tpu.matmul %158, %160, %cst_89 {dimension_numbers = #tpu.dot_dimension_numbers<[1], [0], [0], [1], [0, 0, 1, 1], [], []>} : vector<56x16xf32>, vector<16x32xf32>, vector<56x32xf32> -> vector<56x32xf32>
    %162 = arith.addf %157, %161 : vector<56x32xf32>
    %c0_90 = arith.constant 0 : index
    %c0_91 = arith.constant 0 : index
    %163 = vector.load %arg7[%c0_90, %c0_91] : memref<1x32xf32, #tpu.memory_space<vmem>>, vector<1x32xf32>
    %c0_92 = arith.constant 0 : index
    %c0_93 = arith.constant 0 : index
    %164 = vector.load %arg8[%c0_92, %c0_93] : memref<1x32xf32, #tpu.memory_space<vmem>>, vector<1x32xf32>
    %c0_94 = arith.constant 0 : index
    %c0_95 = arith.constant 0 : index
    %165 = vector.load %arg12[%c0_94, %c0_95] : memref<56x1xf32, #tpu.memory_space<vmem>>, vector<56x1xf32>
    %166 = vector.extract_strided_slice %162 {offsets = [0, 0], sizes = [1, 32], strides = [1, 1]} : vector<56x32xf32> to vector<1x32xf32>
    %167 = vector.broadcast %166 : vector<1x32xf32> to vector<56x32xf32>
    %168 = arith.subf %162, %167 : vector<56x32xf32>
    %169 = vector.broadcast %165 : vector<56x1xf32> to vector<56x32xf32>
    %170 = arith.mulf %168, %169 : vector<56x32xf32>
    %171 = arith.mulf %170, %168 : vector<56x32xf32>
    %172 = tpu.concatenate %170, %171 in 1 : vector<56x32xf32>, vector<56x32xf32> -> vector<56x64xf32>
    %cst_96 = arith.constant dense<0.000000e+00> : vector<64xf32>
    %173 = vector.multi_reduction <add>, %172, %cst_96 [0] : vector<56x64xf32> to vector<64xf32>
    %174 = vector.shape_cast %173 : vector<64xf32> to vector<1x64xf32>
    %175 = vector.extract_strided_slice %174 {offsets = [0, 0], sizes = [1, 32], strides = [1, 1]} : vector<1x64xf32> to vector<1x32xf32>
    %cst_97 = arith.constant 2.000000e-02 : f32
    %176 = vector.broadcast %cst_97 : f32 to vector<1x32xf32>
    %177 = arith.mulf %175, %176 : vector<1x32xf32>
    %178 = vector.extract_strided_slice %174 {offsets = [0, 32], sizes = [1, 32], strides = [1, 1]} : vector<1x64xf32> to vector<1x32xf32>
    %cst_98 = arith.constant 2.000000e-02 : f32
    %179 = vector.broadcast %cst_98 : f32 to vector<1x32xf32>
    %180 = arith.mulf %178, %179 : vector<1x32xf32>
    %181 = arith.mulf %177, %177 : vector<1x32xf32>
    %182 = arith.subf %180, %181 : vector<1x32xf32>
    %cst_99 = arith.constant 0.000000e+00 : f32
    %183 = vector.broadcast %cst_99 : f32 to vector<1x32xf32>
    %184 = arith.maximumf %182, %183 : vector<1x32xf32>
    %cst_100 = arith.constant 9.99999974E-6 : f32
    %185 = vector.broadcast %cst_100 : f32 to vector<1x32xf32>
    %186 = arith.addf %184, %185 : vector<1x32xf32>
    %187 = math.rsqrt %186 : vector<1x32xf32>
    %188 = arith.mulf %163, %187 : vector<1x32xf32>
    %189 = arith.addf %166, %177 : vector<1x32xf32>
    %190 = arith.mulf %189, %188 : vector<1x32xf32>
    %191 = arith.subf %164, %190 : vector<1x32xf32>
    %192 = vector.broadcast %188 : vector<1x32xf32> to vector<56x32xf32>
    %193 = arith.mulf %162, %192 : vector<56x32xf32>
    %194 = vector.broadcast %191 : vector<1x32xf32> to vector<56x32xf32>
    %195 = arith.addf %193, %194 : vector<56x32xf32>
    %cst_101 = arith.constant 0.000000e+00 : f32
    %196 = vector.broadcast %cst_101 : f32 to vector<56x32xf32>
    %197 = arith.maximumf %195, %196 : vector<56x32xf32>
    %198 = vector.extract_strided_slice %197 {offsets = [0, 0], sizes = [2, 32], strides = [1, 1]} : vector<56x32xf32> to vector<2x32xf32>
    %199 = vector.extract_strided_slice %197 {offsets = [2, 0], sizes = [2, 32], strides = [1, 1]} : vector<56x32xf32> to vector<2x32xf32>
    %200 = vector.extract_strided_slice %197 {offsets = [4, 0], sizes = [2, 32], strides = [1, 1]} : vector<56x32xf32> to vector<2x32xf32>
    %201 = vector.extract_strided_slice %197 {offsets = [6, 0], sizes = [2, 32], strides = [1, 1]} : vector<56x32xf32> to vector<2x32xf32>
    %202 = vector.extract_strided_slice %197 {offsets = [8, 0], sizes = [2, 32], strides = [1, 1]} : vector<56x32xf32> to vector<2x32xf32>
    %203 = vector.extract_strided_slice %197 {offsets = [10, 0], sizes = [2, 32], strides = [1, 1]} : vector<56x32xf32> to vector<2x32xf32>
    %204 = vector.extract_strided_slice %197 {offsets = [12, 0], sizes = [2, 32], strides = [1, 1]} : vector<56x32xf32> to vector<2x32xf32>
    %205 = vector.extract_strided_slice %197 {offsets = [14, 0], sizes = [2, 32], strides = [1, 1]} : vector<56x32xf32> to vector<2x32xf32>
    %206 = vector.extract_strided_slice %197 {offsets = [16, 0], sizes = [2, 32], strides = [1, 1]} : vector<56x32xf32> to vector<2x32xf32>
    %207 = vector.extract_strided_slice %197 {offsets = [18, 0], sizes = [2, 32], strides = [1, 1]} : vector<56x32xf32> to vector<2x32xf32>
    %208 = vector.extract_strided_slice %197 {offsets = [20, 0], sizes = [2, 32], strides = [1, 1]} : vector<56x32xf32> to vector<2x32xf32>
    %209 = vector.extract_strided_slice %197 {offsets = [22, 0], sizes = [2, 32], strides = [1, 1]} : vector<56x32xf32> to vector<2x32xf32>
    %210 = vector.extract_strided_slice %197 {offsets = [24, 0], sizes = [2, 32], strides = [1, 1]} : vector<56x32xf32> to vector<2x32xf32>
    %211 = vector.extract_strided_slice %197 {offsets = [26, 0], sizes = [2, 32], strides = [1, 1]} : vector<56x32xf32> to vector<2x32xf32>
    %212 = vector.extract_strided_slice %197 {offsets = [28, 0], sizes = [2, 32], strides = [1, 1]} : vector<56x32xf32> to vector<2x32xf32>
    %213 = vector.extract_strided_slice %197 {offsets = [30, 0], sizes = [2, 32], strides = [1, 1]} : vector<56x32xf32> to vector<2x32xf32>
    %214 = vector.extract_strided_slice %197 {offsets = [32, 0], sizes = [2, 32], strides = [1, 1]} : vector<56x32xf32> to vector<2x32xf32>
    %215 = vector.extract_strided_slice %197 {offsets = [34, 0], sizes = [2, 32], strides = [1, 1]} : vector<56x32xf32> to vector<2x32xf32>
    %216 = vector.extract_strided_slice %197 {offsets = [36, 0], sizes = [2, 32], strides = [1, 1]} : vector<56x32xf32> to vector<2x32xf32>
    %217 = vector.extract_strided_slice %197 {offsets = [38, 0], sizes = [2, 32], strides = [1, 1]} : vector<56x32xf32> to vector<2x32xf32>
    %218 = vector.extract_strided_slice %197 {offsets = [40, 0], sizes = [2, 32], strides = [1, 1]} : vector<56x32xf32> to vector<2x32xf32>
    %219 = vector.extract_strided_slice %197 {offsets = [42, 0], sizes = [2, 32], strides = [1, 1]} : vector<56x32xf32> to vector<2x32xf32>
    %220 = vector.extract_strided_slice %197 {offsets = [44, 0], sizes = [2, 32], strides = [1, 1]} : vector<56x32xf32> to vector<2x32xf32>
    %221 = vector.extract_strided_slice %197 {offsets = [46, 0], sizes = [2, 32], strides = [1, 1]} : vector<56x32xf32> to vector<2x32xf32>
    %222 = vector.extract_strided_slice %197 {offsets = [48, 0], sizes = [2, 32], strides = [1, 1]} : vector<56x32xf32> to vector<2x32xf32>
    %223 = tpu.concatenate %198, %199, %200, %201, %202, %203, %204, %205, %206, %207, %208, %209, %210, %211, %212, %213 in 1 : vector<2x32xf32>, vector<2x32xf32>, vector<2x32xf32>, vector<2x32xf32>, vector<2x32xf32>, vector<2x32xf32>, vector<2x32xf32>, vector<2x32xf32>, vector<2x32xf32>, vector<2x32xf32>, vector<2x32xf32>, vector<2x32xf32>, vector<2x32xf32>, vector<2x32xf32>, vector<2x32xf32>, vector<2x32xf32> -> vector<2x512xf32>
    %224 = tpu.concatenate %214, %215, %216, %217, %218, %219, %220, %221, %222 in 1 : vector<2x32xf32>, vector<2x32xf32>, vector<2x32xf32>, vector<2x32xf32>, vector<2x32xf32>, vector<2x32xf32>, vector<2x32xf32>, vector<2x32xf32>, vector<2x32xf32> -> vector<2x288xf32>
    %225 = tpu.concatenate %223, %224 in 1 : vector<2x512xf32>, vector<2x288xf32> -> vector<2x800xf32>
    %c0_102 = arith.constant 0 : index
    %c0_103 = arith.constant 0 : index
    %226 = vector.load %arg3[%c0_102, %c0_103] : memref<800x32xf32, #tpu.memory_space<vmem>>, vector<800x32xf32>
    %cst_104 = arith.constant dense<0.000000e+00> : vector<2x32xf32>
    %227 = tpu.matmul %225, %226, %cst_104 {dimension_numbers = #tpu.dot_dimension_numbers<[1], [0], [0], [1], [0, 0, 1, 1], [], []>} : vector<2x800xf32>, vector<800x32xf32>, vector<2x32xf32> -> vector<2x32xf32>
    %c0_105 = arith.constant 0 : index
    %c0_106 = arith.constant 0 : index
    %228 = vector.load %arg9[%c0_105, %c0_106] : memref<1x32xf32, #tpu.memory_space<vmem>>, vector<1x32xf32>
    %c0_107 = arith.constant 0 : index
    %c0_108 = arith.constant 0 : index
    %229 = vector.load %arg10[%c0_107, %c0_108] : memref<1x32xf32, #tpu.memory_space<vmem>>, vector<1x32xf32>
    %230 = vector.extract_strided_slice %227 {offsets = [0, 0], sizes = [1, 32], strides = [1, 1]} : vector<2x32xf32> to vector<1x32xf32>
    %231 = vector.broadcast %230 : vector<1x32xf32> to vector<2x32xf32>
    %232 = arith.subf %227, %231 : vector<2x32xf32>
    %233 = arith.mulf %232, %232 : vector<2x32xf32>
    %234 = tpu.concatenate %232, %233 in 1 : vector<2x32xf32>, vector<2x32xf32> -> vector<2x64xf32>
    %cst_109 = arith.constant dense<0.000000e+00> : vector<64xf32>
    %235 = vector.multi_reduction <add>, %234, %cst_109 [0] : vector<2x64xf32> to vector<64xf32>
    %236 = vector.shape_cast %235 : vector<64xf32> to vector<1x64xf32>
    %237 = vector.extract_strided_slice %236 {offsets = [0, 0], sizes = [1, 32], strides = [1, 1]} : vector<1x64xf32> to vector<1x32xf32>
    %cst_110 = arith.constant 5.000000e-01 : f32
    %238 = vector.broadcast %cst_110 : f32 to vector<1x32xf32>
    %239 = arith.mulf %237, %238 : vector<1x32xf32>
    %240 = vector.extract_strided_slice %236 {offsets = [0, 32], sizes = [1, 32], strides = [1, 1]} : vector<1x64xf32> to vector<1x32xf32>
    %cst_111 = arith.constant 5.000000e-01 : f32
    %241 = vector.broadcast %cst_111 : f32 to vector<1x32xf32>
    %242 = arith.mulf %240, %241 : vector<1x32xf32>
    %243 = arith.mulf %239, %239 : vector<1x32xf32>
    %244 = arith.subf %242, %243 : vector<1x32xf32>
    %cst_112 = arith.constant 0.000000e+00 : f32
    %245 = vector.broadcast %cst_112 : f32 to vector<1x32xf32>
    %246 = arith.maximumf %244, %245 : vector<1x32xf32>
    %cst_113 = arith.constant 9.99999974E-6 : f32
    %247 = vector.broadcast %cst_113 : f32 to vector<1x32xf32>
    %248 = arith.addf %246, %247 : vector<1x32xf32>
    %249 = math.rsqrt %248 : vector<1x32xf32>
    %250 = arith.mulf %228, %249 : vector<1x32xf32>
    %251 = arith.addf %230, %239 : vector<1x32xf32>
    %252 = arith.mulf %251, %250 : vector<1x32xf32>
    %253 = arith.subf %229, %252 : vector<1x32xf32>
    %254 = vector.broadcast %250 : vector<1x32xf32> to vector<2x32xf32>
    %255 = arith.mulf %227, %254 : vector<2x32xf32>
    %256 = vector.broadcast %253 : vector<1x32xf32> to vector<2x32xf32>
    %257 = arith.addf %255, %256 : vector<2x32xf32>
    %cst_114 = arith.constant 0.000000e+00 : f32
    %258 = vector.broadcast %cst_114 : f32 to vector<2x32xf32>
    %259 = arith.maximumf %257, %258 : vector<2x32xf32>
    %c0_115 = arith.constant 0 : index
    %c0_116 = arith.constant 0 : index
    %260 = vector.load %arg11[%c0_115, %c0_116] : memref<1x4xf32, #tpu.memory_space<vmem>>, vector<1x4xf32>
    %c0_117 = arith.constant 0 : index
    %c0_118 = arith.constant 0 : index
    %261 = vector.load %arg4[%c0_117, %c0_118] : memref<32x4xf32, #tpu.memory_space<vmem>>, vector<32x4xf32>
    %cst_119 = arith.constant dense<0.000000e+00> : vector<2x4xf32>
    %262 = tpu.matmul %259, %261, %cst_119 {dimension_numbers = #tpu.dot_dimension_numbers<[1], [0], [0], [1], [0, 0, 1, 1], [], []>} : vector<2x32xf32>, vector<32x4xf32>, vector<2x4xf32> -> vector<2x4xf32>
    %263 = vector.broadcast %260 : vector<1x4xf32> to vector<2x4xf32>
    %264 = arith.addf %263, %262 : vector<2x4xf32>
    %c0_120 = arith.constant 0 : index
    %c0_121 = arith.constant 0 : index
    %265 = vector.load %arg13[%c0_120, %c0_121] : memref<2x4xf32, #tpu.memory_space<vmem>>, vector<2x4xf32>
    tpu.vector_store %arg13[%c0_120, %c0_121], %264 {strides = array<i32>} : memref<2x4xf32, #tpu.memory_space<vmem>>, vector<2x4xf32>,
    return
  }
}

</mosaic_0001>

<llo_original>
// kernel: dqn_forward.1
$region0: #{dqn_forward.1}
  #allocation0 [shape = 'u32[]', space=smem, size = 0x4, offset = 0x4, fixed_abs, tag = 'smem constant byte address 0x4 - core index']
  #allocation1 [shape = 'u32[72,128]{1,0:T(1,128)}', space=vmem, size = 0x9000, scoped, tag = 'internal scratch']
  %s0 = inlined_call_operand.vmem [shape: f32[1792,75], index: 0, kind: input, shape index: {}]
  %s1 = inlined_call_operand.vmem [shape: f32[75,16], index: 1, kind: input, shape index: {}]
  %s2 = inlined_call_operand.vmem [shape: f32[25,16,32], index: 2, kind: input, shape index: {}]
  %s3 = inlined_call_operand.vmem [shape: f32[800,32], index: 3, kind: input, shape index: {}]
  %s4 = inlined_call_operand.vmem [shape: f32[32,4], index: 4, kind: input, shape index: {}]
  %s5 = inlined_call_operand.vmem [shape: f32[1,16], index: 5, kind: input, shape index: {}]
  %s6 = inlined_call_operand.vmem [shape: f32[1,16], index: 6, kind: input, shape index: {}]
  %s7 = inlined_call_operand.vmem [shape: f32[1,32], index: 7, kind: input, shape index: {}]
  %s8 = inlined_call_operand.vmem [shape: f32[1,32], index: 8, kind: input, shape index: {}]
  %s9 = inlined_call_operand.vmem [shape: f32[1,32], index: 9, kind: input, shape index: {}]
  %s10 = inlined_call_operand.vmem [shape: f32[1,32], index: 10, kind: input, shape index: {}]
  %s11 = inlined_call_operand.vmem [shape: f32[1,4], index: 11, kind: input, shape index: {}]
  %s12 = inlined_call_operand.vmem [shape: f32[56,1], index: 12, kind: input, shape index: {}]
  %s13 = inlined_call_operand.hbm [shape: f32[2,4], index: 13, kind: output, shape index: {}]
  %s14 = sld [smem:[#allocation0]]
  $region62: #{dqn_forward.1} parent=0
    _
  %s16 = ssub.s32 1, %s14
  %s17 = scalar_select 0, %s16, %s14
  $region1: #{dqn_forward.1} parent=0
    #allocation2 [shape = 'u8[1024]{0}', space=vmem, size = 0x400, scoped, tag = 'output window, operand 0, single buffered']
    #allocation3 [shape = 's32[1]{0}', space=sflag, size = 0x4, scoped, tag = 'scoped memory for dqn_forward.1']
    %18 = vsyncpa [#allocation3], 0
    // Predicated region
    $region2: #{dqn_forward.1} parent=1 // pred_check
      _
    $region3: #{dqn_forward.1} parent=1 // pred_check_branch
      %20 = sbr.rel (0) target = $region5
    $region4: #{dqn_forward.1} parent=1 // pred_region
      _
    $region5: #{dqn_forward.1} parent=1 // pred_fallthru
      _
    // Predicated region
    $region6: #{dqn_forward.1} parent=1 // pred_check
      _
    $region7: #{dqn_forward.1} parent=1 // pred_check_branch
      %22 = sbr.rel (0) target = $region9
    $region8: #{dqn_forward.1} parent=1 // pred_region
      _
    $region9: #{dqn_forward.1} parent=1 // pred_fallthru
      _
    // Predicated region
    $region10: #{dqn_forward.1} parent=1 // pred_check
      _
    $region11: #{dqn_forward.1} parent=1 // pred_check_branch
      %24 = sbr.rel (0) target = $region13
    $region12: #{dqn_forward.1} parent=1 // pred_region
      _
    $region13: #{dqn_forward.1} parent=1 // pred_fallthru
      _
    // Predicated region
    $region14: #{dqn_forward.1} parent=1 // pred_check
      _
    $region15: #{dqn_forward.1} parent=1 // pred_check_branch
      %26 = sbr.rel (0) target = $region17
    $region16: #{dqn_forward.1} parent=1 // pred_region
      _
    $region17: #{dqn_forward.1} parent=1 // pred_fallthru
      _
    // Predicated region
    $region18: #{dqn_forward.1} parent=1 // pred_check
      _
    $region19: #{dqn_forward.1} parent=1 // pred_check_branch
      %28 = sbr.rel (0) target = $region21
    $region20: #{dqn_forward.1} parent=1 // pred_region
      _
    $region21: #{dqn_forward.1} parent=1 // pred_fallthru
      _
    // Predicated region
    $region22: #{dqn_forward.1} parent=1 // pred_check
      _
    $region23: #{dqn_forward.1} parent=1 // pred_check_branch
      %30 = sbr.rel (0) target = $region25
    $region24: #{dqn_forward.1} parent=1 // pred_region
      _
    $region25: #{dqn_forward.1} parent=1 // pred_fallthru
      _
    // Predicated region
    $region26: #{dqn_forward.1} parent=1 // pred_check
      _
    $region27: #{dqn_forward.1} parent=1 // pred_check_branch
      %32 = sbr.rel (0) target = $region29
    $region28: #{dqn_forward.1} parent=1 // pred_region
      _
    $region29: #{dqn_forward.1} parent=1 // pred_fallthru
      _
    // Predicated region
    $region30: #{dqn_forward.1} parent=1 // pred_check
      _
    $region31: #{dqn_forward.1} parent=1 // pred_check_branch
      %34 = sbr.rel (0) target = $region33
    $region32: #{dqn_forward.1} parent=1 // pred_region
      _
    $region33: #{dqn_forward.1} parent=1 // pred_fallthru
      _
    // Predicated region
    $region34: #{dqn_forward.1} parent=1 // pred_check
      _
    $region35: #{dqn_forward.1} parent=1 // pred_check_branch
      %36 = sbr.rel (0) target = $region37
    $region36: #{dqn_forward.1} parent=1 // pred_region
      _
    $region37: #{dqn_forward.1} parent=1 // pred_fallthru
      _
    // Predicated region
    $region38: #{dqn_forward.1} parent=1 // pred_check
      _
    $region39: #{dqn_forward.1} parent=1 // pred_check_branch
      %38 = sbr.rel (0) target = $region41
    $region40: #{dqn_forward.1} parent=1 // pred_region
      _
    $region41: #{dqn_forward.1} parent=1 // pred_fallthru
      _
    // Predicated region
    $region42: #{dqn_forward.1} parent=1 // pred_check
      _
    $region43: #{dqn_forward.1} parent=1 // pred_check_branch
      %40 = sbr.rel (0) target = $region45
    $region44: #{dqn_forward.1} parent=1 // pred_region
      _
    $region45: #{dqn_forward.1} parent=1 // pred_fallthru
      _
    // Predicated region
    $region46: #{dqn_forward.1} parent=1 // pred_check
      _
    $region47: #{dqn_forward.1} parent=1 // pred_check_branch
      %42 = sbr.rel (0) target = $region49
    $region48: #{dqn_forward.1} parent=1 // pred_region
      _
    $region49: #{dqn_forward.1} parent=1 // pred_fallthru
      _
    // Predicated region
    $region50: #{dqn_forward.1} parent=1 // pred_check
      _
    $region51: #{dqn_forward.1} parent=1 // pred_check_branch
      %44 = sbr.rel (0) target = $region53
    $region52: #{dqn_forward.1} parent=1 // pred_region
      _
    $region53: #{dqn_forward.1} parent=1 // pred_fallthru
      _
    %v45 = vld [vmem:[%s0] sm:$0xff]
    %v46 = vld [vmem:[%s0 + $0x8] sm:$0xff]
    %v47 = vld [vmem:[%s0 + $0x10] sm:$0xff]
    %v48 = vld [vmem:[%s0 + $0x18] sm:$0xff]
    %v49 = vld [vmem:[%s0 + $0x20] sm:$0xff]
    %v50 = vld [vmem:[%s0 + $0x28] sm:$0xff]
    %v51 = vld [vmem:[%s0 + $0x30] sm:$0xff]
    %v52 = vld [vmem:[%s0 + $0x38] sm:$0xff]
    %v53 = vld [vmem:[%s0 + $0x40] sm:$0xff]
    %v54 = vld [vmem:[%s0 + $0x48] sm:$0xff]
    %v55 = vld [vmem:[%s0 + $0x50] sm:$0xff]
    %v56 = vld [vmem:[%s0 + $0x58] sm:$0xff]
    %v57 = vld [vmem:[%s0 + $0x60] sm:$0xff]
    %v58 = vld [vmem:[%s0 + $0x68] sm:$0xff]
    %v59 = vld [vmem:[%s0 + $0x70] sm:$0xff]
    %v60 = vld [vmem:[%s0 + $0x78] sm:$0xff]
    %v61 = vld [vmem:[%s0 + $0x80] sm:$0xff]
    %v62 = vld [vmem:[%s0 + $0x88] sm:$0xff]
    %v63 = vld [vmem:[%s0 + $0x90] sm:$0xff]
    %v64 = vld [vmem:[%s0 + $0x98] sm:$0xff]
    %v65 = vld [vmem:[%s0 + $0xa0] sm:$0xff]
    %v66 = vld [vmem:[%s0 + $0xa8] sm:$0xff]
    %v67 = vld [vmem:[%s0 + $0xb0] sm:$0xff]
    %v68 = vld [vmem:[%s0 + $0xb8] sm:$0xff]
    %v69 = vld [vmem:[%s0 + $0xc0] sm:$0xff]
    %v70 = vld [vmem:[%s0 + $0xc8] sm:$0xff]
    %v71 = vld [vmem:[%s0 + $0xd0] sm:$0xff]
    %v72 = vld [vmem:[%s0 + $0xd8] sm:$0xff]
    %v73 = vld [vmem:[%s0 + $0xe0] sm:$0xff]
    %v74 = vld [vmem:[%s0 + $0xe8] sm:$0xff]
    %v75 = vld [vmem:[%s0 + $0xf0] sm:$0xff]
    %v76 = vld [vmem:[%s0 + $0xf8] sm:$0xff]
    %v77 = vld [vmem:[%s0 + $0x100] sm:$0xff]
    %v78 = vld [vmem:[%s0 + $0x108] sm:$0xff]
    %v79 = vld [vmem:[%s0 + $0x110] sm:$0xff]
    %v80 = vld [vmem:[%s0 + $0x118] sm:$0xff]
    %v81 = vld [vmem:[%s0 + $0x120] sm:$0xff]
    %v82 = vld [vmem:[%s0 + $0x128] sm:$0xff]
    %v83 = vld [vmem:[%s0 + $0x130] sm:$0xff]
    %v84 = vld [vmem:[%s0 + $0x138] sm:$0xff]
    %v85 = vld [vmem:[%s0 + $0x140] sm:$0xff]
    %v86 = vld [vmem:[%s0 + $0x148] sm:$0xff]
    %v87 = vld [vmem:[%s0 + $0x150] sm:$0xff]
    %v88 = vld [vmem:[%s0 + $0x158] sm:$0xff]
    %v89 = vld [vmem:[%s0 + $0x160] sm:$0xff]
    %v90 = vld [vmem:[%s0 + $0x168] sm:$0xff]
    %v91 = vld [vmem:[%s0 + $0x170] sm:$0xff]
    %v92 = vld [vmem:[%s0 + $0x178] sm:$0xff]
    %v93 = vld [vmem:[%s0 + $0x180] sm:$0xff]
    %v94 = vld [vmem:[%s0 + $0x188] sm:$0xff]
    %v95 = vld [vmem:[%s0 + $0x190] sm:$0xff]
    %v96 = vld [vmem:[%s0 + $0x198] sm:$0xff]
    %v97 = vld [vmem:[%s0 + $0x1a0] sm:$0xff]
    %v98 = vld [vmem:[%s0 + $0x1a8] sm:$0xff]
    %v99 = vld [vmem:[%s0 + $0x1b0] sm:$0xff]
    %v100 = vld [vmem:[%s0 + $0x1b8] sm:$0xff]
    %v101 = vld [vmem:[%s0 + $0x1c0] sm:$0xff]
    %v102 = vld [vmem:[%s0 + $0x1c8] sm:$0xff]
    %v103 = vld [vmem:[%s0 + $0x1d0] sm:$0xff]
    %v104 = vld [vmem:[%s0 + $0x1d8] sm:$0xff]
    %v105 = vld [vmem:[%s0 + $0x1e0] sm:$0xff]
    %v106 = vld [vmem:[%s0 + $0x1e8] sm:$0xff]
    %v107 = vld [vmem:[%s0 + $0x1f0] sm:$0xff]
    %v108 = vld [vmem:[%s0 + $0x1f8] sm:$0xff]
    %v109 = vld [vmem:[%s0 + $0x200] sm:$0xff]
    %v110 = vld [vmem:[%s0 + $0x208] sm:$0xff]
    %v111 = vld [vmem:[%s0 + $0x210] sm:$0xff]
    %v112 = vld [vmem:[%s0 + $0x218] sm:$0xff]
    %v113 = vld [vmem:[%s0 + $0x220] sm:$0xff]
    %v114 = vld [vmem:[%s0 + $0x228] sm:$0xff]
    %v115 = vld [vmem:[%s0 + $0x230] sm:$0xff]
    %v116 = vld [vmem:[%s0 + $0x238] sm:$0xff]
    %v117 = vld [vmem:[%s0 + $0x240] sm:$0xff]
    %v118 = vld [vmem:[%s0 + $0x248] sm:$0xff]
    %v119 = vld [vmem:[%s0 + $0x250] sm:$0xff]
    %v120 = vld [vmem:[%s0 + $0x258] sm:$0xff]
    %v121 = vld [vmem:[%s0 + $0x260] sm:$0xff]
    %v122 = vld [vmem:[%s0 + $0x268] sm:$0xff]
    %v123 = vld [vmem:[%s0 + $0x270] sm:$0xff]
    %v124 = vld [vmem:[%s0 + $0x278] sm:$0xff]
    %v125 = vld [vmem:[%s0 + $0x280] sm:$0xff]
    %v126 = vld [vmem:[%s0 + $0x288] sm:$0xff]
    %v127 = vld [vmem:[%s0 + $0x290] sm:$0xff]
    %v128 = vld [vmem:[%s0 + $0x298] sm:$0xff]
    %v129 = vld [vmem:[%s0 + $0x2a0] sm:$0xff]
    %v130 = vld [vmem:[%s0 + $0x2a8] sm:$0xff]
    %v131 = vld [vmem:[%s0 + $0x2b0] sm:$0xff]
    %v132 = vld [vmem:[%s0 + $0x2b8] sm:$0xff]
    %v133 = vld [vmem:[%s0 + $0x2c0] sm:$0xff]
    %v134 = vld [vmem:[%s0 + $0x2c8] sm:$0xff]
    %v135 = vld [vmem:[%s0 + $0x2d0] sm:$0xff]
    %v136 = vld [vmem:[%s0 + $0x2d8] sm:$0xff]
    %v137 = vld [vmem:[%s0 + $0x2e0] sm:$0xff]
    %v138 = vld [vmem:[%s0 + $0x2e8] sm:$0xff]
    %v139 = vld [vmem:[%s0 + $0x2f0] sm:$0xff]
    %v140 = vld [vmem:[%s0 + $0x2f8] sm:$0xff]
    %v141 = vld [vmem:[%s0 + $0x300] sm:$0xff]
    %v142 = vld [vmem:[%s0 + $0x308] sm:$0xff]
    %v143 = vld [vmem:[%s0 + $0x310] sm:$0xff]
    %v144 = vld [vmem:[%s0 + $0x318] sm:$0xff]
    %v145 = vld [vmem:[%s0 + $0x320] sm:$0xff]
    %v146 = vld [vmem:[%s0 + $0x328] sm:$0xff]
    %v147 = vld [vmem:[%s0 + $0x330] sm:$0xff]
    %v148 = vld [vmem:[%s0 + $0x338] sm:$0xff]
    %v149 = vld [vmem:[%s0 + $0x340] sm:$0xff]
    %v150 = vld [vmem:[%s0 + $0x348] sm:$0xff]
    %v151 = vld [vmem:[%s0 + $0x350] sm:$0xff]
    %v152 = vld [vmem:[%s0 + $0x358] sm:$0xff]
    %v153 = vld [vmem:[%s0 + $0x360] sm:$0xff]
    %v154 = vld [vmem:[%s0 + $0x368] sm:$0xff]
    %v155 = vld [vmem:[%s0 + $0x370] sm:$0xff]
    %v156 = vld [vmem:[%s0 + $0x378] sm:$0xff]
    %v157 = vld [vmem:[%s0 + $0x380] sm:$0xff]
    %v158 = vld [vmem:[%s0 + $0x388] sm:$0xff]
    %v159 = vld [vmem:[%s0 + $0x390] sm:$0xff]
    %v160 = vld [vmem:[%s0 + $0x398] sm:$0xff]
    %v161 = vld [vmem:[%s0 + $0x3a0] sm:$0xff]
    %v162 = vld [vmem:[%s0 + $0x3a8] sm:$0xff]
    %v163 = vld [vmem:[%s0 + $0x3b0] sm:$0xff]
    %v164 = vld [vmem:[%s0 + $0x3b8] sm:$0xff]
    %v165 = vld [vmem:[%s0 + $0x3c0] sm:$0xff]
    %v166 = vld [vmem:[%s0 + $0x3c8] sm:$0xff]
    %v167 = vld [vmem:[%s0 + $0x3d0] sm:$0xff]
    %v168 = vld [vmem:[%s0 + $0x3d8] sm:$0xff]
    %v169 = vld [vmem:[%s0 + $0x3e0] sm:$0xff]
    %v170 = vld [vmem:[%s0 + $0x3e8] sm:$0xff]
    %v171 = vld [vmem:[%s0 + $0x3f0] sm:$0xff]
    %v172 = vld [vmem:[%s0 + $0x3f8] sm:$0xff]
    %v173 = vld [vmem:[%s0 + $0x400] sm:$0xff]
    %v174 = vld [vmem:[%s0 + $0x408] sm:$0xff]
    %v175 = vld [vmem:[%s0 + $0x410] sm:$0xff]
    %v176 = vld [vmem:[%s0 + $0x418] sm:$0xff]
    %v177 = vld [vmem:[%s0 + $0x420] sm:$0xff]
    %v178 = vld [vmem:[%s0 + $0x428] sm:$0xff]
    %v179 = vld [vmem:[%s0 + $0x430] sm:$0xff]
    %v180 = vld [vmem:[%s0 + $0x438] sm:$0xff]
    %v181 = vld [vmem:[%s0 + $0x440] sm:$0xff]
    %v182 = vld [vmem:[%s0 + $0x448] sm:$0xff]
    %v183 = vld [vmem:[%s0 + $0x450] sm:$0xff]
    %v184 = vld [vmem:[%s0 + $0x458] sm:$0xff]
    %v185 = vld [vmem:[%s0 + $0x460] sm:$0xff]
    %v186 = vld [vmem:[%s0 + $0x468] sm:$0xff]
    %v187 = vld [vmem:[%s0 + $0x470] sm:$0xff]
    %v188 = vld [vmem:[%s0 + $0x478] sm:$0xff]
    %v189 = vld [vmem:[%s0 + $0x480] sm:$0xff]
    %v190 = vld [vmem:[%s0 + $0x488] sm:$0xff]
    %v191 = vld [vmem:[%s0 + $0x490] sm:$0xff]
    %v192 = vld [vmem:[%s0 + $0x498] sm:$0xff]
    %v193 = vld [vmem:[%s0 + $0x4a0] sm:$0xff]
    %v194 = vld [vmem:[%s0 + $0x4a8] sm:$0xff]
    %v195 = vld [vmem:[%s0 + $0x4b0] sm:$0xff]
    %v196 = vld [vmem:[%s0 + $0x4b8] sm:$0xff]
    %v197 = vld [vmem:[%s0 + $0x4c0] sm:$0xff]
    %v198 = vld [vmem:[%s0 + $0x4c8] sm:$0xff]
    %v199 = vld [vmem:[%s0 + $0x4d0] sm:$0xff]
    %v200 = vld [vmem:[%s0 + $0x4d8] sm:$0xff]
    %v201 = vld [vmem:[%s0 + $0x4e0] sm:$0xff]
    %v202 = vld [vmem:[%s0 + $0x4e8] sm:$0xff]
    %v203 = vld [vmem:[%s0 + $0x4f0] sm:$0xff]
    %v204 = vld [vmem:[%s0 + $0x4f8] sm:$0xff]
    %v205 = vld [vmem:[%s0 + $0x500] sm:$0xff]
    %v206 = vld [vmem:[%s0 + $0x508] sm:$0xff]
    %v207 = vld [vmem:[%s0 + $0x510] sm:$0xff]
    %v208 = vld [vmem:[%s0 + $0x518] sm:$0xff]
    %v209 = vld [vmem:[%s0 + $0x520] sm:$0xff]
    %v210 = vld [vmem:[%s0 + $0x528] sm:$0xff]
    %v211 = vld [vmem:[%s0 + $0x530] sm:$0xff]
    %v212 = vld [vmem:[%s0 + $0x538] sm:$0xff]
    %v213 = vld [vmem:[%s0 + $0x540] sm:$0xff]
    %v214 = vld [vmem:[%s0 + $0x548] sm:$0xff]
    %v215 = vld [vmem:[%s0 + $0x550] sm:$0xff]
    %v216 = vld [vmem:[%s0 + $0x558] sm:$0xff]
    %v217 = vld [vmem:[%s0 + $0x560] sm:$0xff]
    %v218 = vld [vmem:[%s0 + $0x568] sm:$0xff]
    %v219 = vld [vmem:[%s0 + $0x570] sm:$0xff]
    %v220 = vld [vmem:[%s0 + $0x578] sm:$0xff]
    %v221 = vld [vmem:[%s0 + $0x580] sm:$0xff]
    %v222 = vld [vmem:[%s0 + $0x588] sm:$0xff]
    %v223 = vld [vmem:[%s0 + $0x590] sm:$0xff]
    %v224 = vld [vmem:[%s0 + $0x598] sm:$0xff]
    %v225 = vld [vmem:[%s0 + $0x5a0] sm:$0xff]
    %v226 = vld [vmem:[%s0 + $0x5a8] sm:$0xff]
    %v227 = vld [vmem:[%s0 + $0x5b0] sm:$0xff]
    %v228 = vld [vmem:[%s0 + $0x5b8] sm:$0xff]
    %v229 = vld [vmem:[%s0 + $0x5c0] sm:$0xff]
    %v230 = vld [vmem:[%s0 + $0x5c8] sm:$0xff]
    %v231 = vld [vmem:[%s0 + $0x5d0] sm:$0xff]
    %v232 = vld [vmem:[%s0 + $0x5d8] sm:$0xff]
    %v233 = vld [vmem:[%s0 + $0x5e0] sm:$0xff]
    %v234 = vld [vmem:[%s0 + $0x5e8] sm:$0xff]
    %v235 = vld [vmem:[%s0 + $0x5f0] sm:$0xff]
    %v236 = vld [vmem:[%s0 + $0x5f8] sm:$0xff]
    %v237 = vld [vmem:[%s0 + $0x600] sm:$0xff]
    %v238 = vld [vmem:[%s0 + $0x608] sm:$0xff]
    %v239 = vld [vmem:[%s0 + $0x610] sm:$0xff]
    %v240 = vld [vmem:[%s0 + $0x618] sm:$0xff]
    %v241 = vld [vmem:[%s0 + $0x620] sm:$0xff]
    %v242 = vld [vmem:[%s0 + $0x628] sm:$0xff]
    %v243 = vld [vmem:[%s0 + $0x630] sm:$0xff]
    %v244 = vld [vmem:[%s0 + $0x638] sm:$0xff]
    %v245 = vld [vmem:[%s0 + $0x640] sm:$0xff]
    %v246 = vld [vmem:[%s0 + $0x648] sm:$0xff]
    %v247 = vld [vmem:[%s0 + $0x650] sm:$0xff]
    %v248 = vld [vmem:[%s0 + $0x658] sm:$0xff]
    %v249 = vld [vmem:[%s0 + $0x660] sm:$0xff]
    %v250 = vld [vmem:[%s0 + $0x668] sm:$0xff]
    %v251 = vld [vmem:[%s0 + $0x670] sm:$0xff]
    %v252 = vld [vmem:[%s0 + $0x678] sm:$0xff]
    %v253 = vld [vmem:[%s0 + $0x680] sm:$0xff]
    %v254 = vld [vmem:[%s0 + $0x688] sm:$0xff]
    %v255 = vld [vmem:[%s0 + $0x690] sm:$0xff]
    %v256 = vld [vmem:[%s0 + $0x698] sm:$0xff]
    %v257 = vld [vmem:[%s0 + $0x6a0] sm:$0xff]
    %v258 = vld [vmem:[%s0 + $0x6a8] sm:$0xff]
    %v259 = vld [vmem:[%s0 + $0x6b0] sm:$0xff]
    %v260 = vld [vmem:[%s0 + $0x6b8] sm:$0xff]
    %v261 = vld [vmem:[%s0 + $0x6c0] sm:$0xff]
    %v262 = vld [vmem:[%s0 + $0x6c8] sm:$0xff]
    %v263 = vld [vmem:[%s0 + $0x6d0] sm:$0xff]
    %v264 = vld [vmem:[%s0 + $0x6d8] sm:$0xff]
    %v265 = vld [vmem:[%s0 + $0x6e0] sm:$0xff]
    %v266 = vld [vmem:[%s0 + $0x6e8] sm:$0xff]
    %v267 = vld [vmem:[%s0 + $0x6f0] sm:$0xff]
    %v268 = vld [vmem:[%s0 + $0x6f8] sm:$0xff]
    %v269 = vld [vmem:[%s1] sm:$0xff]
    %v270 = vld [vmem:[%s1 + $0x8] sm:$0xff]
    %v271 = vld [vmem:[%s1 + $0x10] sm:$0xff]
    %v272 = vld [vmem:[%s1 + $0x18] sm:$0xff]
    %v273 = vld [vmem:[%s1 + $0x20] sm:$0xff]
    %v274 = vld [vmem:[%s1 + $0x28] sm:$0xff]
    %v275 = vld [vmem:[%s1 + $0x30] sm:$0xff]
    %v276 = vld [vmem:[%s1 + $0x38] sm:$0xff]
    %v277 = vld [vmem:[%s1 + $0x40] sm:$0xff]
    %v278 = vld [vmem:[%s1 + $0x48] sm:$0x7]
    %vm279 = vcmask 613376
    %v281 = vsel %vm279, %v45, 0
    %v284 = vsel %vm279, %v46, 0
    %v287 = vsel %vm279, %v47, 0
    %v290 = vsel %vm279, %v48, 0
    %v293 = vsel %vm279, %v49, 0
    %v296 = vsel %vm279, %v50, 0
    %v299 = vsel %vm279, %v51, 0
    %v302 = vsel %vm279, %v52, 0
    %v305 = vsel %vm279, %v53, 0
    %v308 = vsel %vm279, %v54, 0
    %v311 = vsel %vm279, %v55, 0
    %v314 = vsel %vm279, %v56, 0
    %v317 = vsel %vm279, %v57, 0
    %v320 = vsel %vm279, %v58, 0
    %v323 = vsel %vm279, %v59, 0
    %v326 = vsel %vm279, %v60, 0
    %v329 = vsel %vm279, %v61, 0
    %v332 = vsel %vm279, %v62, 0
    %v335 = vsel %vm279, %v63, 0
    %v338 = vsel %vm279, %v64, 0
    %v341 = vsel %vm279, %v65, 0
    %v344 = vsel %vm279, %v66, 0
    %v347 = vsel %vm279, %v67, 0
    %v350 = vsel %vm279, %v68, 0
    %v353 = vsel %vm279, %v69, 0
    %v356 = vsel %vm279, %v70, 0
    %v359 = vsel %vm279, %v71, 0
    %v362 = vsel %vm279, %v72, 0
    %v365 = vsel %vm279, %v73, 0
    %v368 = vsel %vm279, %v74, 0
    %v371 = vsel %vm279, %v75, 0
    %v374 = vsel %vm279, %v76, 0
    %v377 = vsel %vm279, %v77, 0
    %v380 = vsel %vm279, %v78, 0
    %v383 = vsel %vm279, %v79, 0
    %v386 = vsel %vm279, %v80, 0
    %v389 = vsel %vm279, %v81, 0
    %v392 = vsel %vm279, %v82, 0
    %v395 = vsel %vm279, %v83, 0
    %v398 = vsel %vm279, %v84, 0
    %v401 = vsel %vm279, %v85, 0
    %v404 = vsel %vm279, %v86, 0
    %v407 = vsel %vm279, %v87, 0
    %v410 = vsel %vm279, %v88, 0
    %v413 = vsel %vm279, %v89, 0
    %v416 = vsel %vm279, %v90, 0
    %v419 = vsel %vm279, %v91, 0
    %v422 = vsel %vm279, %v92, 0
    %v425 = vsel %vm279, %v93, 0
    %v428 = vsel %vm279, %v94, 0
    %v431 = vsel %vm279, %v95, 0
    %v434 = vsel %vm279, %v96, 0
    %v437 = vsel %vm279, %v97, 0
    %v440 = vsel %vm279, %v98, 0
    %v443 = vsel %vm279, %v99, 0
    %v446 = vsel %vm279, %v100, 0
    %v449 = vsel %vm279, %v101, 0
    %v452 = vsel %vm279, %v102, 0
    %v455 = vsel %vm279, %v103, 0
    %v458 = vsel %vm279, %v104, 0
    %v461 = vsel %vm279, %v105, 0
    %v464 = vsel %vm279, %v106, 0
    %v467 = vsel %vm279, %v107, 0
    %v470 = vsel %vm279, %v108, 0
    %v473 = vsel %vm279, %v109, 0
    %v476 = vsel %vm279, %v110, 0
    %v479 = vsel %vm279, %v111, 0
    %v482 = vsel %vm279, %v112, 0
    %v485 = vsel %vm279, %v113, 0
    %v488 = vsel %vm279, %v114, 0
    %v491 = vsel %vm279, %v115, 0
    %v494 = vsel %vm279, %v116, 0
    %v497 = vsel %vm279, %v117, 0
    %v500 = vsel %vm279, %v118, 0
    %v503 = vsel %vm279, %v119, 0
    %v506 = vsel %vm279, %v120, 0
    %v509 = vsel %vm279, %v121, 0
    %v512 = vsel %vm279, %v122, 0
    %v515 = vsel %vm279, %v123, 0
    %v518 = vsel %vm279, %v124, 0
    %v521 = vsel %vm279, %v125, 0
    %v524 = vsel %vm279, %v126, 0
    %v527 = vsel %vm279, %v127, 0
    %v530 = vsel %vm279, %v128, 0
    %v533 = vsel %vm279, %v129, 0
    %v536 = vsel %vm279, %v130, 0
    %v539 = vsel %vm279, %v131, 0
    %v542 = vsel %vm279, %v132, 0
    %v545 = vsel %vm279, %v133, 0
    %v548 = vsel %vm279, %v134, 0
    %v551 = vsel %vm279, %v135, 0
    %v554 = vsel %vm279, %v136, 0
    %v557 = vsel %vm279, %v137, 0
    %v560 = vsel %vm279, %v138, 0
    %v563 = vsel %vm279, %v139, 0
    %v566 = vsel %vm279, %v140, 0
    %v569 = vsel %vm279, %v141, 0
    %v572 = vsel %vm279, %v142, 0
    %v575 = vsel %vm279, %v143, 0
    %v578 = vsel %vm279, %v144, 0
    %v581 = vsel %vm279, %v145, 0
    %v584 = vsel %vm279, %v146, 0
    %v587 = vsel %vm279, %v147, 0
    %v590 = vsel %vm279, %v148, 0
    %v593 = vsel %vm279, %v149, 0
    %v596 = vsel %vm279, %v150, 0
    %v599 = vsel %vm279, %v151, 0
    %v602 = vsel %vm279, %v152, 0
    %v605 = vsel %vm279, %v153, 0
    %v608 = vsel %vm279, %v154, 0
    %v611 = vsel %vm279, %v155, 0
    %v614 = vsel %vm279, %v156, 0
    %v617 = vsel %vm279, %v157, 0
    %v620 = vsel %vm279, %v158, 0
    %v623 = vsel %vm279, %v159, 0
    %v626 = vsel %vm279, %v160, 0
    %v629 = vsel %vm279, %v161, 0
    %v632 = vsel %vm279, %v162, 0
    %v635 = vsel %vm279, %v163, 0
    %v638 = vsel %vm279, %v164, 0
    %v641 = vsel %vm279, %v165, 0
    %v644 = vsel %vm279, %v166, 0
    %v647 = vsel %vm279, %v167, 0
    %v650 = vsel %vm279, %v168, 0
    %v653 = vsel %vm279, %v169, 0
    %v656 = vsel %vm279, %v170, 0
    %v659 = vsel %vm279, %v171, 0
    %v662 = vsel %vm279, %v172, 0
    %v665 = vsel %vm279, %v173, 0
    %v668 = vsel %vm279, %v174, 0
    %v671 = vsel %vm279, %v175, 0
    %v674 = vsel %vm279, %v176, 0
    %v677 = vsel %vm279, %v177, 0
    %v680 = vsel %vm279, %v178, 0
    %v683 = vsel %vm279, %v179, 0
    %v686 = vsel %vm279, %v180, 0
    %v689 = vsel %vm279, %v181, 0
    %v692 = vsel %vm279, %v182, 0
    %v695 = vsel %vm279, %v183, 0
    %v698 = vsel %vm279, %v184, 0
    %v701 = vsel %vm279, %v185, 0
    %v704 = vsel %vm279, %v186, 0
    %v707 = vsel %vm279, %v187, 0
    %v710 = vsel %vm279, %v188, 0
    %v713 = vsel %vm279, %v189, 0
    %v716 = vsel %vm279, %v190, 0
    %v719 = vsel %vm279, %v191, 0
    %v722 = vsel %vm279, %v192, 0
    %v725 = vsel %vm279, %v193, 0
    %v728 = vsel %vm279, %v194, 0
    %v731 = vsel %vm279, %v195, 0
    %v734 = vsel %vm279, %v196, 0
    %v737 = vsel %vm279, %v197, 0
    %v740 = vsel %vm279, %v198, 0
    %v743 = vsel %vm279, %v199, 0
    %v746 = vsel %vm279, %v200, 0
    %v749 = vsel %vm279, %v201, 0
    %v752 = vsel %vm279, %v202, 0
    %v755 = vsel %vm279, %v203, 0
    %v758 = vsel %vm279, %v204, 0
    %v761 = vsel %vm279, %v205, 0
    %v764 = vsel %vm279, %v206, 0
    %v767 = vsel %vm279, %v207, 0
    %v770 = vsel %vm279, %v208, 0
    %v773 = vsel %vm279, %v209, 0
    %v776 = vsel %vm279, %v210, 0
    %v779 = vsel %vm279, %v211, 0
    %v782 = vsel %vm279, %v212, 0
    %v785 = vsel %vm279, %v213, 0
    %v788 = vsel %vm279, %v214, 0
    %v791 = vsel %vm279, %v215, 0
    %v794 = vsel %vm279, %v216, 0
    %v797 = vsel %vm279, %v217, 0
    %v800 = vsel %vm279, %v218, 0
    %v803 = vsel %vm279, %v219, 0
    %v806 = vsel %vm279, %v220, 0
    %v809 = vsel %vm279, %v221, 0
    %v812 = vsel %vm279, %v222, 0
    %v815 = vsel %vm279, %v223, 0
    %v818 = vsel %vm279, %v224, 0
    %v821 = vsel %vm279, %v225, 0
    %v824 = vsel %vm279, %v226, 0
    %v827 = vsel %vm279, %v227, 0
    %v830 = vsel %vm279, %v228, 0
    %v833 = vsel %vm279, %v229, 0
    %v836 = vsel %vm279, %v230, 0
    %v839 = vsel %vm279, %v231, 0
    %v842 = vsel %vm279, %v232, 0
    %v845 = vsel %vm279, %v233, 0
    %v848 = vsel %vm279, %v234, 0
    %v851 = vsel %vm279, %v235, 0
    %v854 = vsel %vm279, %v236, 0
    %v857 = vsel %vm279, %v237, 0
    %v860 = vsel %vm279, %v238, 0
    %v863 = vsel %vm279, %v239, 0
    %v866 = vsel %vm279, %v240, 0
    %v869 = vsel %vm279, %v241, 0
    %v872 = vsel %vm279, %v242, 0
    %v875 = vsel %vm279, %v243, 0
    %v878 = vsel %vm279, %v244, 0
    %v881 = vsel %vm279, %v245, 0
    %v884 = vsel %vm279, %v246, 0
    %v887 = vsel %vm279, %v247, 0
    %v890 = vsel %vm279, %v248, 0
    %v893 = vsel %vm279, %v249, 0
    %v896 = vsel %vm279, %v250, 0
    %v899 = vsel %vm279, %v251, 0
    %v902 = vsel %vm279, %v252, 0
    %v905 = vsel %vm279, %v253, 0
    %v908 = vsel %vm279, %v254, 0
    %v911 = vsel %vm279, %v255, 0
    %v914 = vsel %vm279, %v256, 0
    %v917 = vsel %vm279, %v257, 0
    %v920 = vsel %vm279, %v258, 0
    %v923 = vsel %vm279, %v259, 0
    %v926 = vsel %vm279, %v260, 0
    %v929 = vsel %vm279, %v261, 0
    %v932 = vsel %vm279, %v262, 0
    %v935 = vsel %vm279, %v263, 0
    %v938 = vsel %vm279, %v264, 0
    %v941 = vsel %vm279, %v265, 0
    %v944 = vsel %vm279, %v266, 0
    %v947 = vsel %vm279, %v267, 0
    %v950 = vsel %vm279, %v268, 0
    %vm952 = vcmask 1042432
    %v954 = vsel %vm952, %v278, 0
    %956 = vmatpush.msra.mxu0 0.0
    %957 = vmatpush.msra.mxu0 0.0
    %958 = vmatpush.msra.mxu0 0.0
    %959 = vmatpush.msra.mxu0 0.0
    %960 = vmatpush.msra.mxu0 0.0
    %961 = vmatpush.msra.mxu0 0.0
    %962 = vmatpush.msra.mxu0 %v954
    %963 = vmatpush.msra.mxu0 %v277
    %964 = vmatpush.msra.mxu0 %v276
    %965 = vmatpush.msra.mxu0 %v275
    %966 = vmatpush.msra.mxu0 %v274
    %967 = vmatpush.msra.mxu0 %v273
    %968 = vmatpush.msra.mxu0 %v272
    %969 = vmatpush.msra.mxu0 %v271
    %970 = vmatpush.msra.mxu0 %v270
    %971 = vmatpush.msra.mxu0 %v269
    %972 = vmatmul.f32.gmra.mxu0 %v281
    %v973 = vpop.f32.mrf.mxu0
    %v974 = vadd.f32 0.0, %v973
    %975 = vmatmul.f32.gmra.mxu0 %v284
    %v976 = vpop.f32.mrf.mxu0
    %v977 = vadd.f32 0.0, %v976
    %978 = vmatmul.f32.gmra.mxu0 %v287
    %v979 = vpop.f32.mrf.mxu0
    %v980 = vadd.f32 0.0, %v979
    %981 = vmatmul.f32.gmra.mxu0 %v290
    %v982 = vpop.f32.mrf.mxu0
    %v983 = vadd.f32 0.0, %v982
    %984 = vmatmul.f32.gmra.mxu0 %v293
    %v985 = vpop.f32.mrf.mxu0
    %v986 = vadd.f32 0.0, %v985
    %987 = vmatmul.f32.gmra.mxu0 %v296
    %v988 = vpop.f32.mrf.mxu0
    %v989 = vadd.f32 0.0, %v988
    %990 = vmatmul.f32.gmra.mxu0 %v299
    %v991 = vpop.f32.mrf.mxu0
    %v992 = vadd.f32 0.0, %v991
    %993 = vmatmul.f32.gmra.mxu0 %v302
    %v994 = vpop.f32.mrf.mxu0
    %v995 = vadd.f32 0.0, %v994
    %996 = vmatmul.f32.gmra.mxu0 %v305
    %v997 = vpop.f32.mrf.mxu0
    %v998 = vadd.f32 0.0, %v997
    %999 = vmatmul.f32.gmra.mxu0 %v308
    %v1000 = vpop.f32.mrf.mxu0
    %v1001 = vadd.f32 0.0, %v1000
    %1002 = vmatmul.f32.gmra.mxu0 %v311
    %v1003 = vpop.f32.mrf.mxu0
    %v1004 = vadd.f32 0.0, %v1003
    %1005 = vmatmul.f32.gmra.mxu0 %v314
    %v1006 = vpop.f32.mrf.mxu0
    %v1007 = vadd.f32 0.0, %v1006
    %1008 = vmatmul.f32.gmra.mxu0 %v317
    %v1009 = vpop.f32.mrf.mxu0
    %v1010 = vadd.f32 0.0, %v1009
    %1011 = vmatmul.f32.gmra.mxu0 %v320
    %v1012 = vpop.f32.mrf.mxu0
    %v1013 = vadd.f32 0.0, %v1012
    %1014 = vmatmul.f32.gmra.mxu0 %v323
    %v1015 = vpop.f32.mrf.mxu0
    %v1016 = vadd.f32 0.0, %v1015
    %1017 = vmatmul.f32.gmra.mxu0 %v326
    %v1018 = vpop.f32.mrf.mxu0
    %v1019 = vadd.f32 0.0, %v1018
    %1020 = vmatmul.f32.gmra.mxu0 %v329
    %v1021 = vpop.f32.mrf.mxu0
    %v1022 = vadd.f32 0.0, %v1021
    %1023 = vmatmul.f32.gmra.mxu0 %v332
    %v1024 = vpop.f32.mrf.mxu0
    %v1025 = vadd.f32 0.0, %v1024
    %1026 = vmatmul.f32.gmra.mxu0 %v335
    %v1027 = vpop.f32.mrf.mxu0
    %v1028 = vadd.f32 0.0, %v1027
    %1029 = vmatmul.f32.gmra.mxu0 %v338
    %v1030 = vpop.f32.mrf.mxu0
    %v1031 = vadd.f32 0.0, %v1030
    %1032 = vmatmul.f32.gmra.mxu0 %v341
    %v1033 = vpop.f32.mrf.mxu0
    %v1034 = vadd.f32 0.0, %v1033
    %1035 = vmatmul.f32.gmra.mxu0 %v344
    %v1036 = vpop.f32.mrf.mxu0
    %v1037 = vadd.f32 0.0, %v1036
    %1038 = vmatmul.f32.gmra.mxu0 %v347
    %v1039 = vpop.f32.mrf.mxu0
    %v1040 = vadd.f32 0.0, %v1039
    %1041 = vmatmul.f32.gmra.mxu0 %v350
    %v1042 = vpop.f32.mrf.mxu0
    %v1043 = vadd.f32 0.0, %v1042
    %1044 = vmatmul.f32.gmra.mxu0 %v353
    %v1045 = vpop.f32.mrf.mxu0
    %v1046 = vadd.f32 0.0, %v1045
    %1047 = vmatmul.f32.gmra.mxu0 %v356
    %v1048 = vpop.f32.mrf.mxu0
    %v1049 = vadd.f32 0.0, %v1048
    %1050 = vmatmul.f32.gmra.mxu0 %v359
    %v1051 = vpop.f32.mrf.mxu0
    %v1052 = vadd.f32 0.0, %v1051
    %1053 = vmatmul.f32.gmra.mxu0 %v362
    %v1054 = vpop.f32.mrf.mxu0
    %v1055 = vadd.f32 0.0, %v1054
    %1056 = vmatmul.f32.gmra.mxu0 %v365
    %v1057 = vpop.f32.mrf.mxu0
    %v1058 = vadd.f32 0.0, %v1057
    %1059 = vmatmul.f32.gmra.mxu0 %v368
    %v1060 = vpop.f32.mrf.mxu0
    %v1061 = vadd.f32 0.0, %v1060
    %1062 = vmatmul.f32.gmra.mxu0 %v371
    %v1063 = vpop.f32.mrf.mxu0
    %v1064 = vadd.f32 0.0, %v1063
    %1065 = vmatmul.f32.gmra.mxu0 %v374
    %v1066 = vpop.f32.mrf.mxu0
    %v1067 = vadd.f32 0.0, %v1066
    %1068 = vmatmul.f32.gmra.mxu0 %v377
    %v1069 = vpop.f32.mrf.mxu0
    %v1070 = vadd.f32 0.0, %v1069
    %1071 = vmatmul.f32.gmra.mxu0 %v380
    %v1072 = vpop.f32.mrf.mxu0
    %v1073 = vadd.f32 0.0, %v1072
    %1074 = vmatmul.f32.gmra.mxu0 %v383
    %v1075 = vpop.f32.mrf.mxu0
    %v1076 = vadd.f32 0.0, %v1075
    %1077 = vmatmul.f32.gmra.mxu0 %v386
    %v1078 = vpop.f32.mrf.mxu0
    %v1079 = vadd.f32 0.0, %v1078
    %1080 = vmatmul.f32.gmra.mxu0 %v389
    %v1081 = vpop.f32.mrf.mxu0
    %v1082 = vadd.f32 0.0, %v1081
    %1083 = vmatmul.f32.gmra.mxu0 %v392
    %v1084 = vpop.f32.mrf.mxu0
    %v1085 = vadd.f32 0.0, %v1084
    %1086 = vmatmul.f32.gmra.mxu0 %v395
    %v1087 = vpop.f32.mrf.mxu0
    %v1088 = vadd.f32 0.0, %v1087
    %1089 = vmatmul.f32.gmra.mxu0 %v398
    %v1090 = vpop.f32.mrf.mxu0
    %v1091 = vadd.f32 0.0, %v1090
    %1092 = vmatmul.f32.gmra.mxu0 %v401
    %v1093 = vpop.f32.mrf.mxu0
    %v1094 = vadd.f32 0.0, %v1093
    %1095 = vmatmul.f32.gmra.mxu0 %v404
    %v1096 = vpop.f32.mrf.mxu0
    %v1097 = vadd.f32 0.0, %v1096
    %1098 = vmatmul.f32.gmra.mxu0 %v407
    %v1099 = vpop.f32.mrf.mxu0
    %v1100 = vadd.f32 0.0, %v1099
    %1101 = vmatmul.f32.gmra.mxu0 %v410
    %v1102 = vpop.f32.mrf.mxu0
    %v1103 = vadd.f32 0.0, %v1102
    %1104 = vmatmul.f32.gmra.mxu0 %v413
    %v1105 = vpop.f32.mrf.mxu0
    %v1106 = vadd.f32 0.0, %v1105
    %1107 = vmatmul.f32.gmra.mxu0 %v416
    %v1108 = vpop.f32.mrf.mxu0
    %v1109 = vadd.f32 0.0, %v1108
    %1110 = vmatmul.f32.gmra.mxu0 %v419
    %v1111 = vpop.f32.mrf.mxu0
    %v1112 = vadd.f32 0.0, %v1111
    %1113 = vmatmul.f32.gmra.mxu0 %v422
    %v1114 = vpop.f32.mrf.mxu0
    %v1115 = vadd.f32 0.0, %v1114
    %1116 = vmatmul.f32.gmra.mxu0 %v425
    %v1117 = vpop.f32.mrf.mxu0
    %v1118 = vadd.f32 0.0, %v1117
    %1119 = vmatmul.f32.gmra.mxu0 %v428
    %v1120 = vpop.f32.mrf.mxu0
    %v1121 = vadd.f32 0.0, %v1120
    %1122 = vmatmul.f32.gmra.mxu0 %v431
    %v1123 = vpop.f32.mrf.mxu0
    %v1124 = vadd.f32 0.0, %v1123
    %1125 = vmatmul.f32.gmra.mxu0 %v434
    %v1126 = vpop.f32.mrf.mxu0
    %v1127 = vadd.f32 0.0, %v1126
    %1128 = vmatmul.f32.gmra.mxu0 %v437
    %v1129 = vpop.f32.mrf.mxu0
    %v1130 = vadd.f32 0.0, %v1129
    %1131 = vmatmul.f32.gmra.mxu0 %v440
    %v1132 = vpop.f32.mrf.mxu0
    %v1133 = vadd.f32 0.0, %v1132
    %1134 = vmatmul.f32.gmra.mxu0 %v443
    %v1135 = vpop.f32.mrf.mxu0
    %v1136 = vadd.f32 0.0, %v1135
    %1137 = vmatmul.f32.gmra.mxu0 %v446
    %v1138 = vpop.f32.mrf.mxu0
    %v1139 = vadd.f32 0.0, %v1138
    %1140 = vmatmul.f32.gmra.mxu0 %v449
    %v1141 = vpop.f32.mrf.mxu0
    %v1142 = vadd.f32 0.0, %v1141
    %1143 = vmatmul.f32.gmra.mxu0 %v452
    %v1144 = vpop.f32.mrf.mxu0
    %v1145 = vadd.f32 0.0, %v1144
    %1146 = vmatmul.f32.gmra.mxu0 %v455
    %v1147 = vpop.f32.mrf.mxu0
    %v1148 = vadd.f32 0.0, %v1147
    %1149 = vmatmul.f32.gmra.mxu0 %v458
    %v1150 = vpop.f32.mrf.mxu0
    %v1151 = vadd.f32 0.0, %v1150
    %1152 = vmatmul.f32.gmra.mxu0 %v461
    %v1153 = vpop.f32.mrf.mxu0
    %v1154 = vadd.f32 0.0, %v1153
    %1155 = vmatmul.f32.gmra.mxu0 %v464
    %v1156 = vpop.f32.mrf.mxu0
    %v1157 = vadd.f32 0.0, %v1156
    %1158 = vmatmul.f32.gmra.mxu0 %v467
    %v1159 = vpop.f32.mrf.mxu0
    %v1160 = vadd.f32 0.0, %v1159
    %1161 = vmatmul.f32.gmra.mxu0 %v470
    %v1162 = vpop.f32.mrf.mxu0
    %v1163 = vadd.f32 0.0, %v1162
    %1164 = vmatmul.f32.gmra.mxu0 %v473
    %v1165 = vpop.f32.mrf.mxu0
    %v1166 = vadd.f32 0.0, %v1165
    %1167 = vmatmul.f32.gmra.mxu0 %v476
    %v1168 = vpop.f32.mrf.mxu0
    %v1169 = vadd.f32 0.0, %v1168
    %1170 = vmatmul.f32.gmra.mxu0 %v479
    %v1171 = vpop.f32.mrf.mxu0
    %v1172 = vadd.f32 0.0, %v1171
    %1173 = vmatmul.f32.gmra.mxu0 %v482
    %v1174 = vpop.f32.mrf.mxu0
    %v1175 = vadd.f32 0.0, %v1174
    %1176 = vmatmul.f32.gmra.mxu0 %v485
    %v1177 = vpop.f32.mrf.mxu0
    %v1178 = vadd.f32 0.0, %v1177
    %1179 = vmatmul.f32.gmra.mxu0 %v488
    %v1180 = vpop.f32.mrf.mxu0
    %v1181 = vadd.f32 0.0, %v1180
    %1182 = vmatmul.f32.gmra.mxu0 %v491
    %v1183 = vpop.f32.mrf.mxu0
    %v1184 = vadd.f32 0.0, %v1183
    %1185 = vmatmul.f32.gmra.mxu0 %v494
    %v1186 = vpop.f32.mrf.mxu0
    %v1187 = vadd.f32 0.0, %v1186
    %1188 = vmatmul.f32.gmra.mxu0 %v497
    %v1189 = vpop.f32.mrf.mxu0
    %v1190 = vadd.f32 0.0, %v1189
    %1191 = vmatmul.f32.gmra.mxu0 %v500
    %v1192 = vpop.f32.mrf.mxu0
    %v1193 = vadd.f32 0.0, %v1192
    %1194 = vmatmul.f32.gmra.mxu0 %v503
    %v1195 = vpop.f32.mrf.mxu0
    %v1196 = vadd.f32 0.0, %v1195
    %1197 = vmatmul.f32.gmra.mxu0 %v506
    %v1198 = vpop.f32.mrf.mxu0
    %v1199 = vadd.f32 0.0, %v1198
    %1200 = vmatmul.f32.gmra.mxu0 %v509
    %v1201 = vpop.f32.mrf.mxu0
    %v1202 = vadd.f32 0.0, %v1201
    %1203 = vmatmul.f32.gmra.mxu0 %v512
    %v1204 = vpop.f32.mrf.mxu0
    %v1205 = vadd.f32 0.0, %v1204
    %1206 = vmatmul.f32.gmra.mxu0 %v515
    %v1207 = vpop.f32.mrf.mxu0
    %v1208 = vadd.f32 0.0, %v1207
    %1209 = vmatmul.f32.gmra.mxu0 %v518
    %v1210 = vpop.f32.mrf.mxu0
    %v1211 = vadd.f32 0.0, %v1210
    %1212 = vmatmul.f32.gmra.mxu0 %v521
    %v1213 = vpop.f32.mrf.mxu0
    %v1214 = vadd.f32 0.0, %v1213
    %1215 = vmatmul.f32.gmra.mxu0 %v524
    %v1216 = vpop.f32.mrf.mxu0
    %v1217 = vadd.f32 0.0, %v1216
    %1218 = vmatmul.f32.gmra.mxu0 %v527
    %v1219 = vpop.f32.mrf.mxu0
    %v1220 = vadd.f32 0.0, %v1219
    %1221 = vmatmul.f32.gmra.mxu0 %v530
    %v1222 = vpop.f32.mrf.mxu0
    %v1223 = vadd.f32 0.0, %v1222
    %1224 = vmatmul.f32.gmra.mxu0 %v533
    %v1225 = vpop.f32.mrf.mxu0
    %v1226 = vadd.f32 0.0, %v1225
    %1227 = vmatmul.f32.gmra.mxu0 %v536
    %v1228 = vpop.f32.mrf.mxu0
    %v1229 = vadd.f32 0.0, %v1228
    %1230 = vmatmul.f32.gmra.mxu0 %v539
    %v1231 = vpop.f32.mrf.mxu0
    %v1232 = vadd.f32 0.0, %v1231
    %1233 = vmatmul.f32.gmra.mxu0 %v542
    %v1234 = vpop.f32.mrf.mxu0
    %v1235 = vadd.f32 0.0, %v1234
    %1236 = vmatmul.f32.gmra.mxu0 %v545
    %v1237 = vpop.f32.mrf.mxu0
    %v1238 = vadd.f32 0.0, %v1237
    %1239 = vmatmul.f32.gmra.mxu0 %v548
    %v1240 = vpop.f32.mrf.mxu0
    %v1241 = vadd.f32 0.0, %v1240
    %1242 = vmatmul.f32.gmra.mxu0 %v551
    %v1243 = vpop.f32.mrf.mxu0
    %v1244 = vadd.f32 0.0, %v1243
    %1245 = vmatmul.f32.gmra.mxu0 %v554
    %v1246 = vpop.f32.mrf.mxu0
    %v1247 = vadd.f32 0.0, %v1246
    %1248 = vmatmul.f32.gmra.mxu0 %v557
    %v1249 = vpop.f32.mrf.mxu0
    %v1250 = vadd.f32 0.0, %v1249
    %1251 = vmatmul.f32.gmra.mxu0 %v560
    %v1252 = vpop.f32.mrf.mxu0
    %v1253 = vadd.f32 0.0, %v1252
    %1254 = vmatmul.f32.gmra.mxu0 %v563
    %v1255 = vpop.f32.mrf.mxu0
    %v1256 = vadd.f32 0.0, %v1255
    %1257 = vmatmul.f32.gmra.mxu0 %v566
    %v1258 = vpop.f32.mrf.mxu0
    %v1259 = vadd.f32 0.0, %v1258
    %1260 = vmatmul.f32.gmra.mxu0 %v569
    %v1261 = vpop.f32.mrf.mxu0
    %v1262 = vadd.f32 0.0, %v1261
    %1263 = vmatmul.f32.gmra.mxu0 %v572
    %v1264 = vpop.f32.mrf.mxu0
    %v1265 = vadd.f32 0.0, %v1264
    %1266 = vmatmul.f32.gmra.mxu0 %v575
    %v1267 = vpop.f32.mrf.mxu0
    %v1268 = vadd.f32 0.0, %v1267
    %1269 = vmatmul.f32.gmra.mxu0 %v578
    %v1270 = vpop.f32.mrf.mxu0
    %v1271 = vadd.f32 0.0, %v1270
    %1272 = vmatmul.f32.gmra.mxu0 %v581
    %v1273 = vpop.f32.mrf.mxu0
    %v1274 = vadd.f32 0.0, %v1273
    %1275 = vmatmul.f32.gmra.mxu0 %v584
    %v1276 = vpop.f32.mrf.mxu0
    %v1277 = vadd.f32 0.0, %v1276
    %1278 = vmatmul.f32.gmra.mxu0 %v587
    %v1279 = vpop.f32.mrf.mxu0
    %v1280 = vadd.f32 0.0, %v1279
    %1281 = vmatmul.f32.gmra.mxu0 %v590
    %v1282 = vpop.f32.mrf.mxu0
    %v1283 = vadd.f32 0.0, %v1282
    %1284 = vmatmul.f32.gmra.mxu0 %v593
    %v1285 = vpop.f32.mrf.mxu0
    %v1286 = vadd.f32 0.0, %v1285
    %1287 = vmatmul.f32.gmra.mxu0 %v596
    %v1288 = vpop.f32.mrf.mxu0
    %v1289 = vadd.f32 0.0, %v1288
    %1290 = vmatmul.f32.gmra.mxu0 %v599
    %v1291 = vpop.f32.mrf.mxu0
    %v1292 = vadd.f32 0.0, %v1291
    %1293 = vmatmul.f32.gmra.mxu0 %v602
    %v1294 = vpop.f32.mrf.mxu0
    %v1295 = vadd.f32 0.0, %v1294
    %1296 = vmatmul.f32.gmra.mxu0 %v605
    %v1297 = vpop.f32.mrf.mxu0
    %v1298 = vadd.f32 0.0, %v1297
    %1299 = vmatmul.f32.gmra.mxu0 %v608
    %v1300 = vpop.f32.mrf.mxu0
    %v1301 = vadd.f32 0.0, %v1300
    %1302 = vmatmul.f32.gmra.mxu0 %v611
    %v1303 = vpop.f32.mrf.mxu0
    %v1304 = vadd.f32 0.0, %v1303
    %1305 = vmatmul.f32.gmra.mxu0 %v614
    %v1306 = vpop.f32.mrf.mxu0
    %v1307 = vadd.f32 0.0, %v1306
    %1308 = vmatmul.f32.gmra.mxu0 %v617
    %v1309 = vpop.f32.mrf.mxu0
    %v1310 = vadd.f32 0.0, %v1309
    %1311 = vmatmul.f32.gmra.mxu0 %v620
    %v1312 = vpop.f32.mrf.mxu0
    %v1313 = vadd.f32 0.0, %v1312
    %1314 = vmatmul.f32.gmra.mxu0 %v623
    %v1315 = vpop.f32.mrf.mxu0
    %v1316 = vadd.f32 0.0, %v1315
    %1317 = vmatmul.f32.gmra.mxu0 %v626
    %v1318 = vpop.f32.mrf.mxu0
    %v1319 = vadd.f32 0.0, %v1318
    %1320 = vmatmul.f32.gmra.mxu0 %v629
    %v1321 = vpop.f32.mrf.mxu0
    %v1322 = vadd.f32 0.0, %v1321
    %1323 = vmatmul.f32.gmra.mxu0 %v632
    %v1324 = vpop.f32.mrf.mxu0
    %v1325 = vadd.f32 0.0, %v1324
    %1326 = vmatmul.f32.gmra.mxu0 %v635
    %v1327 = vpop.f32.mrf.mxu0
    %v1328 = vadd.f32 0.0, %v1327
    %1329 = vmatmul.f32.gmra.mxu0 %v638
    %v1330 = vpop.f32.mrf.mxu0
    %v1331 = vadd.f32 0.0, %v1330
    %1332 = vmatmul.f32.gmra.mxu0 %v641
    %v1333 = vpop.f32.mrf.mxu0
    %v1334 = vadd.f32 0.0, %v1333
    %1335 = vmatmul.f32.gmra.mxu0 %v644
    %v1336 = vpop.f32.mrf.mxu0
    %v1337 = vadd.f32 0.0, %v1336
    %1338 = vmatmul.f32.gmra.mxu0 %v647
    %v1339 = vpop.f32.mrf.mxu0
    %v1340 = vadd.f32 0.0, %v1339
    %1341 = vmatmul.f32.gmra.mxu0 %v650
    %v1342 = vpop.f32.mrf.mxu0
    %v1343 = vadd.f32 0.0, %v1342
    %1344 = vmatmul.f32.gmra.mxu0 %v653
    %v1345 = vpop.f32.mrf.mxu0
    %v1346 = vadd.f32 0.0, %v1345
    %1347 = vmatmul.f32.gmra.mxu0 %v656
    %v1348 = vpop.f32.mrf.mxu0
    %v1349 = vadd.f32 0.0, %v1348
    %1350 = vmatmul.f32.gmra.mxu0 %v659
    %v1351 = vpop.f32.mrf.mxu0
    %v1352 = vadd.f32 0.0, %v1351
    %1353 = vmatmul.f32.gmra.mxu0 %v662
    %v1354 = vpop.f32.mrf.mxu0
    %v1355 = vadd.f32 0.0, %v1354
    %1356 = vmatmul.f32.gmra.mxu0 %v665
    %v1357 = vpop.f32.mrf.mxu0
    %v1358 = vadd.f32 0.0, %v1357
    %1359 = vmatmul.f32.gmra.mxu0 %v668
    %v1360 = vpop.f32.mrf.mxu0
    %v1361 = vadd.f32 0.0, %v1360
    %1362 = vmatmul.f32.gmra.mxu0 %v671
    %v1363 = vpop.f32.mrf.mxu0
    %v1364 = vadd.f32 0.0, %v1363
    %1365 = vmatmul.f32.gmra.mxu0 %v674
    %v1366 = vpop.f32.mrf.mxu0
    %v1367 = vadd.f32 0.0, %v1366
    %1368 = vmatmul.f32.gmra.mxu0 %v677
    %v1369 = vpop.f32.mrf.mxu0
    %v1370 = vadd.f32 0.0, %v1369
    %1371 = vmatmul.f32.gmra.mxu0 %v680
    %v1372 = vpop.f32.mrf.mxu0
    %v1373 = vadd.f32 0.0, %v1372
    %1374 = vmatmul.f32.gmra.mxu0 %v683
    %v1375 = vpop.f32.mrf.mxu0
    %v1376 = vadd.f32 0.0, %v1375
    %1377 = vmatmul.f32.gmra.mxu0 %v686
    %v1378 = vpop.f32.mrf.mxu0
    %v1379 = vadd.f32 0.0, %v1378
    %1380 = vmatmul.f32.gmra.mxu0 %v689
    %v1381 = vpop.f32.mrf.mxu0
    %v1382 = vadd.f32 0.0, %v1381
    %1383 = vmatmul.f32.gmra.mxu0 %v692
    %v1384 = vpop.f32.mrf.mxu0
    %v1385 = vadd.f32 0.0, %v1384
    %1386 = vmatmul.f32.gmra.mxu0 %v695
    %v1387 = vpop.f32.mrf.mxu0
    %v1388 = vadd.f32 0.0, %v1387
    %1389 = vmatmul.f32.gmra.mxu0 %v698
    %v1390 = vpop.f32.mrf.mxu0
    %v1391 = vadd.f32 0.0, %v1390
    %1392 = vmatmul.f32.gmra.mxu0 %v701
    %v1393 = vpop.f32.mrf.mxu0
    %v1394 = vadd.f32 0.0, %v1393
    %1395 = vmatmul.f32.gmra.mxu0 %v704
    %v1396 = vpop.f32.mrf.mxu0
    %v1397 = vadd.f32 0.0, %v1396
    %1398 = vmatmul.f32.gmra.mxu0 %v707
    %v1399 = vpop.f32.mrf.mxu0
    %v1400 = vadd.f32 0.0, %v1399
    %1401 = vmatmul.f32.gmra.mxu0 %v710
    %v1402 = vpop.f32.mrf.mxu0
    %v1403 = vadd.f32 0.0, %v1402
    %1404 = vmatmul.f32.gmra.mxu0 %v713
    %v1405 = vpop.f32.mrf.mxu0
    %v1406 = vadd.f32 0.0, %v1405
    %1407 = vmatmul.f32.gmra.mxu0 %v716
    %v1408 = vpop.f32.mrf.mxu0
    %v1409 = vadd.f32 0.0, %v1408
    %1410 = vmatmul.f32.gmra.mxu0 %v719
    %v1411 = vpop.f32.mrf.mxu0
    %v1412 = vadd.f32 0.0, %v1411
    %1413 = vmatmul.f32.gmra.mxu0 %v722
    %v1414 = vpop.f32.mrf.mxu0
    %v1415 = vadd.f32 0.0, %v1414
    %1416 = vmatmul.f32.gmra.mxu0 %v725
    %v1417 = vpop.f32.mrf.mxu0
    %v1418 = vadd.f32 0.0, %v1417
    %1419 = vmatmul.f32.gmra.mxu0 %v728
    %v1420 = vpop.f32.mrf.mxu0
    %v1421 = vadd.f32 0.0, %v1420
    %1422 = vmatmul.f32.gmra.mxu0 %v731
    %v1423 = vpop.f32.mrf.mxu0
    %v1424 = vadd.f32 0.0, %v1423
    %1425 = vmatmul.f32.gmra.mxu0 %v734
    %v1426 = vpop.f32.mrf.mxu0
    %v1427 = vadd.f32 0.0, %v1426
    %1428 = vmatmul.f32.gmra.mxu0 %v737
    %v1429 = vpop.f32.mrf.mxu0
    %v1430 = vadd.f32 0.0, %v1429
    %1431 = vmatmul.f32.gmra.mxu0 %v740
    %v1432 = vpop.f32.mrf.mxu0
    %v1433 = vadd.f32 0.0, %v1432
    %1434 = vmatmul.f32.gmra.mxu0 %v743
    %v1435 = vpop.f32.mrf.mxu0
    %v1436 = vadd.f32 0.0, %v1435
    %1437 = vmatmul.f32.gmra.mxu0 %v746
    %v1438 = vpop.f32.mrf.mxu0
    %v1439 = vadd.f32 0.0, %v1438
    %1440 = vmatmul.f32.gmra.mxu0 %v749
    %v1441 = vpop.f32.mrf.mxu0
    %v1442 = vadd.f32 0.0, %v1441
    %1443 = vmatmul.f32.gmra.mxu0 %v752
    %v1444 = vpop.f32.mrf.mxu0
    %v1445 = vadd.f32 0.0, %v1444
    %1446 = vmatmul.f32.gmra.mxu0 %v755
    %v1447 = vpop.f32.mrf.mxu0
    %v1448 = vadd.f32 0.0, %v1447
    %1449 = vmatmul.f32.gmra.mxu0 %v758
    %v1450 = vpop.f32.mrf.mxu0
    %v1451 = vadd.f32 0.0, %v1450
    %1452 = vmatmul.f32.gmra.mxu0 %v761
    %v1453 = vpop.f32.mrf.mxu0
    %v1454 = vadd.f32 0.0, %v1453
    %1455 = vmatmul.f32.gmra.mxu0 %v764
    %v1456 = vpop.f32.mrf.mxu0
    %v1457 = vadd.f32 0.0, %v1456
    %1458 = vmatmul.f32.gmra.mxu0 %v767
    %v1459 = vpop.f32.mrf.mxu0
    %v1460 = vadd.f32 0.0, %v1459
    %1461 = vmatmul.f32.gmra.mxu0 %v770
    %v1462 = vpop.f32.mrf.mxu0
    %v1463 = vadd.f32 0.0, %v1462
    %1464 = vmatmul.f32.gmra.mxu0 %v773
    %v1465 = vpop.f32.mrf.mxu0
    %v1466 = vadd.f32 0.0, %v1465
    %1467 = vmatmul.f32.gmra.mxu0 %v776
    %v1468 = vpop.f32.mrf.mxu0
    %v1469 = vadd.f32 0.0, %v1468
    %1470 = vmatmul.f32.gmra.mxu0 %v779
    %v1471 = vpop.f32.mrf.mxu0
    %v1472 = vadd.f32 0.0, %v1471
    %1473 = vmatmul.f32.gmra.mxu0 %v782
    %v1474 = vpop.f32.mrf.mxu0
    %v1475 = vadd.f32 0.0, %v1474
    %1476 = vmatmul.f32.gmra.mxu0 %v785
    %v1477 = vpop.f32.mrf.mxu0
    %v1478 = vadd.f32 0.0, %v1477
    %1479 = vmatmul.f32.gmra.mxu0 %v788
    %v1480 = vpop.f32.mrf.mxu0
    %v1481 = vadd.f32 0.0, %v1480
    %1482 = vmatmul.f32.gmra.mxu0 %v791
    %v1483 = vpop.f32.mrf.mxu0
    %v1484 = vadd.f32 0.0, %v1483
    %1485 = vmatmul.f32.gmra.mxu0 %v794
    %v1486 = vpop.f32.mrf.mxu0
    %v1487 = vadd.f32 0.0, %v1486
    %1488 = vmatmul.f32.gmra.mxu0 %v797
    %v1489 = vpop.f32.mrf.mxu0
    %v1490 = vadd.f32 0.0, %v1489
    %1491 = vmatmul.f32.gmra.mxu0 %v800
    %v1492 = vpop.f32.mrf.mxu0
    %v1493 = vadd.f32 0.0, %v1492
    %1494 = vmatmul.f32.gmra.mxu0 %v803
    %v1495 = vpop.f32.mrf.mxu0
    %v1496 = vadd.f32 0.0, %v1495
    %1497 = vmatmul.f32.gmra.mxu0 %v806
    %v1498 = vpop.f32.mrf.mxu0
    %v1499 = vadd.f32 0.0, %v1498
    %1500 = vmatmul.f32.gmra.mxu0 %v809
    %v1501 = vpop.f32.mrf.mxu0
    %v1502 = vadd.f32 0.0, %v1501
    %1503 = vmatmul.f32.gmra.mxu0 %v812
    %v1504 = vpop.f32.mrf.mxu0
    %v1505 = vadd.f32 0.0, %v1504
    %1506 = vmatmul.f32.gmra.mxu0 %v815
    %v1507 = vpop.f32.mrf.mxu0
    %v1508 = vadd.f32 0.0, %v1507
    %1509 = vmatmul.f32.gmra.mxu0 %v818
    %v1510 = vpop.f32.mrf.mxu0
    %v1511 = vadd.f32 0.0, %v1510
    %1512 = vmatmul.f32.gmra.mxu0 %v821
    %v1513 = vpop.f32.mrf.mxu0
    %v1514 = vadd.f32 0.0, %v1513
    %1515 = vmatmul.f32.gmra.mxu0 %v824
    %v1516 = vpop.f32.mrf.mxu0
    %v1517 = vadd.f32 0.0, %v1516
    %1518 = vmatmul.f32.gmra.mxu0 %v827
    %v1519 = vpop.f32.mrf.mxu0
    %v1520 = vadd.f32 0.0, %v1519
    %1521 = vmatmul.f32.gmra.mxu0 %v830
    %v1522 = vpop.f32.mrf.mxu0
    %v1523 = vadd.f32 0.0, %v1522
    %1524 = vmatmul.f32.gmra.mxu0 %v833
    %v1525 = vpop.f32.mrf.mxu0
    %v1526 = vadd.f32 0.0, %v1525
    %1527 = vmatmul.f32.gmra.mxu0 %v836
    %v1528 = vpop.f32.mrf.mxu0
    %v1529 = vadd.f32 0.0, %v1528
    %1530 = vmatmul.f32.gmra.mxu0 %v839
    %v1531 = vpop.f32.mrf.mxu0
    %v1532 = vadd.f32 0.0, %v1531
    %1533 = vmatmul.f32.gmra.mxu0 %v842
    %v1534 = vpop.f32.mrf.mxu0
    %v1535 = vadd.f32 0.0, %v1534
    %1536 = vmatmul.f32.gmra.mxu0 %v845
    %v1537 = vpop.f32.mrf.mxu0
    %v1538 = vadd.f32 0.0, %v1537
    %1539 = vmatmul.f32.gmra.mxu0 %v848
    %v1540 = vpop.f32.mrf.mxu0
    %v1541 = vadd.f32 0.0, %v1540
    %1542 = vmatmul.f32.gmra.mxu0 %v851
    %v1543 = vpop.f32.mrf.mxu0
    %v1544 = vadd.f32 0.0, %v1543
    %1545 = vmatmul.f32.gmra.mxu0 %v854
    %v1546 = vpop.f32.mrf.mxu0
    %v1547 = vadd.f32 0.0, %v1546
    %1548 = vmatmul.f32.gmra.mxu0 %v857
    %v1549 = vpop.f32.mrf.mxu0
    %v1550 = vadd.f32 0.0, %v1549
    %1551 = vmatmul.f32.gmra.mxu0 %v860
    %v1552 = vpop.f32.mrf.mxu0
    %v1553 = vadd.f32 0.0, %v1552
    %1554 = vmatmul.f32.gmra.mxu0 %v863
    %v1555 = vpop.f32.mrf.mxu0
    %v1556 = vadd.f32 0.0, %v1555
    %1557 = vmatmul.f32.gmra.mxu0 %v866
    %v1558 = vpop.f32.mrf.mxu0
    %v1559 = vadd.f32 0.0, %v1558
    %1560 = vmatmul.f32.gmra.mxu0 %v869
    %v1561 = vpop.f32.mrf.mxu0
    %v1562 = vadd.f32 0.0, %v1561
    %1563 = vmatmul.f32.gmra.mxu0 %v872
    %v1564 = vpop.f32.mrf.mxu0
    %v1565 = vadd.f32 0.0, %v1564
    %1566 = vmatmul.f32.gmra.mxu0 %v875
    %v1567 = vpop.f32.mrf.mxu0
    %v1568 = vadd.f32 0.0, %v1567
    %1569 = vmatmul.f32.gmra.mxu0 %v878
    %v1570 = vpop.f32.mrf.mxu0
    %v1571 = vadd.f32 0.0, %v1570
    %1572 = vmatmul.f32.gmra.mxu0 %v881
    %v1573 = vpop.f32.mrf.mxu0
    %v1574 = vadd.f32 0.0, %v1573
    %1575 = vmatmul.f32.gmra.mxu0 %v884
    %v1576 = vpop.f32.mrf.mxu0
    %v1577 = vadd.f32 0.0, %v1576
    %1578 = vmatmul.f32.gmra.mxu0 %v887
    %v1579 = vpop.f32.mrf.mxu0
    %v1580 = vadd.f32 0.0, %v1579
    %1581 = vmatmul.f32.gmra.mxu0 %v890
    %v1582 = vpop.f32.mrf.mxu0
    %v1583 = vadd.f32 0.0, %v1582
    %1584 = vmatmul.f32.gmra.mxu0 %v893
    %v1585 = vpop.f32.mrf.mxu0
    %v1586 = vadd.f32 0.0, %v1585
    %1587 = vmatmul.f32.gmra.mxu0 %v896
    %v1588 = vpop.f32.mrf.mxu0
    %v1589 = vadd.f32 0.0, %v1588
    %1590 = vmatmul.f32.gmra.mxu0 %v899
    %v1591 = vpop.f32.mrf.mxu0
    %v1592 = vadd.f32 0.0, %v1591
    %1593 = vmatmul.f32.gmra.mxu0 %v902
    %v1594 = vpop.f32.mrf.mxu0
    %v1595 = vadd.f32 0.0, %v1594
    %1596 = vmatmul.f32.gmra.mxu0 %v905
    %v1597 = vpop.f32.mrf.mxu0
    %v1598 = vadd.f32 0.0, %v1597
    %1599 = vmatmul.f32.gmra.mxu0 %v908
    %v1600 = vpop.f32.mrf.mxu0
    %v1601 = vadd.f32 0.0, %v1600
    %1602 = vmatmul.f32.gmra.mxu0 %v911
    %v1603 = vpop.f32.mrf.mxu0
    %v1604 = vadd.f32 0.0, %v1603
    %1605 = vmatmul.f32.gmra.mxu0 %v914
    %v1606 = vpop.f32.mrf.mxu0
    %v1607 = vadd.f32 0.0, %v1606
    %1608 = vmatmul.f32.gmra.mxu0 %v917
    %v1609 = vpop.f32.mrf.mxu0
    %v1610 = vadd.f32 0.0, %v1609
    %1611 = vmatmul.f32.gmra.mxu0 %v920
    %v1612 = vpop.f32.mrf.mxu0
    %v1613 = vadd.f32 0.0, %v1612
    %1614 = vmatmul.f32.gmra.mxu0 %v923
    %v1615 = vpop.f32.mrf.mxu0
    %v1616 = vadd.f32 0.0, %v1615
    %1617 = vmatmul.f32.gmra.mxu0 %v926
    %v1618 = vpop.f32.mrf.mxu0
    %v1619 = vadd.f32 0.0, %v1618
    %1620 = vmatmul.f32.gmra.mxu0 %v929
    %v1621 = vpop.f32.mrf.mxu0
    %v1622 = vadd.f32 0.0, %v1621
    %1623 = vmatmul.f32.gmra.mxu0 %v932
    %v1624 = vpop.f32.mrf.mxu0
    %v1625 = vadd.f32 0.0, %v1624
    %1626 = vmatmul.f32.gmra.mxu0 %v935
    %v1627 = vpop.f32.mrf.mxu0
    %v1628 = vadd.f32 0.0, %v1627
    %1629 = vmatmul.f32.gmra.mxu0 %v938
    %v1630 = vpop.f32.mrf.mxu0
    %v1631 = vadd.f32 0.0, %v1630
    %1632 = vmatmul.f32.gmra.mxu0 %v941
    %v1633 = vpop.f32.mrf.mxu0
    %v1634 = vadd.f32 0.0, %v1633
    %1635 = vmatmul.f32.gmra.mxu0 %v944
    %v1636 = vpop.f32.mrf.mxu0
    %v1637 = vadd.f32 0.0, %v1636
    %1638 = vmatmul.f32.gmra.mxu0 %v947
    %v1639 = vpop.f32.mrf.mxu0
    %v1640 = vadd.f32 0.0, %v1639
    %1641 = vmatmul.f32.gmra.mxu0 %v950
    %v1642 = vpop.f32.mrf.mxu0
    %v1643 = vadd.f32 0.0, %v1642
    %1644 = vdwg.mxu0
    %v1645 = vld [vmem:[%s5] sm:$0x1]
    %v1646 = vld [vmem:[%s6] sm:$0x1]
    %v1647 = vperm.slane %v974, 0
    %v1648 = vsub.f32 %v974, %v1647
    %v1649 = vsub.f32 %v977, %v1647
    %v1650 = vsub.f32 %v980, %v1647
    %v1651 = vsub.f32 %v983, %v1647
    %v1652 = vsub.f32 %v986, %v1647
    %v1653 = vsub.f32 %v989, %v1647
    %v1654 = vsub.f32 %v992, %v1647
    %v1655 = vsub.f32 %v995, %v1647
    %v1656 = vsub.f32 %v998, %v1647
    %v1657 = vsub.f32 %v1001, %v1647
    %v1658 = vsub.f32 %v1004, %v1647
    %v1659 = vsub.f32 %v1007, %v1647
    %v1660 = vsub.f32 %v1010, %v1647
    %v1661 = vsub.f32 %v1013, %v1647
    %v1662 = vsub.f32 %v1016, %v1647
    %v1663 = vsub.f32 %v1019, %v1647
    %v1664 = vsub.f32 %v1022, %v1647
    %v1665 = vsub.f32 %v1025, %v1647
    %v1666 = vsub.f32 %v1028, %v1647
    %v1667 = vsub.f32 %v1031, %v1647
    %v1668 = vsub.f32 %v1034, %v1647
    %v1669 = vsub.f32 %v1037, %v1647
    %v1670 = vsub.f32 %v1040, %v1647
    %v1671 = vsub.f32 %v1043, %v1647
    %v1672 = vsub.f32 %v1046, %v1647
    %v1673 = vsub.f32 %v1049, %v1647
    %v1674 = vsub.f32 %v1052, %v1647
    %v1675 = vsub.f32 %v1055, %v1647
    %v1676 = vsub.f32 %v1058, %v1647
    %v1677 = vsub.f32 %v1061, %v1647
    %v1678 = vsub.f32 %v1064, %v1647
    %v1679 = vsub.f32 %v1067, %v1647
    %v1680 = vsub.f32 %v1070, %v1647
    %v1681 = vsub.f32 %v1073, %v1647
    %v1682 = vsub.f32 %v1076, %v1647
    %v1683 = vsub.f32 %v1079, %v1647
    %v1684 = vsub.f32 %v1082, %v1647
    %v1685 = vsub.f32 %v1085, %v1647
    %v1686 = vsub.f32 %v1088, %v1647
    %v1687 = vsub.f32 %v1091, %v1647
    %v1688 = vsub.f32 %v1094, %v1647
    %v1689 = vsub.f32 %v1097, %v1647
    %v1690 = vsub.f32 %v1100, %v1647
    %v1691 = vsub.f32 %v1103, %v1647
    %v1692 = vsub.f32 %v1106, %v1647
    %v1693 = vsub.f32 %v1109, %v1647
    %v1694 = vsub.f32 %v1112, %v1647
    %v1695 = vsub.f32 %v1115, %v1647
    %v1696 = vsub.f32 %v1118, %v1647
    %v1697 = vmul.f32 %v1648, %v1648
    %v1698 = vmul.f32 %v1649, %v1649
    %v1699 = vmul.f32 %v1650, %v1650
    %v1700 = vmul.f32 %v1651, %v1651
    %v1701 = vmul.f32 %v1652, %v1652
    %v1702 = vmul.f32 %v1653, %v1653
    %v1703 = vmul.f32 %v1654, %v1654
    %v1704 = vmul.f32 %v1655, %v1655
    %v1705 = vmul.f32 %v1656, %v1656
    %v1706 = vmul.f32 %v1657, %v1657
    %v1707 = vmul.f32 %v1658, %v1658
    %v1708 = vmul.f32 %v1659, %v1659
    %v1709 = vmul.f32 %v1660, %v1660
    %v1710 = vmul.f32 %v1661, %v1661
    %v1711 = vmul.f32 %v1662, %v1662
    %v1712 = vmul.f32 %v1663, %v1663
    %v1713 = vmul.f32 %v1664, %v1664
    %v1714 = vmul.f32 %v1665, %v1665
    %v1715 = vmul.f32 %v1666, %v1666
    %v1716 = vmul.f32 %v1667, %v1667
    %v1717 = vmul.f32 %v1668, %v1668
    %v1718 = vmul.f32 %v1669, %v1669
    %v1719 = vmul.f32 %v1670, %v1670
    %v1720 = vmul.f32 %v1671, %v1671
    %v1721 = vmul.f32 %v1672, %v1672
    %v1722 = vmul.f32 %v1673, %v1673
    %v1723 = vmul.f32 %v1674, %v1674
    %v1724 = vmul.f32 %v1675, %v1675
    %v1725 = vmul.f32 %v1676, %v1676
    %v1726 = vmul.f32 %v1677, %v1677
    %v1727 = vmul.f32 %v1678, %v1678
    %v1728 = vmul.f32 %v1679, %v1679
    %v1729 = vmul.f32 %v1680, %v1680
    %v1730 = vmul.f32 %v1681, %v1681
    %v1731 = vmul.f32 %v1682, %v1682
    %v1732 = vmul.f32 %v1683, %v1683
    %v1733 = vmul.f32 %v1684, %v1684
    %v1734 = vmul.f32 %v1685, %v1685
    %v1735 = vmul.f32 %v1686, %v1686
    %v1736 = vmul.f32 %v1687, %v1687
    %v1737 = vmul.f32 %v1688, %v1688
    %v1738 = vmul.f32 %v1689, %v1689
    %v1739 = vmul.f32 %v1690, %v1690
    %v1740 = vmul.f32 %v1691, %v1691
    %v1741 = vmul.f32 %v1692, %v1692
    %v1742 = vmul.f32 %v1693, %v1693
    %v1743 = vmul.f32 %v1694, %v1694
    %v1744 = vmul.f32 %v1695, %v1695
    %v1745 = vmul.f32 %v1696, %v1696
    %1795 = vrot.lane.b32.xlu0 %v1697, 16
    %v1796 = vpop.permute.xlu0 %1795
    %1797 = vrot.lane.b32.xlu0 %v1698, 16
    %v1798 = vpop.permute.xlu0 %1797
    %1799 = vrot.lane.b32.xlu0 %v1699, 16
    %v1800 = vpop.permute.xlu0 %1799
    %1801 = vrot.lane.b32.xlu0 %v1700, 16
    %v1802 = vpop.permute.xlu0 %1801
    %1803 = vrot.lane.b32.xlu0 %v1701, 16
    %v1804 = vpop.permute.xlu0 %1803
    %1805 = vrot.lane.b32.xlu0 %v1702, 16
    %v1806 = vpop.permute.xlu0 %1805
    %1807 = vrot.lane.b32.xlu0 %v1703, 16
    %v1808 = vpop.permute.xlu0 %1807
    %1809 = vrot.lane.b32.xlu0 %v1704, 16
    %v1810 = vpop.permute.xlu0 %1809
    %1811 = vrot.lane.b32.xlu0 %v1705, 16
    %v1812 = vpop.permute.xlu0 %1811
    %1813 = vrot.lane.b32.xlu0 %v1706, 16
    %v1814 = vpop.permute.xlu0 %1813
    %1815 = vrot.lane.b32.xlu0 %v1707, 16
    %v1816 = vpop.permute.xlu0 %1815
    %1817 = vrot.lane.b32.xlu0 %v1708, 16
    %v1818 = vpop.permute.xlu0 %1817
    %1819 = vrot.lane.b32.xlu0 %v1709, 16
    %v1820 = vpop.permute.xlu0 %1819
    %1821 = vrot.lane.b32.xlu0 %v1710, 16
    %v1822 = vpop.permute.xlu0 %1821
    %1823 = vrot.lane.b32.xlu0 %v1711, 16
    %v1824 = vpop.permute.xlu0 %1823
    %1825 = vrot.lane.b32.xlu0 %v1712, 16
    %v1826 = vpop.permute.xlu0 %1825
    %1827 = vrot.lane.b32.xlu0 %v1713, 16
    %v1828 = vpop.permute.xlu0 %1827
    %1829 = vrot.lane.b32.xlu0 %v1714, 16
    %v1830 = vpop.permute.xlu0 %1829
    %1831 = vrot.lane.b32.xlu0 %v1715, 16
    %v1832 = vpop.permute.xlu0 %1831
    %1833 = vrot.lane.b32.xlu0 %v1716, 16
    %v1834 = vpop.permute.xlu0 %1833
    %1835 = vrot.lane.b32.xlu0 %v1717, 16
    %v1836 = vpop.permute.xlu0 %1835
    %1837 = vrot.lane.b32.xlu0 %v1718, 16
    %v1838 = vpop.permute.xlu0 %1837
    %1839 = vrot.lane.b32.xlu0 %v1719, 16
    %v1840 = vpop.permute.xlu0 %1839
    %1841 = vrot.lane.b32.xlu0 %v1720, 16
    %v1842 = vpop.permute.xlu0 %1841
    %1843 = vrot.lane.b32.xlu0 %v1721, 16
    %v1844 = vpop.permute.xlu0 %1843
    %1845 = vrot.lane.b32.xlu0 %v1722, 16
    %v1846 = vpop.permute.xlu0 %1845
    %1847 = vrot.lane.b32.xlu0 %v1723, 16
    %v1848 = vpop.permute.xlu0 %1847
    %1849 = vrot.lane.b32.xlu0 %v1724, 16
    %v1850 = vpop.permute.xlu0 %1849
    %1851 = vrot.lane.b32.xlu0 %v1725, 16
    %v1852 = vpop.permute.xlu0 %1851
    %1853 = vrot.lane.b32.xlu0 %v1726, 16
    %v1854 = vpop.permute.xlu0 %1853
    %1855 = vrot.lane.b32.xlu0 %v1727, 16
    %v1856 = vpop.permute.xlu0 %1855
    %1857 = vrot.lane.b32.xlu0 %v1728, 16
    %v1858 = vpop.permute.xlu0 %1857
    %1859 = vrot.lane.b32.xlu0 %v1729, 16
    %v1860 = vpop.permute.xlu0 %1859
    %1861 = vrot.lane.b32.xlu0 %v1730, 16
    %v1862 = vpop.permute.xlu0 %1861
    %1863 = vrot.lane.b32.xlu0 %v1731, 16
    %v1864 = vpop.permute.xlu0 %1863
    %1865 = vrot.lane.b32.xlu0 %v1732, 16
    %v1866 = vpop.permute.xlu0 %1865
    %1867 = vrot.lane.b32.xlu0 %v1733, 16
    %v1868 = vpop.permute.xlu0 %1867
    %1869 = vrot.lane.b32.xlu0 %v1734, 16
    %v1870 = vpop.permute.xlu0 %1869
    %1871 = vrot.lane.b32.xlu0 %v1735, 16
    %v1872 = vpop.permute.xlu0 %1871
    %1873 = vrot.lane.b32.xlu0 %v1736, 16
    %v1874 = vpop.permute.xlu0 %1873
    %1875 = vrot.lane.b32.xlu0 %v1737, 16
    %v1876 = vpop.permute.xlu0 %1875
    %1877 = vrot.lane.b32.xlu0 %v1738, 16
    %v1878 = vpop.permute.xlu0 %1877
    %1879 = vrot.lane.b32.xlu0 %v1739, 16
    %v1880 = vpop.permute.xlu0 %1879
    %1881 = vrot.lane.b32.xlu0 %v1740, 16
    %v1882 = vpop.permute.xlu0 %1881
    %1883 = vrot.lane.b32.xlu0 %v1741, 16
    %v1884 = vpop.permute.xlu0 %1883
    %1885 = vrot.lane.b32.xlu0 %v1742, 16
    %v1886 = vpop.permute.xlu0 %1885
    %1887 = vrot.lane.b32.xlu0 %v1743, 16
    %v1888 = vpop.permute.xlu0 %1887
    %1889 = vrot.lane.b32.xlu0 %v1744, 16
    %v1890 = vpop.permute.xlu0 %1889
    %1891 = vrot.lane.b32.xlu0 %v1745, 16
    %v1892 = vpop.permute.xlu0 %1891
    %vm1942 = vcmask 130048
    %v1943 = vsel %vm1942, %v1648, %v1796
    %v1944 = vsel %vm1942, %v1649, %v1798
    %v1945 = vsel %vm1942, %v1650, %v1800
    %v1946 = vsel %vm1942, %v1651, %v1802
    %v1947 = vsel %vm1942, %v1652, %v1804
    %v1948 = vsel %vm1942, %v1653, %v1806
    %v1949 = vsel %vm1942, %v1654, %v1808
    %v1950 = vsel %vm1942, %v1655, %v1810
    %v1951 = vsel %vm1942, %v1656, %v1812
    %v1952 = vsel %vm1942, %v1657, %v1814
    %v1953 = vsel %vm1942, %v1658, %v1816
    %v1954 = vsel %vm1942, %v1659, %v1818
    %v1955 = vsel %vm1942, %v1660, %v1820
    %v1956 = vsel %vm1942, %v1661, %v1822
    %v1957 = vsel %vm1942, %v1662, %v1824
    %v1958 = vsel %vm1942, %v1663, %v1826
    %v1959 = vsel %vm1942, %v1664, %v1828
    %v1960 = vsel %vm1942, %v1665, %v1830
    %v1961 = vsel %vm1942, %v1666, %v1832
    %v1962 = vsel %vm1942, %v1667, %v1834
    %v1963 = vsel %vm1942, %v1668, %v1836
    %v1964 = vsel %vm1942, %v1669, %v1838
    %v1965 = vsel %vm1942, %v1670, %v1840
    %v1966 = vsel %vm1942, %v1671, %v1842
    %v1967 = vsel %vm1942, %v1672, %v1844
    %v1968 = vsel %vm1942, %v1673, %v1846
    %v1969 = vsel %vm1942, %v1674, %v1848
    %v1970 = vsel %vm1942, %v1675, %v1850
    %v1971 = vsel %vm1942, %v1676, %v1852
    %v1972 = vsel %vm1942, %v1677, %v1854
    %v1973 = vsel %vm1942, %v1678, %v1856
    %v1974 = vsel %vm1942, %v1679, %v1858
    %v1975 = vsel %vm1942, %v1680, %v1860
    %v1976 = vsel %vm1942, %v1681, %v1862
    %v1977 = vsel %vm1942, %v1682, %v1864
    %v1978 = vsel %vm1942, %v1683, %v1866
    %v1979 = vsel %vm1942, %v1684, %v1868
    %v1980 = vsel %vm1942, %v1685, %v1870
    %v1981 = vsel %vm1942, %v1686, %v1872
    %v1982 = vsel %vm1942, %v1687, %v1874
    %v1983 = vsel %vm1942, %v1688, %v1876
    %v1984 = vsel %vm1942, %v1689, %v1878
    %v1985 = vsel %vm1942, %v1690, %v1880
    %v1986 = vsel %vm1942, %v1691, %v1882
    %v1987 = vsel %vm1942, %v1692, %v1884
    %v1988 = vsel %vm1942, %v1693, %v1886
    %v1989 = vsel %vm1942, %v1694, %v1888
    %v1990 = vsel %vm1942, %v1695, %v1890
    %v1991 = vsel %vm1942, %v1696, %v1892
    %vm1992 = vcmask 261120
    %v1993 = vsel %vm1992, %v1943, 0.0
    %v1994 = vsel %vm1992, %v1944, 0.0
    %v1995 = vadd.f32 %v1993, %v1994
    %v1996 = vsel %vm1992, %v1945, 0.0
    %v1997 = vadd.f32 %v1995, %v1996
    %v1998 = vsel %vm1992, %v1946, 0.0
    %v1999 = vadd.f32 %v1997, %v1998
    %v2000 = vsel %vm1992, %v1947, 0.0
    %v2001 = vadd.f32 %v1999, %v2000
    %v2002 = vsel %vm1992, %v1948, 0.0
    %v2003 = vadd.f32 %v2001, %v2002
    %v2004 = vsel %vm1992, %v1949, 0.0
    %v2005 = vadd.f32 %v2003, %v2004
    %v2006 = vsel %vm1992, %v1950, 0.0
    %v2007 = vadd.f32 %v2005, %v2006
    %v2008 = vsel %vm1992, %v1951, 0.0
    %v2009 = vadd.f32 %v2007, %v2008
    %v2010 = vsel %vm1992, %v1952, 0.0
    %v2011 = vadd.f32 %v2009, %v2010
    %v2012 = vsel %vm1992, %v1953, 0.0
    %v2013 = vadd.f32 %v2011, %v2012
    %v2014 = vsel %vm1992, %v1954, 0.0
    %v2015 = vadd.f32 %v2013, %v2014
    %v2016 = vsel %vm1992, %v1955, 0.0
    %v2017 = vadd.f32 %v2015, %v2016
    %v2018 = vsel %vm1992, %v1956, 0.0
    %v2019 = vadd.f32 %v2017, %v2018
    %v2020 = vsel %vm1992, %v1957, 0.0
    %v2021 = vadd.f32 %v2019, %v2020
    %v2022 = vsel %vm1992, %v1958, 0.0
    %v2023 = vadd.f32 %v2021, %v2022
    %v2024 = vsel %vm1992, %v1959, 0.0
    %v2025 = vadd.f32 %v2023, %v2024
    %v2026 = vsel %vm1992, %v1960, 0.0
    %v2027 = vadd.f32 %v2025, %v2026
    %v2028 = vsel %vm1992, %v1961, 0.0
    %v2029 = vadd.f32 %v2027, %v2028
    %v2030 = vsel %vm1992, %v1962, 0.0
    %v2031 = vadd.f32 %v2029, %v2030
    %v2032 = vsel %vm1992, %v1963, 0.0
    %v2033 = vadd.f32 %v2031, %v2032
    %v2034 = vsel %vm1992, %v1964, 0.0
    %v2035 = vadd.f32 %v2033, %v2034
    %v2036 = vsel %vm1992, %v1965, 0.0
    %v2037 = vadd.f32 %v2035, %v2036
    %v2038 = vsel %vm1992, %v1966, 0.0
    %v2039 = vadd.f32 %v2037, %v2038
    %v2040 = vsel %vm1992, %v1967, 0.0
    %v2041 = vadd.f32 %v2039, %v2040
    %v2042 = vsel %vm1992, %v1968, 0.0
    %v2043 = vadd.f32 %v2041, %v2042
    %v2044 = vsel %vm1992, %v1969, 0.0
    %v2045 = vadd.f32 %v2043, %v2044
    %v2046 = vsel %vm1992, %v1970, 0.0
    %v2047 = vadd.f32 %v2045, %v2046
    %v2048 = vsel %vm1992, %v1971, 0.0
    %v2049 = vadd.f32 %v2047, %v2048
    %v2050 = vsel %vm1992, %v1972, 0.0
    %v2051 = vadd.f32 %v2049, %v2050
    %v2052 = vsel %vm1992, %v1973, 0.0
    %v2053 = vadd.f32 %v2051, %v2052
    %v2054 = vsel %vm1992, %v1974, 0.0
    %v2055 = vadd.f32 %v2053, %v2054
    %v2056 = vsel %vm1992, %v1975, 0.0
    %v2057 = vadd.f32 %v2055, %v2056
    %v2058 = vsel %vm1992, %v1976, 0.0
    %v2059 = vadd.f32 %v2057, %v2058
    %v2060 = vsel %vm1992, %v1977, 0.0
    %v2061 = vadd.f32 %v2059, %v2060
    %v2062 = vsel %vm1992, %v1978, 0.0
    %v2063 = vadd.f32 %v2061, %v2062
    %v2064 = vsel %vm1992, %v1979, 0.0
    %v2065 = vadd.f32 %v2063, %v2064
    %v2066 = vsel %vm1992, %v1980, 0.0
    %v2067 = vadd.f32 %v2065, %v2066
    %v2068 = vsel %vm1992, %v1981, 0.0
    %v2069 = vadd.f32 %v2067, %v2068
    %v2070 = vsel %vm1992, %v1982, 0.0
    %v2071 = vadd.f32 %v2069, %v2070
    %v2072 = vsel %vm1992, %v1983, 0.0
    %v2073 = vadd.f32 %v2071, %v2072
    %v2074 = vsel %vm1992, %v1984, 0.0
    %v2075 = vadd.f32 %v2073, %v2074
    %v2076 = vsel %vm1992, %v1985, 0.0
    %v2077 = vadd.f32 %v2075, %v2076
    %v2078 = vsel %vm1992, %v1986, 0.0
    %v2079 = vadd.f32 %v2077, %v2078
    %v2080 = vsel %vm1992, %v1987, 0.0
    %v2081 = vadd.f32 %v2079, %v2080
    %v2082 = vsel %vm1992, %v1988, 0.0
    %v2083 = vadd.f32 %v2081, %v2082
    %v2084 = vsel %vm1992, %v1989, 0.0
    %v2085 = vadd.f32 %v2083, %v2084
    %v2086 = vsel %vm1992, %v1990, 0.0
    %v2087 = vadd.f32 %v2085, %v2086
    %v2088 = vsel %vm1992, %v1991, 0.0
    %v2089 = vadd.f32 %v2087, %v2088
    %v2090 = vrot.slane %v2089, 4
    %v2091 = vadd.f32 %v2089, %v2090
    %v2092 = vrot.slane %v2091, 2
    %v2093 = vadd.f32 %v2091, %v2092
    %v2094 = vrot.slane %v2093, 1
    %v2095 = vadd.f32 %v2093, %v2094
    %v2096 = vmul.f32 %v2095, 0.0025510204
    %v2097 = vmul.f32 %v2096, %v2096
    %2099 = vrot.lane.b32.xlu0 %v2097, 16
    %v2100 = vpop.permute.xlu0 %2099
    %v2102 = vsub.f32 %v2096, %v2100
    %v2103 = vmax.f32 %v2102, 0.0
    %v2104 = vadd.f32 %v2103, 1e-05
    %v2105 = vrsqrt.pop %v2104
    %v2106 = vmul.f32 %v2105, %v2104
    %v2107 = vmul.f32 %v2106, %v2105
    %v2108 = vmul.f32 0.5, %v2107
    %v2109 = vsub.f32 1.5, %v2108
    %v2110 = vmul.f32 %v2105, %v2109
    %vm2111 = vweird.f32 %v2104
    %vm2112 = vweird.f32 %v2105
    %vm2113 = vmor %vm2111, %vm2112
    %v2114 = vsel %vm2113, %v2105, %v2110
    %2116 = vrot.lane.b32.xlu0 %v2114, 112
    %v2117 = vpop.permute.xlu0 %2116
    %v2119 = vmul.f32 %v1645, %v2117
    %v2120 = vadd.f32 %v974, %v2096
    %v2121 = vmul.f32 %v2120, %v2119
    %v2122 = vsub.f32 %v1646, %v2121
    %v2124 = vperm.slane %v2119, 0
    %v2126 = vmul.f32 %v1121, %v2124
    %v2127 = vmul.f32 %v1124, %v2124
    %v2128 = vmul.f32 %v1127, %v2124
    %v2129 = vmul.f32 %v1130, %v2124
    %v2130 = vmul.f32 %v1133, %v2124
    %v2131 = vmul.f32 %v1136, %v2124
    %v2132 = vmul.f32 %v1139, %v2124
    %v2133 = vmul.f32 %v1142, %v2124
    %v2134 = vmul.f32 %v1145, %v2124
    %v2135 = vmul.f32 %v1148, %v2124
    %v2136 = vmul.f32 %v1151, %v2124
    %v2137 = vmul.f32 %v1154, %v2124
    %v2138 = vmul.f32 %v1157, %v2124
    %v2139 = vmul.f32 %v1160, %v2124
    %v2140 = vmul.f32 %v1163, %v2124
    %v2141 = vmul.f32 %v1166, %v2124
    %v2142 = vmul.f32 %v1169, %v2124
    %v2143 = vmul.f32 %v1172, %v2124
    %v2144 = vmul.f32 %v1175, %v2124
    %v2145 = vmul.f32 %v1178, %v2124
    %v2146 = vmul.f32 %v1181, %v2124
    %v2147 = vmul.f32 %v1184, %v2124
    %v2148 = vmul.f32 %v1187, %v2124
    %v2149 = vmul.f32 %v1190, %v2124
    %v2150 = vmul.f32 %v1193, %v2124
    %v2151 = vmul.f32 %v1196, %v2124
    %v2152 = vmul.f32 %v1199, %v2124
    %v2153 = vmul.f32 %v1202, %v2124
    %v2154 = vmul.f32 %v1205, %v2124
    %v2155 = vmul.f32 %v1208, %v2124
    %v2156 = vmul.f32 %v1211, %v2124
    %v2157 = vmul.f32 %v1214, %v2124
    %v2158 = vmul.f32 %v1217, %v2124
    %v2159 = vmul.f32 %v1220, %v2124
    %v2160 = vmul.f32 %v1223, %v2124
    %v2161 = vmul.f32 %v1226, %v2124
    %v2162 = vmul.f32 %v1229, %v2124
    %v2163 = vmul.f32 %v1232, %v2124
    %v2164 = vmul.f32 %v1235, %v2124
    %v2165 = vmul.f32 %v1238, %v2124
    %v2166 = vmul.f32 %v1241, %v2124
    %v2167 = vmul.f32 %v1244, %v2124
    %v2168 = vmul.f32 %v1247, %v2124
    %v2169 = vmul.f32 %v1250, %v2124
    %v2170 = vmul.f32 %v1253, %v2124
    %v2171 = vmul.f32 %v1256, %v2124
    %v2172 = vmul.f32 %v1259, %v2124
    %v2173 = vmul.f32 %v1262, %v2124
    %v2174 = vmul.f32 %v1265, %v2124
    %v2175 = vmul.f32 %v1268, %v2124
    %v2176 = vmul.f32 %v1271, %v2124
    %v2177 = vmul.f32 %v1274, %v2124
    %v2178 = vmul.f32 %v1277, %v2124
    %v2179 = vmul.f32 %v1280, %v2124
    %v2180 = vmul.f32 %v1283, %v2124
    %v2181 = vmul.f32 %v1286, %v2124
    %v2182 = vmul.f32 %v1289, %v2124
    %v2183 = vmul.f32 %v1292, %v2124
    %v2184 = vmul.f32 %v1295, %v2124
    %v2185 = vmul.f32 %v1298, %v2124
    %v2186 = vmul.f32 %v1301, %v2124
    %v2187 = vmul.f32 %v1304, %v2124
    %v2188 = vmul.f32 %v1307, %v2124
    %v2189 = vmul.f32 %v1310, %v2124
    %v2190 = vmul.f32 %v1313, %v2124
    %v2191 = vmul.f32 %v1316, %v2124
    %v2192 = vmul.f32 %v1319, %v2124
    %v2193 = vmul.f32 %v1322, %v2124
    %v2194 = vmul.f32 %v1325, %v2124
    %v2195 = vmul.f32 %v1328, %v2124
    %v2196 = vmul.f32 %v1331, %v2124
    %v2197 = vmul.f32 %v1334, %v2124
    %v2198 = vmul.f32 %v1337, %v2124
    %v2199 = vmul.f32 %v1340, %v2124
    %v2200 = vmul.f32 %v1343, %v2124
    %v2201 = vmul.f32 %v1346, %v2124
    %v2202 = vmul.f32 %v1349, %v2124
    %v2203 = vmul.f32 %v1352, %v2124
    %v2204 = vmul.f32 %v1355, %v2124
    %v2205 = vmul.f32 %v1358, %v2124
    %v2206 = vmul.f32 %v1361, %v2124
    %v2207 = vmul.f32 %v1364, %v2124
    %v2208 = vmul.f32 %v1367, %v2124
    %v2209 = vmul.f32 %v1370, %v2124
    %v2210 = vmul.f32 %v1373, %v2124
    %v2211 = vmul.f32 %v1376, %v2124
    %v2212 = vmul.f32 %v1379, %v2124
    %v2213 = vmul.f32 %v1382, %v2124
    %v2214 = vmul.f32 %v1385, %v2124
    %v2215 = vmul.f32 %v1388, %v2124
    %v2216 = vmul.f32 %v1391, %v2124
    %v2217 = vmul.f32 %v1394, %v2124
    %v2218 = vmul.f32 %v1397, %v2124
    %v2219 = vmul.f32 %v1400, %v2124
    %v2220 = vmul.f32 %v1403, %v2124
    %v2221 = vmul.f32 %v1406, %v2124
    %v2222 = vmul.f32 %v1409, %v2124
    %v2223 = vmul.f32 %v1412, %v2124
    %v2224 = vmul.f32 %v1415, %v2124
    %v2225 = vmul.f32 %v1418, %v2124
    %v2226 = vmul.f32 %v1421, %v2124
    %v2227 = vmul.f32 %v1424, %v2124
    %v2228 = vmul.f32 %v1427, %v2124
    %v2229 = vmul.f32 %v1430, %v2124
    %v2230 = vmul.f32 %v1433, %v2124
    %v2231 = vmul.f32 %v1436, %v2124
    %v2232 = vmul.f32 %v1439, %v2124
    %v2233 = vmul.f32 %v1442, %v2124
    %v2234 = vmul.f32 %v1445, %v2124
    %v2235 = vmul.f32 %v1448, %v2124
    %v2236 = vmul.f32 %v1451, %v2124
    %v2237 = vmul.f32 %v1454, %v2124
    %v2238 = vmul.f32 %v1457, %v2124
    %v2239 = vmul.f32 %v1460, %v2124
    %v2240 = vmul.f32 %v1463, %v2124
    %v2241 = vmul.f32 %v1466, %v2124
    %v2242 = vmul.f32 %v1469, %v2124
    %v2243 = vmul.f32 %v1472, %v2124
    %v2244 = vmul.f32 %v1475, %v2124
    %v2245 = vmul.f32 %v1478, %v2124
    %v2246 = vmul.f32 %v1481, %v2124
    %v2247 = vmul.f32 %v1484, %v2124
    %v2248 = vmul.f32 %v1487, %v2124
    %v2249 = vmul.f32 %v1490, %v2124
    %v2250 = vmul.f32 %v1493, %v2124
    %v2251 = vmul.f32 %v1496, %v2124
    %v2252 = vmul.f32 %v1499, %v2124
    %v2253 = vmul.f32 %v1502, %v2124
    %v2254 = vmul.f32 %v1505, %v2124
    %v2255 = vmul.f32 %v1508, %v2124
    %v2256 = vmul.f32 %v1511, %v2124
    %v2257 = vmul.f32 %v1514, %v2124
    %v2258 = vmul.f32 %v1517, %v2124
    %v2259 = vmul.f32 %v1520, %v2124
    %v2260 = vmul.f32 %v1523, %v2124
    %v2261 = vmul.f32 %v1526, %v2124
    %v2262 = vmul.f32 %v1529, %v2124
    %v2263 = vmul.f32 %v1532, %v2124
    %v2264 = vmul.f32 %v1535, %v2124
    %v2265 = vmul.f32 %v1538, %v2124
    %v2266 = vmul.f32 %v1541, %v2124
    %v2267 = vmul.f32 %v1544, %v2124
    %v2268 = vmul.f32 %v1547, %v2124
    %v2269 = vmul.f32 %v1550, %v2124
    %v2270 = vmul.f32 %v1553, %v2124
    %v2271 = vmul.f32 %v1556, %v2124
    %v2272 = vmul.f32 %v1559, %v2124
    %v2273 = vmul.f32 %v1562, %v2124
    %v2274 = vmul.f32 %v1565, %v2124
    %v2275 = vmul.f32 %v1568, %v2124
    %v2276 = vmul.f32 %v1571, %v2124
    %v2277 = vmul.f32 %v1574, %v2124
    %v2278 = vmul.f32 %v1577, %v2124
    %v2279 = vmul.f32 %v1580, %v2124
    %v2280 = vmul.f32 %v1583, %v2124
    %v2281 = vmul.f32 %v1586, %v2124
    %v2282 = vmul.f32 %v1589, %v2124
    %v2283 = vmul.f32 %v1592, %v2124
    %v2284 = vmul.f32 %v1595, %v2124
    %v2285 = vmul.f32 %v1598, %v2124
    %v2286 = vmul.f32 %v1601, %v2124
    %v2287 = vmul.f32 %v1604, %v2124
    %v2288 = vmul.f32 %v1607, %v2124
    %v2289 = vmul.f32 %v1610, %v2124
    %v2290 = vmul.f32 %v1613, %v2124
    %v2291 = vmul.f32 %v1616, %v2124
    %v2292 = vmul.f32 %v1619, %v2124
    %v2293 = vmul.f32 %v1622, %v2124
    %v2294 = vmul.f32 %v1625, %v2124
    %v2295 = vmul.f32 %v1628, %v2124
    %v2296 = vmul.f32 %v1631, %v2124
    %v2297 = vmul.f32 %v1634, %v2124
    %v2298 = vmul.f32 %v1637, %v2124
    %v2299 = vmul.f32 %v1640, %v2124
    %v2300 = vmul.f32 %v1643, %v2124
    %v2302 = vperm.slane %v2122, 0
    %v2304 = vadd.f32 %v2126, %v2302
    %v2305 = vadd.f32 %v2127, %v2302
    %v2306 = vadd.f32 %v2128, %v2302
    %v2307 = vadd.f32 %v2129, %v2302
    %v2308 = vadd.f32 %v2130, %v2302
    %v2309 = vadd.f32 %v2131, %v2302
    %v2310 = vadd.f32 %v2132, %v2302
    %v2311 = vadd.f32 %v2133, %v2302
    %v2312 = vadd.f32 %v2134, %v2302
    %v2313 = vadd.f32 %v2135, %v2302
    %v2314 = vadd.f32 %v2136, %v2302
    %v2315 = vadd.f32 %v2137, %v2302
    %v2316 = vadd.f32 %v2138, %v2302
    %v2317 = vadd.f32 %v2139, %v2302
    %v2318 = vadd.f32 %v2140, %v2302
    %v2319 = vadd.f32 %v2141, %v2302
    %v2320 = vadd.f32 %v2142, %v2302
    %v2321 = vadd.f32 %v2143, %v2302
    %v2322 = vadd.f32 %v2144, %v2302
    %v2323 = vadd.f32 %v2145, %v2302
    %v2324 = vadd.f32 %v2146, %v2302
    %v2325 = vadd.f32 %v2147, %v2302
    %v2326 = vadd.f32 %v2148, %v2302
    %v2327 = vadd.f32 %v2149, %v2302
    %v2328 = vadd.f32 %v2150, %v2302
    %v2329 = vadd.f32 %v2151, %v2302
    %v2330 = vadd.f32 %v2152, %v2302
    %v2331 = vadd.f32 %v2153, %v2302
    %v2332 = vadd.f32 %v2154, %v2302
    %v2333 = vadd.f32 %v2155, %v2302
    %v2334 = vadd.f32 %v2156, %v2302
    %v2335 = vadd.f32 %v2157, %v2302
    %v2336 = vadd.f32 %v2158, %v2302
    %v2337 = vadd.f32 %v2159, %v2302
    %v2338 = vadd.f32 %v2160, %v2302
    %v2339 = vadd.f32 %v2161, %v2302
    %v2340 = vadd.f32 %v2162, %v2302
    %v2341 = vadd.f32 %v2163, %v2302
    %v2342 = vadd.f32 %v2164, %v2302
    %v2343 = vadd.f32 %v2165, %v2302
    %v2344 = vadd.f32 %v2166, %v2302
    %v2345 = vadd.f32 %v2167, %v2302
    %v2346 = vadd.f32 %v2168, %v2302
    %v2347 = vadd.f32 %v2169, %v2302
    %v2348 = vadd.f32 %v2170, %v2302
    %v2349 = vadd.f32 %v2171, %v2302
    %v2350 = vadd.f32 %v2172, %v2302
    %v2351 = vadd.f32 %v2173, %v2302
    %v2352 = vadd.f32 %v2174, %v2302
    %v2353 = vadd.f32 %v2175, %v2302
    %v2354 = vadd.f32 %v2176, %v2302
    %v2355 = vadd.f32 %v2177, %v2302
    %v2356 = vadd.f32 %v2178, %v2302
    %v2357 = vadd.f32 %v2179, %v2302
    %v2358 = vadd.f32 %v2180, %v2302
    %v2359 = vadd.f32 %v2181, %v2302
    %v2360 = vadd.f32 %v2182, %v2302
    %v2361 = vadd.f32 %v2183, %v2302
    %v2362 = vadd.f32 %v2184, %v2302
    %v2363 = vadd.f32 %v2185, %v2302
    %v2364 = vadd.f32 %v2186, %v2302
    %v2365 = vadd.f32 %v2187, %v2302
    %v2366 = vadd.f32 %v2188, %v2302
    %v2367 = vadd.f32 %v2189, %v2302
    %v2368 = vadd.f32 %v2190, %v2302
    %v2369 = vadd.f32 %v2191, %v2302
    %v2370 = vadd.f32 %v2192, %v2302
    %v2371 = vadd.f32 %v2193, %v2302
    %v2372 = vadd.f32 %v2194, %v2302
    %v2373 = vadd.f32 %v2195, %v2302
    %v2374 = vadd.f32 %v2196, %v2302
    %v2375 = vadd.f32 %v2197, %v2302
    %v2376 = vadd.f32 %v2198, %v2302
    %v2377 = vadd.f32 %v2199, %v2302
    %v2378 = vadd.f32 %v2200, %v2302
    %v2379 = vadd.f32 %v2201, %v2302
    %v2380 = vadd.f32 %v2202, %v2302
    %v2381 = vadd.f32 %v2203, %v2302
    %v2382 = vadd.f32 %v2204, %v2302
    %v2383 = vadd.f32 %v2205, %v2302
    %v2384 = vadd.f32 %v2206, %v2302
    %v2385 = vadd.f32 %v2207, %v2302
    %v2386 = vadd.f32 %v2208, %v2302
    %v2387 = vadd.f32 %v2209, %v2302
    %v2388 = vadd.f32 %v2210, %v2302
    %v2389 = vadd.f32 %v2211, %v2302
    %v2390 = vadd.f32 %v2212, %v2302
    %v2391 = vadd.f32 %v2213, %v2302
    %v2392 = vadd.f32 %v2214, %v2302
    %v2393 = vadd.f32 %v2215, %v2302
    %v2394 = vadd.f32 %v2216, %v2302
    %v2395 = vadd.f32 %v2217, %v2302
    %v2396 = vadd.f32 %v2218, %v2302
    %v2397 = vadd.f32 %v2219, %v2302
    %v2398 = vadd.f32 %v2220, %v2302
    %v2399 = vadd.f32 %v2221, %v2302
    %v2400 = vadd.f32 %v2222, %v2302
    %v2401 = vadd.f32 %v2223, %v2302
    %v2402 = vadd.f32 %v2224, %v2302
    %v2403 = vadd.f32 %v2225, %v2302
    %v2404 = vadd.f32 %v2226, %v2302
    %v2405 = vadd.f32 %v2227, %v2302
    %v2406 = vadd.f32 %v2228, %v2302
    %v2407 = vadd.f32 %v2229, %v2302
    %v2408 = vadd.f32 %v2230, %v2302
    %v2409 = vadd.f32 %v2231, %v2302
    %v2410 = vadd.f32 %v2232, %v2302
    %v2411 = vadd.f32 %v2233, %v2302
    %v2412 = vadd.f32 %v2234, %v2302
    %v2413 = vadd.f32 %v2235, %v2302
    %v2414 = vadd.f32 %v2236, %v2302
    %v2415 = vadd.f32 %v2237, %v2302
    %v2416 = vadd.f32 %v2238, %v2302
    %v2417 = vadd.f32 %v2239, %v2302
    %v2418 = vadd.f32 %v2240, %v2302
    %v2419 = vadd.f32 %v2241, %v2302
    %v2420 = vadd.f32 %v2242, %v2302
    %v2421 = vadd.f32 %v2243, %v2302
    %v2422 = vadd.f32 %v2244, %v2302
    %v2423 = vadd.f32 %v2245, %v2302
    %v2424 = vadd.f32 %v2246, %v2302
    %v2425 = vadd.f32 %v2247, %v2302
    %v2426 = vadd.f32 %v2248, %v2302
    %v2427 = vadd.f32 %v2249, %v2302
    %v2428 = vadd.f32 %v2250, %v2302
    %v2429 = vadd.f32 %v2251, %v2302
    %v2430 = vadd.f32 %v2252, %v2302
    %v2431 = vadd.f32 %v2253, %v2302
    %v2432 = vadd.f32 %v2254, %v2302
    %v2433 = vadd.f32 %v2255, %v2302
    %v2434 = vadd.f32 %v2256, %v2302
    %v2435 = vadd.f32 %v2257, %v2302
    %v2436 = vadd.f32 %v2258, %v2302
    %v2437 = vadd.f32 %v2259, %v2302
    %v2438 = vadd.f32 %v2260, %v2302
    %v2439 = vadd.f32 %v2261, %v2302
    %v2440 = vadd.f32 %v2262, %v2302
    %v2441 = vadd.f32 %v2263, %v2302
    %v2442 = vadd.f32 %v2264, %v2302
    %v2443 = vadd.f32 %v2265, %v2302
    %v2444 = vadd.f32 %v2266, %v2302
    %v2445 = vadd.f32 %v2267, %v2302
    %v2446 = vadd.f32 %v2268, %v2302
    %v2447 = vadd.f32 %v2269, %v2302
    %v2448 = vadd.f32 %v2270, %v2302
    %v2449 = vadd.f32 %v2271, %v2302
    %v2450 = vadd.f32 %v2272, %v2302
    %v2451 = vadd.f32 %v2273, %v2302
    %v2452 = vadd.f32 %v2274, %v2302
    %v2453 = vadd.f32 %v2275, %v2302
    %v2454 = vadd.f32 %v2276, %v2302
    %v2455 = vadd.f32 %v2277, %v2302
    %v2456 = vadd.f32 %v2278, %v2302
    %v2457 = vadd.f32 %v2279, %v2302
    %v2458 = vadd.f32 %v2280, %v2302
    %v2459 = vadd.f32 %v2281, %v2302
    %v2460 = vadd.f32 %v2282, %v2302
    %v2461 = vadd.f32 %v2283, %v2302
    %v2462 = vadd.f32 %v2284, %v2302
    %v2463 = vadd.f32 %v2285, %v2302
    %v2464 = vadd.f32 %v2286, %v2302
    %v2465 = vadd.f32 %v2287, %v2302
    %v2466 = vadd.f32 %v2288, %v2302
    %v2467 = vadd.f32 %v2289, %v2302
    %v2468 = vadd.f32 %v2290, %v2302
    %v2469 = vadd.f32 %v2291, %v2302
    %v2470 = vadd.f32 %v2292, %v2302
    %v2471 = vadd.f32 %v2293, %v2302
    %v2472 = vadd.f32 %v2294, %v2302
    %v2473 = vadd.f32 %v2295, %v2302
    %v2474 = vadd.f32 %v2296, %v2302
    %v2475 = vadd.f32 %v2297, %v2302
    %v2476 = vadd.f32 %v2298, %v2302
    %v2477 = vadd.f32 %v2299, %v2302
    %v2478 = vadd.f32 %v2300, %v2302
    %v2479 = vmax.f32 %v2304, 0.0
    %v2480 = vmax.f32 %v2305, 0.0
    %v2481 = vmax.f32 %v2306, 0.0
    %v2482 = vmax.f32 %v2307, 0.0
    %v2483 = vmax.f32 %v2308, 0.0
    %v2484 = vmax.f32 %v2309, 0.0
    %v2485 = vmax.f32 %v2310, 0.0
    %v2486 = vmax.f32 %v2311, 0.0
    %v2487 = vmax.f32 %v2312, 0.0
    %v2488 = vmax.f32 %v2313, 0.0
    %v2489 = vmax.f32 %v2314, 0.0
    %v2490 = vmax.f32 %v2315, 0.0
    %v2491 = vmax.f32 %v2316, 0.0
    %v2492 = vmax.f32 %v2317, 0.0
    %v2493 = vmax.f32 %v2318, 0.0
    %v2494 = vmax.f32 %v2319, 0.0
    %v2495 = vmax.f32 %v2320, 0.0
    %v2496 = vmax.f32 %v2321, 0.0
    %v2497 = vmax.f32 %v2322, 0.0
    %v2498 = vmax.f32 %v2323, 0.0
    %v2499 = vmax.f32 %v2324, 0.0
    %v2500 = vmax.f32 %v2325, 0.0
    %v2501 = vmax.f32 %v2326, 0.0
    %v2502 = vmax.f32 %v2327, 0.0
    %v2503 = vmax.f32 %v2328, 0.0
    %v2504 = vmax.f32 %v2329, 0.0
    %v2505 = vmax.f32 %v2330, 0.0
    %v2506 = vmax.f32 %v2331, 0.0
    %v2507 = vmax.f32 %v2332, 0.0
    %v2508 = vmax.f32 %v2333, 0.0
    %v2509 = vmax.f32 %v2334, 0.0
    %v2510 = vmax.f32 %v2335, 0.0
    %v2511 = vmax.f32 %v2336, 0.0
    %v2512 = vmax.f32 %v2337, 0.0
    %v2513 = vmax.f32 %v2338, 0.0
    %v2514 = vmax.f32 %v2339, 0.0
    %v2515 = vmax.f32 %v2340, 0.0
    %v2516 = vmax.f32 %v2341, 0.0
    %v2517 = vmax.f32 %v2342, 0.0
    %v2518 = vmax.f32 %v2343, 0.0
    %v2519 = vmax.f32 %v2344, 0.0
    %v2520 = vmax.f32 %v2345, 0.0
    %v2521 = vmax.f32 %v2346, 0.0
    %v2522 = vmax.f32 %v2347, 0.0
    %v2523 = vmax.f32 %v2348, 0.0
    %v2524 = vmax.f32 %v2349, 0.0
    %v2525 = vmax.f32 %v2350, 0.0
    %v2526 = vmax.f32 %v2351, 0.0
    %v2527 = vmax.f32 %v2352, 0.0
    %v2528 = vmax.f32 %v2353, 0.0
    %v2529 = vmax.f32 %v2354, 0.0
    %v2530 = vmax.f32 %v2355, 0.0
    %v2531 = vmax.f32 %v2356, 0.0
    %v2532 = vmax.f32 %v2357, 0.0
    %v2533 = vmax.f32 %v2358, 0.0
    %v2534 = vmax.f32 %v2359, 0.0
    %v2535 = vmax.f32 %v2360, 0.0
    %v2536 = vmax.f32 %v2361, 0.0
    %v2537 = vmax.f32 %v2362, 0.0
    %v2538 = vmax.f32 %v2363, 0.0
    %v2539 = vmax.f32 %v2364, 0.0
    %v2540 = vmax.f32 %v2365, 0.0
    %v2541 = vmax.f32 %v2366, 0.0
    %v2542 = vmax.f32 %v2367, 0.0
    %v2543 = vmax.f32 %v2368, 0.0
    %v2544 = vmax.f32 %v2369, 0.0
    %v2545 = vmax.f32 %v2370, 0.0
    %v2546 = vmax.f32 %v2371, 0.0
    %v2547 = vmax.f32 %v2372, 0.0
    %v2548 = vmax.f32 %v2373, 0.0
    %v2549 = vmax.f32 %v2374, 0.0
    %v2550 = vmax.f32 %v2375, 0.0
    %v2551 = vmax.f32 %v2376, 0.0
    %v2552 = vmax.f32 %v2377, 0.0
    %v2553 = vmax.f32 %v2378, 0.0
    %v2554 = vmax.f32 %v2379, 0.0
    %v2555 = vmax.f32 %v2380, 0.0
    %v2556 = vmax.f32 %v2381, 0.0
    %v2557 = vmax.f32 %v2382, 0.0
    %v2558 = vmax.f32 %v2383, 0.0
    %v2559 = vmax.f32 %v2384, 0.0
    %v2560 = vmax.f32 %v2385, 0.0
    %v2561 = vmax.f32 %v2386, 0.0
    %v2562 = vmax.f32 %v2387, 0.0
    %v2563 = vmax.f32 %v2388, 0.0
    %v2564 = vmax.f32 %v2389, 0.0
    %v2565 = vmax.f32 %v2390, 0.0
    %v2566 = vmax.f32 %v2391, 0.0
    %v2567 = vmax.f32 %v2392, 0.0
    %v2568 = vmax.f32 %v2393, 0.0
    %v2569 = vmax.f32 %v2394, 0.0
    %v2570 = vmax.f32 %v2395, 0.0
    %v2571 = vmax.f32 %v2396, 0.0
    %v2572 = vmax.f32 %v2397, 0.0
    %v2573 = vmax.f32 %v2398, 0.0
    %v2574 = vmax.f32 %v2399, 0.0
    %v2575 = vmax.f32 %v2400, 0.0
    %v2576 = vmax.f32 %v2401, 0.0
    %v2577 = vmax.f32 %v2402, 0.0
    %v2578 = vmax.f32 %v2403, 0.0
    %v2579 = vmax.f32 %v2404, 0.0
    %v2580 = vmax.f32 %v2405, 0.0
    %v2581 = vmax.f32 %v2406, 0.0
    %v2582 = vmax.f32 %v2407, 0.0
    %v2583 = vmax.f32 %v2408, 0.0
    %v2584 = vmax.f32 %v2409, 0.0
    %v2585 = vmax.f32 %v2410, 0.0
    %v2586 = vmax.f32 %v2411, 0.0
    %v2587 = vmax.f32 %v2412, 0.0
    %v2588 = vmax.f32 %v2413, 0.0
    %v2589 = vmax.f32 %v2414, 0.0
    %v2590 = vmax.f32 %v2415, 0.0
    %v2591 = vmax.f32 %v2416, 0.0
    %v2592 = vmax.f32 %v2417, 0.0
    %v2593 = vmax.f32 %v2418, 0.0
    %v2594 = vmax.f32 %v2419, 0.0
    %v2595 = vmax.f32 %v2420, 0.0
    %v2596 = vmax.f32 %v2421, 0.0
    %v2597 = vmax.f32 %v2422, 0.0
    %v2598 = vmax.f32 %v2423, 0.0
    %v2599 = vmax.f32 %v2424, 0.0
    %v2600 = vmax.f32 %v2425, 0.0
    %v2601 = vmax.f32 %v2426, 0.0
    %v2602 = vmax.f32 %v2427, 0.0
    %v2603 = vmax.f32 %v2428, 0.0
    %v2604 = vmax.f32 %v2429, 0.0
    %v2605 = vmax.f32 %v2430, 0.0
    %v2606 = vmax.f32 %v2431, 0.0
    %v2607 = vmax.f32 %v2432, 0.0
    %v2608 = vmax.f32 %v2433, 0.0
    %v2609 = vmax.f32 %v2434, 0.0
    %v2610 = vmax.f32 %v2435, 0.0
    %v2611 = vmax.f32 %v2436, 0.0
    %v2612 = vmax.f32 %v2437, 0.0
    %v2613 = vmax.f32 %v2438, 0.0
    %v2614 = vmax.f32 %v2439, 0.0
    %v2615 = vmax.f32 %v2440, 0.0
    %v2616 = vmax.f32 %v2441, 0.0
    %v2617 = vmax.f32 %v2442, 0.0
    %v2618 = vmax.f32 %v2443, 0.0
    %v2619 = vmax.f32 %v2444, 0.0
    %v2620 = vmax.f32 %v2445, 0.0
    %v2621 = vmax.f32 %v2446, 0.0
    %v2622 = vmax.f32 %v2447, 0.0
    %v2623 = vmax.f32 %v2448, 0.0
    %v2624 = vmax.f32 %v2449, 0.0
    %v2625 = vmax.f32 %v2450, 0.0
    %v2626 = vmax.f32 %v2451, 0.0
    %v2627 = vmax.f32 %v2452, 0.0
    %v2628 = vmax.f32 %v2453, 0.0
    %v2629 = vmax.f32 %v2454, 0.0
    %v2630 = vmax.f32 %v2455, 0.0
    %v2631 = vmax.f32 %v2456, 0.0
    %v2632 = vmax.f32 %v2457, 0.0
    %v2633 = vmax.f32 %v2458, 0.0
    %v2634 = vmax.f32 %v2459, 0.0
    %v2635 = vmax.f32 %v2460, 0.0
    %v2636 = vmax.f32 %v2461, 0.0
    %v2637 = vmax.f32 %v2462, 0.0
    %v2638 = vmax.f32 %v2463, 0.0
    %v2639 = vmax.f32 %v2464, 0.0
    %v2640 = vmax.f32 %v2465, 0.0
    %v2641 = vmax.f32 %v2466, 0.0
    %v2642 = vmax.f32 %v2467, 0.0
    %v2643 = vmax.f32 %v2468, 0.0
    %v2644 = vmax.f32 %v2469, 0.0
    %v2645 = vmax.f32 %v2470, 0.0
    %v2646 = vmax.f32 %v2471, 0.0
    %v2647 = vmax.f32 %v2472, 0.0
    %v2648 = vmax.f32 %v2473, 0.0
    %v2649 = vmax.f32 %v2474, 0.0
    %v2650 = vmax.f32 %v2475, 0.0
    %v2651 = vmax.f32 %v2476, 0.0
    %v2652 = vmax.f32 %v2477, 0.0
    %v2653 = vmax.f32 %v2478, 0.0
    %v2654 = vld [vmem:[%s2] sm:$0xff]
    %v2655 = vld [vmem:[%s2 + $0x8] sm:$0xff]
    %s2656 = scalar_lea.vmem %s2, 16
    %v2657 = vld [vmem:[%s2656] sm:$0xff]
    %v2658 = vld [vmem:[%s2656 + $0x8] sm:$0xff]
    %v2660 = vsel %vm1942, %v2486, 0
    %v2663 = vsel %vm1942, %v2487, 0
    %v2666 = vsel %vm1942, %v2488, 0
    %v2669 = vsel %vm1942, %v2489, 0
    %v2672 = vsel %vm1942, %v2490, 0
    %v2675 = vsel %vm1942, %v2491, 0
    %v2678 = vsel %vm1942, %v2492, 0
    %2680 = vmatpush.msra.mxu0 0.0
    %2681 = vmatpush.msra.mxu0 0.0
    %2682 = vmatpush.msra.mxu0 0.0
    %2683 = vmatpush.msra.mxu0 0.0
    %2684 = vmatpush.msra.mxu0 0.0
    %2685 = vmatpush.msra.mxu0 0.0
    %2686 = vmatpush.msra.mxu0 0.0
    %2687 = vmatpush.msra.mxu0 0.0
    %2688 = vmatpush.msra.mxu0 0.0
    %2689 = vmatpush.msra.mxu0 0.0
    %2690 = vmatpush.msra.mxu0 0.0
    %2691 = vmatpush.msra.mxu0 0.0
    %2692 = vmatpush.msra.mxu0 0.0
    %2693 = vmatpush.msra.mxu0 0.0
    %2694 = vmatpush.msra.mxu0 %v2658
    %2695 = vmatpush.msra.mxu0 %v2657
    %2696 = vmatmul.f32.gmra.mxu0 %v2660
    %v2697 = vpop.f32.mrf.mxu0
    %v2698 = vadd.f32 0.0, %v2697
    %2699 = vmatmul.f32.gmra.mxu0 %v2663
    %v2700 = vpop.f32.mrf.mxu0
    %v2701 = vadd.f32 0.0, %v2700
    %2702 = vmatmul.f32.gmra.mxu0 %v2666
    %v2703 = vpop.f32.mrf.mxu0
    %v2704 = vadd.f32 0.0, %v2703
    %2705 = vmatmul.f32.gmra.mxu0 %v2669
    %v2706 = vpop.f32.mrf.mxu0
    %v2707 = vadd.f32 0.0, %v2706
    %2708 = vmatmul.f32.gmra.mxu0 %v2672
    %v2709 = vpop.f32.mrf.mxu0
    %v2710 = vadd.f32 0.0, %v2709
    %2711 = vmatmul.f32.gmra.mxu0 %v2675
    %v2712 = vpop.f32.mrf.mxu0
    %v2713 = vadd.f32 0.0, %v2712
    %2714 = vmatmul.f32.gmra.mxu0 %v2678
    %v2715 = vpop.f32.mrf.mxu0
    %v2716 = vadd.f32 0.0, %v2715
    %2717 = vdwg.mxu0
    %v2719 = vsel %vm1942, %v2479, 0
    %v2722 = vsel %vm1942, %v2480, 0
    %v2725 = vsel %vm1942, %v2481, 0
    %v2728 = vsel %vm1942, %v2482, 0
    %v2731 = vsel %vm1942, %v2483, 0
    %v2734 = vsel %vm1942, %v2484, 0
    %v2737 = vsel %vm1942, %v2485, 0
    %2739 = vmatpush.msra.mxu0 0.0
    %2740 = vmatpush.msra.mxu0 0.0
    %2741 = vmatpush.msra.mxu0 0.0
    %2742 = vmatpush.msra.mxu0 0.0
    %2743 = vmatpush.msra.mxu0 0.0
    %2744 = vmatpush.msra.mxu0 0.0
    %2745 = vmatpush.msra.mxu0 0.0
    %2746 = vmatpush.msra.mxu0 0.0
    %2747 = vmatpush.msra.mxu0 0.0
    %2748 = vmatpush.msra.mxu0 0.0
    %2749 = vmatpush.msra.mxu0 0.0
    %2750 = vmatpush.msra.mxu0 0.0
    %2751 = vmatpush.msra.mxu0 0.0
    %2752 = vmatpush.msra.mxu0 0.0
    %2753 = vmatpush.msra.mxu0 %v2655
    %2754 = vmatpush.msra.mxu0 %v2654
    %2755 = vmatmul.f32.gmra.mxu0 %v2719
    %v2756 = vpop.f32.mrf.mxu0
    %v2757 = vadd.f32 %v2698, %v2756
    %2758 = vmatmul.f32.gmra.mxu0 %v2722
    %v2759 = vpop.f32.mrf.mxu0
    %v2760 = vadd.f32 %v2701, %v2759
    %2761 = vmatmul.f32.gmra.mxu0 %v2725
    %v2762 = vpop.f32.mrf.mxu0
    %v2763 = vadd.f32 %v2704, %v2762
    %2764 = vmatmul.f32.gmra.mxu0 %v2728
    %v2765 = vpop.f32.mrf.mxu0
    %v2766 = vadd.f32 %v2707, %v2765
    %2767 = vmatmul.f32.gmra.mxu0 %v2731
    %v2768 = vpop.f32.mrf.mxu0
    %v2769 = vadd.f32 %v2710, %v2768
    %2770 = vmatmul.f32.gmra.mxu0 %v2734
    %v2771 = vpop.f32.mrf.mxu0
    %v2772 = vadd.f32 %v2713, %v2771
    %2773 = vmatmul.f32.gmra.mxu0 %v2737
    %v2774 = vpop.f32.mrf.mxu0
    %v2775 = vadd.f32 %v2716, %v2774
    %2776 = vdwg.mxu0
    %s2777 = scalar_lea.vmem %s2, 32
    %v2778 = vld [vmem:[%s2777] sm:$0xff]
    %v2779 = vld [vmem:[%s2777 + $0x8] sm:$0xff]
    %v2781 = vsel %vm1942, %v2493, 0
    %v2784 = vsel %vm1942, %v2494, 0
    %v2787 = vsel %vm1942, %v2495, 0
    %v2790 = vsel %vm1942, %v2496, 0
    %v2793 = vsel %vm1942, %v2497, 0
    %v2796 = vsel %vm1942, %v2498, 0
    %v2799 = vsel %vm1942, %v2499, 0
    %2801 = vmatpush.msra.mxu0 0.0
    %2802 = vmatpush.msra.mxu0 0.0
    %2803 = vmatpush.msra.mxu0 0.0
    %2804 = vmatpush.msra.mxu0 0.0
    %2805 = vmatpush.msra.mxu0 0.0
    %2806 = vmatpush.msra.mxu0 0.0
    %2807 = vmatpush.msra.mxu0 0.0
    %2808 = vmatpush.msra.mxu0 0.0
    %2809 = vmatpush.msra.mxu0 0.0
    %2810 = vmatpush.msra.mxu0 0.0
    %2811 = vmatpush.msra.mxu0 0.0
    %2812 = vmatpush.msra.mxu0 0.0
    %2813 = vmatpush.msra.mxu0 0.0
    %2814 = vmatpush.msra.mxu0 0.0
    %2815 = vmatpush.msra.mxu0 %v2779
    %2816 = vmatpush.msra.mxu0 %v2778
    %2817 = vmatmul.f32.gmra.mxu0 %v2781
    %v2818 = vpop.f32.mrf.mxu0
    %v2819 = vadd.f32 0.0, %v2818
    %2820 = vmatmul.f32.gmra.mxu0 %v2784
    %v2821 = vpop.f32.mrf.mxu0
    %v2822 = vadd.f32 0.0, %v2821
    %2823 = vmatmul.f32.gmra.mxu0 %v2787
    %v2824 = vpop.f32.mrf.mxu0
    %v2825 = vadd.f32 0.0, %v2824
    %2826 = vmatmul.f32.gmra.mxu0 %v2790
    %v2827 = vpop.f32.mrf.mxu0
    %v2828 = vadd.f32 0.0, %v2827
    %2829 = vmatmul.f32.gmra.mxu0 %v2793
    %v2830 = vpop.f32.mrf.mxu0
    %v2831 = vadd.f32 0.0, %v2830
    %2832 = vmatmul.f32.gmra.mxu0 %v2796
    %v2833 = vpop.f32.mrf.mxu0
    %v2834 = vadd.f32 0.0, %v2833
    %2835 = vmatmul.f32.gmra.mxu0 %v2799
    %v2836 = vpop.f32.mrf.mxu0
    %v2837 = vadd.f32 0.0, %v2836
    %2838 = vdwg.mxu0
    %v2839 = vadd.f32 %v2757, %v2819
    %v2840 = vadd.f32 %v2760, %v2822
    %v2841 = vadd.f32 %v2763, %v2825
    %v2842 = vadd.f32 %v2766, %v2828
    %v2843 = vadd.f32 %v2769, %v2831
    %v2844 = vadd.f32 %v2772, %v2834
    %v2845 = vadd.f32 %v2775, %v2837
    %s2846 = scalar_lea.vmem %s2, 48
    %v2847 = vld [vmem:[%s2846] sm:$0xff]
    %v2848 = vld [vmem:[%s2846 + $0x8] sm:$0xff]
    %v2850 = vsel %vm1942, %v2500, 0
    %v2853 = vsel %vm1942, %v2501, 0
    %v2856 = vsel %vm1942, %v2502, 0
    %v2859 = vsel %vm1942, %v2503, 0
    %v2862 = vsel %vm1942, %v2504, 0
    %v2865 = vsel %vm1942, %v2505, 0
    %v2868 = vsel %vm1942, %v2506, 0
    %2870 = vmatpush.msra.mxu0 0.0
    %2871 = vmatpush.msra.mxu0 0.0
    %2872 = vmatpush.msra.mxu0 0.0
    %2873 = vmatpush.msra.mxu0 0.0
    %2874 = vmatpush.msra.mxu0 0.0
    %2875 = vmatpush.msra.mxu0 0.0
    %2876 = vmatpush.msra.mxu0 0.0
    %2877 = vmatpush.msra.mxu0 0.0
    %2878 = vmatpush.msra.mxu0 0.0
    %2879 = vmatpush.msra.mxu0 0.0
    %2880 = vmatpush.msra.mxu0 0.0
    %2881 = vmatpush.msra.mxu0 0.0
    %2882 = vmatpush.msra.mxu0 0.0
    %2883 = vmatpush.msra.mxu0 0.0
    %2884 = vmatpush.msra.mxu0 %v2848
    %2885 = vmatpush.msra.mxu0 %v2847
    %2886 = vmatmul.f32.gmra.mxu0 %v2850
    %v2887 = vpop.f32.mrf.mxu0
    %v2888 = vadd.f32 0.0, %v2887
    %2889 = vmatmul.f32.gmra.mxu0 %v2853
    %v2890 = vpop.f32.mrf.mxu0
    %v2891 = vadd.f32 0.0, %v2890
    %2892 = vmatmul.f32.gmra.mxu0 %v2856
    %v2893 = vpop.f32.mrf.mxu0
    %v2894 = vadd.f32 0.0, %v2893
    %2895 = vmatmul.f32.gmra.mxu0 %v2859
    %v2896 = vpop.f32.mrf.mxu0
    %v2897 = vadd.f32 0.0, %v2896
    %2898 = vmatmul.f32.gmra.mxu0 %v2862
    %v2899 = vpop.f32.mrf.mxu0
    %v2900 = vadd.f32 0.0, %v2899
    %2901 = vmatmul.f32.gmra.mxu0 %v2865
    %v2902 = vpop.f32.mrf.mxu0
    %v2903 = vadd.f32 0.0, %v2902
    %2904 = vmatmul.f32.gmra.mxu0 %v2868
    %v2905 = vpop.f32.mrf.mxu0
    %v2906 = vadd.f32 0.0, %v2905
    %2907 = vdwg.mxu0
    %v2908 = vadd.f32 %v2839, %v2888
    %v2909 = vadd.f32 %v2840, %v2891
    %v2910 = vadd.f32 %v2841, %v2894
    %v2911 = vadd.f32 %v2842, %v2897
    %v2912 = vadd.f32 %v2843, %v2900
    %v2913 = vadd.f32 %v2844, %v2903
    %v2914 = vadd.f32 %v2845, %v2906
    %s2915 = scalar_lea.vmem %s2, 64
    %v2916 = vld [vmem:[%s2915] sm:$0xff]
    %v2917 = vld [vmem:[%s2915 + $0x8] sm:$0xff]
    %v2919 = vsel %vm1942, %v2507, 0
    %v2922 = vsel %vm1942, %v2508, 0
    %v2925 = vsel %vm1942, %v2509, 0
    %v2928 = vsel %vm1942, %v2510, 0
    %v2931 = vsel %vm1942, %v2511, 0
    %v2934 = vsel %vm1942, %v2512, 0
    %v2937 = vsel %vm1942, %v2513, 0
    %2939 = vmatpush.msra.mxu0 0.0
    %2940 = vmatpush.msra.mxu0 0.0
    %2941 = vmatpush.msra.mxu0 0.0
    %2942 = vmatpush.msra.mxu0 0.0
    %2943 = vmatpush.msra.mxu0 0.0
    %2944 = vmatpush.msra.mxu0 0.0
    %2945 = vmatpush.msra.mxu0 0.0
    %2946 = vmatpush.msra.mxu0 0.0
    %2947 = vmatpush.msra.mxu0 0.0
    %2948 = vmatpush.msra.mxu0 0.0
    %2949 = vmatpush.msra.mxu0 0.0
    %2950 = vmatpush.msra.mxu0 0.0
    %2951 = vmatpush.msra.mxu0 0.0
    %2952 = vmatpush.msra.mxu0 0.0
    %2953 = vmatpush.msra.mxu0 %v2917
    %2954 = vmatpush.msra.mxu0 %v2916
    %2955 = vmatmul.f32.gmra.mxu0 %v2919
    %v2956 = vpop.f32.mrf.mxu0
    %v2957 = vadd.f32 0.0, %v2956
    %2958 = vmatmul.f32.gmra.mxu0 %v2922
    %v2959 = vpop.f32.mrf.mxu0
    %v2960 = vadd.f32 0.0, %v2959
    %2961 = vmatmul.f32.gmra.mxu0 %v2925
    %v2962 = vpop.f32.mrf.mxu0
    %v2963 = vadd.f32 0.0, %v2962
    %2964 = vmatmul.f32.gmra.mxu0 %v2928
    %v2965 = vpop.f32.mrf.mxu0
    %v2966 = vadd.f32 0.0, %v2965
    %2967 = vmatmul.f32.gmra.mxu0 %v2931
    %v2968 = vpop.f32.mrf.mxu0
    %v2969 = vadd.f32 0.0, %v2968
    %2970 = vmatmul.f32.gmra.mxu0 %v2934
    %v2971 = vpop.f32.mrf.mxu0
    %v2972 = vadd.f32 0.0, %v2971
    %2973 = vmatmul.f32.gmra.mxu0 %v2937
    %v2974 = vpop.f32.mrf.mxu0
    %v2975 = vadd.f32 0.0, %v2974
    %2976 = vdwg.mxu0
    %v2977 = vadd.f32 %v2908, %v2957
    %v2978 = vadd.f32 %v2909, %v2960
    %v2979 = vadd.f32 %v2910, %v2963
    %v2980 = vadd.f32 %v2911, %v2966
    %v2981 = vadd.f32 %v2912, %v2969
    %v2982 = vadd.f32 %v2913, %v2972
    %v2983 = vadd.f32 %v2914, %v2975
    %s2984 = scalar_lea.vmem %s2, 80
    %v2985 = vld [vmem:[%s2984] sm:$0xff]
    %v2986 = vld [vmem:[%s2984 + $0x8] sm:$0xff]
    %v2988 = vsel %vm1942, %v2514, 0
    %v2991 = vsel %vm1942, %v2515, 0
    %v2994 = vsel %vm1942, %v2516, 0
    %v2997 = vsel %vm1942, %v2517, 0
    %v3000 = vsel %vm1942, %v2518, 0
    %v3003 = vsel %vm1942, %v2519, 0
    %v3006 = vsel %vm1942, %v2520, 0
    %3008 = vmatpush.msra.mxu0 0.0
    %3009 = vmatpush.msra.mxu0 0.0
    %3010 = vmatpush.msra.mxu0 0.0
    %3011 = vmatpush.msra.mxu0 0.0
    %3012 = vmatpush.msra.mxu0 0.0
    %3013 = vmatpush.msra.mxu0 0.0
    %3014 = vmatpush.msra.mxu0 0.0
    %3015 = vmatpush.msra.mxu0 0.0
    %3016 = vmatpush.msra.mxu0 0.0
    %3017 = vmatpush.msra.mxu0 0.0
    %3018 = vmatpush.msra.mxu0 0.0
    %3019 = vmatpush.msra.mxu0 0.0
    %3020 = vmatpush.msra.mxu0 0.0
    %3021 = vmatpush.msra.mxu0 0.0
    %3022 = vmatpush.msra.mxu0 %v2986
    %3023 = vmatpush.msra.mxu0 %v2985
    %3024 = vmatmul.f32.gmra.mxu0 %v2988
    %v3025 = vpop.f32.mrf.mxu0
    %v3026 = vadd.f32 0.0, %v3025
    %3027 = vmatmul.f32.gmra.mxu0 %v2991
    %v3028 = vpop.f32.mrf.mxu0
    %v3029 = vadd.f32 0.0, %v3028
    %3030 = vmatmul.f32.gmra.mxu0 %v2994
    %v3031 = vpop.f32.mrf.mxu0
    %v3032 = vadd.f32 0.0, %v3031
    %3033 = vmatmul.f32.gmra.mxu0 %v2997
    %v3034 = vpop.f32.mrf.mxu0
    %v3035 = vadd.f32 0.0, %v3034
    %3036 = vmatmul.f32.gmra.mxu0 %v3000
    %v3037 = vpop.f32.mrf.mxu0
    %v3038 = vadd.f32 0.0, %v3037
    %3039 = vmatmul.f32.gmra.mxu0 %v3003
    %v3040 = vpop.f32.mrf.mxu0
    %v3041 = vadd.f32 0.0, %v3040
    %3042 = vmatmul.f32.gmra.mxu0 %v3006
    %v3043 = vpop.f32.mrf.mxu0
    %v3044 = vadd.f32 0.0, %v3043
    %3045 = vdwg.mxu0
    %v3046 = vadd.f32 %v2977, %v3026
    %v3047 = vadd.f32 %v2978, %v3029
    %v3048 = vadd.f32 %v2979, %v3032
    %v3049 = vadd.f32 %v2980, %v3035
    %v3050 = vadd.f32 %v2981, %v3038
    %v3051 = vadd.f32 %v2982, %v3041
    %v3052 = vadd.f32 %v2983, %v3044
    %s3053 = scalar_lea.vmem %s2, 96
    %v3054 = vld [vmem:[%s3053] sm:$0xff]
    %v3055 = vld [vmem:[%s3053 + $0x8] sm:$0xff]
    %v3057 = vsel %vm1942, %v2521, 0
    %v3060 = vsel %vm1942, %v2522, 0
    %v3063 = vsel %vm1942, %v2523, 0
    %v3066 = vsel %vm1942, %v2524, 0
    %v3069 = vsel %vm1942, %v2525, 0
    %v3072 = vsel %vm1942, %v2526, 0
    %v3075 = vsel %vm1942, %v2527, 0
    %3077 = vmatpush.msra.mxu0 0.0
    %3078 = vmatpush.msra.mxu0 0.0
    %3079 = vmatpush.msra.mxu0 0.0
    %3080 = vmatpush.msra.mxu0 0.0
    %3081 = vmatpush.msra.mxu0 0.0
    %3082 = vmatpush.msra.mxu0 0.0
    %3083 = vmatpush.msra.mxu0 0.0
    %3084 = vmatpush.msra.mxu0 0.0
    %3085 = vmatpush.msra.mxu0 0.0
    %3086 = vmatpush.msra.mxu0 0.0
    %3087 = vmatpush.msra.mxu0 0.0
    %3088 = vmatpush.msra.mxu0 0.0
    %3089 = vmatpush.msra.mxu0 0.0
    %3090 = vmatpush.msra.mxu0 0.0
    %3091 = vmatpush.msra.mxu0 %v3055
    %3092 = vmatpush.msra.mxu0 %v3054
    %3093 = vmatmul.f32.gmra.mxu0 %v3057
    %v3094 = vpop.f32.mrf.mxu0
    %v3095 = vadd.f32 0.0, %v3094
    %3096 = vmatmul.f32.gmra.mxu0 %v3060
    %v3097 = vpop.f32.mrf.mxu0
    %v3098 = vadd.f32 0.0, %v3097
    %3099 = vmatmul.f32.gmra.mxu0 %v3063
    %v3100 = vpop.f32.mrf.mxu0
    %v3101 = vadd.f32 0.0, %v3100
    %3102 = vmatmul.f32.gmra.mxu0 %v3066
    %v3103 = vpop.f32.mrf.mxu0
    %v3104 = vadd.f32 0.0, %v3103
    %3105 = vmatmul.f32.gmra.mxu0 %v3069
    %v3106 = vpop.f32.mrf.mxu0
    %v3107 = vadd.f32 0.0, %v3106
    %3108 = vmatmul.f32.gmra.mxu0 %v3072
    %v3109 = vpop.f32.mrf.mxu0
    %v3110 = vadd.f32 0.0, %v3109
    %3111 = vmatmul.f32.gmra.mxu0 %v3075
    %v3112 = vpop.f32.mrf.mxu0
    %v3113 = vadd.f32 0.0, %v3112
    %3114 = vdwg.mxu0
    %v3115 = vadd.f32 %v3046, %v3095
    %v3116 = vadd.f32 %v3047, %v3098
    %v3117 = vadd.f32 %v3048, %v3101
    %v3118 = vadd.f32 %v3049, %v3104
    %v3119 = vadd.f32 %v3050, %v3107
    %v3120 = vadd.f32 %v3051, %v3110
    %v3121 = vadd.f32 %v3052, %v3113
    %s3122 = scalar_lea.vmem %s2, 112
    %v3123 = vld [vmem:[%s3122] sm:$0xff]
    %v3124 = vld [vmem:[%s3122 + $0x8] sm:$0xff]
    %v3126 = vsel %vm1942, %v2528, 0
    %v3129 = vsel %vm1942, %v2529, 0
    %v3132 = vsel %vm1942, %v2530, 0
    %v3135 = vsel %vm1942, %v2531, 0
    %v3138 = vsel %vm1942, %v2532, 0
    %v3141 = vsel %vm1942, %v2533, 0
    %v3144 = vsel %vm1942, %v2534, 0
    %3146 = vmatpush.msra.mxu0 0.0
    %3147 = vmatpush.msra.mxu0 0.0
    %3148 = vmatpush.msra.mxu0 0.0
    %3149 = vmatpush.msra.mxu0 0.0
    %3150 = vmatpush.msra.mxu0 0.0
    %3151 = vmatpush.msra.mxu0 0.0
    %3152 = vmatpush.msra.mxu0 0.0
    %3153 = vmatpush.msra.mxu0 0.0
    %3154 = vmatpush.msra.mxu0 0.0
    %3155 = vmatpush.msra.mxu0 0.0
    %3156 = vmatpush.msra.mxu0 0.0
    %3157 = vmatpush.msra.mxu0 0.0
    %3158 = vmatpush.msra.mxu0 0.0
    %3159 = vmatpush.msra.mxu0 0.0
    %3160 = vmatpush.msra.mxu0 %v3124
    %3161 = vmatpush.msra.mxu0 %v3123
    %3162 = vmatmul.f32.gmra.mxu0 %v3126
    %v3163 = vpop.f32.mrf.mxu0
    %v3164 = vadd.f32 0.0, %v3163
    %3165 = vmatmul.f32.gmra.mxu0 %v3129
    %v3166 = vpop.f32.mrf.mxu0
    %v3167 = vadd.f32 0.0, %v3166
    %3168 = vmatmul.f32.gmra.mxu0 %v3132
    %v3169 = vpop.f32.mrf.mxu0
    %v3170 = vadd.f32 0.0, %v3169
    %3171 = vmatmul.f32.gmra.mxu0 %v3135
    %v3172 = vpop.f32.mrf.mxu0
    %v3173 = vadd.f32 0.0, %v3172
    %3174 = vmatmul.f32.gmra.mxu0 %v3138
    %v3175 = vpop.f32.mrf.mxu0
    %v3176 = vadd.f32 0.0, %v3175
    %3177 = vmatmul.f32.gmra.mxu0 %v3141
    %v3178 = vpop.f32.mrf.mxu0
    %v3179 = vadd.f32 0.0, %v3178
    %3180 = vmatmul.f32.gmra.mxu0 %v3144
    %v3181 = vpop.f32.mrf.mxu0
    %v3182 = vadd.f32 0.0, %v3181
    %3183 = vdwg.mxu0
    %v3184 = vadd.f32 %v3115, %v3164
    %v3185 = vadd.f32 %v3116, %v3167
    %v3186 = vadd.f32 %v3117, %v3170
    %v3187 = vadd.f32 %v3118, %v3173
    %v3188 = vadd.f32 %v3119, %v3176
    %v3189 = vadd.f32 %v3120, %v3179
    %v3190 = vadd.f32 %v3121, %v3182
    %s3191 = scalar_lea.vmem %s2, 128
    %v3192 = vld [vmem:[%s3191] sm:$0xff]
    %v3193 = vld [vmem:[%s3191 + $0x8] sm:$0xff]
    %v3195 = vsel %vm1942, %v2535, 0
    %v3198 = vsel %vm1942, %v2536, 0
    %v3201 = vsel %vm1942, %v2537, 0
    %v3204 = vsel %vm1942, %v2538, 0
    %v3207 = vsel %vm1942, %v2539, 0
    %v3210 = vsel %vm1942, %v2540, 0
    %v3213 = vsel %vm1942, %v2541, 0
    %3215 = vmatpush.msra.mxu0 0.0
    %3216 = vmatpush.msra.mxu0 0.0
    %3217 = vmatpush.msra.mxu0 0.0
    %3218 = vmatpush.msra.mxu0 0.0
    %3219 = vmatpush.msra.mxu0 0.0
    %3220 = vmatpush.msra.mxu0 0.0
    %3221 = vmatpush.msra.mxu0 0.0
    %3222 = vmatpush.msra.mxu0 0.0
    %3223 = vmatpush.msra.mxu0 0.0
    %3224 = vmatpush.msra.mxu0 0.0
    %3225 = vmatpush.msra.mxu0 0.0
    %3226 = vmatpush.msra.mxu0 0.0
    %3227 = vmatpush.msra.mxu0 0.0
    %3228 = vmatpush.msra.mxu0 0.0
    %3229 = vmatpush.msra.mxu0 %v3193
    %3230 = vmatpush.msra.mxu0 %v3192
    %3231 = vmatmul.f32.gmra.mxu0 %v3195
    %v3232 = vpop.f32.mrf.mxu0
    %v3233 = vadd.f32 0.0, %v3232
    %3234 = vmatmul.f32.gmra.mxu0 %v3198
    %v3235 = vpop.f32.mrf.mxu0
    %v3236 = vadd.f32 0.0, %v3235
    %3237 = vmatmul.f32.gmra.mxu0 %v3201
    %v3238 = vpop.f32.mrf.mxu0
    %v3239 = vadd.f32 0.0, %v3238
    %3240 = vmatmul.f32.gmra.mxu0 %v3204
    %v3241 = vpop.f32.mrf.mxu0
    %v3242 = vadd.f32 0.0, %v3241
    %3243 = vmatmul.f32.gmra.mxu0 %v3207
    %v3244 = vpop.f32.mrf.mxu0
    %v3245 = vadd.f32 0.0, %v3244
    %3246 = vmatmul.f32.gmra.mxu0 %v3210
    %v3247 = vpop.f32.mrf.mxu0
    %v3248 = vadd.f32 0.0, %v3247
    %3249 = vmatmul.f32.gmra.mxu0 %v3213
    %v3250 = vpop.f32.mrf.mxu0
    %v3251 = vadd.f32 0.0, %v3250
    %3252 = vdwg.mxu0
    %v3253 = vadd.f32 %v3184, %v3233
    %v3254 = vadd.f32 %v3185, %v3236
    %v3255 = vadd.f32 %v3186, %v3239
    %v3256 = vadd.f32 %v3187, %v3242
    %v3257 = vadd.f32 %v3188, %v3245
    %v3258 = vadd.f32 %v3189, %v3248
    %v3259 = vadd.f32 %v3190, %v3251
    %s3260 = scalar_lea.vmem %s2, 144
    %v3261 = vld [vmem:[%s3260] sm:$0xff]
    %v3262 = vld [vmem:[%s3260 + $0x8] sm:$0xff]
    %v3264 = vsel %vm1942, %v2542, 0
    %v3267 = vsel %vm1942, %v2543, 0
    %v3270 = vsel %vm1942, %v2544, 0
    %v3273 = vsel %vm1942, %v2545, 0
    %v3276 = vsel %vm1942, %v2546, 0
    %v3279 = vsel %vm1942, %v2547, 0
    %v3282 = vsel %vm1942, %v2548, 0
    %3284 = vmatpush.msra.mxu0 0.0
    %3285 = vmatpush.msra.mxu0 0.0
    %3286 = vmatpush.msra.mxu0 0.0
    %3287 = vmatpush.msra.mxu0 0.0
    %3288 = vmatpush.msra.mxu0 0.0
    %3289 = vmatpush.msra.mxu0 0.0
    %3290 = vmatpush.msra.mxu0 0.0
    %3291 = vmatpush.msra.mxu0 0.0
    %3292 = vmatpush.msra.mxu0 0.0
    %3293 = vmatpush.msra.mxu0 0.0
    %3294 = vmatpush.msra.mxu0 0.0
    %3295 = vmatpush.msra.mxu0 0.0
    %3296 = vmatpush.msra.mxu0 0.0
    %3297 = vmatpush.msra.mxu0 0.0
    %3298 = vmatpush.msra.mxu0 %v3262
    %3299 = vmatpush.msra.mxu0 %v3261
    %3300 = vmatmul.f32.gmra.mxu0 %v3264
    %v3301 = vpop.f32.mrf.mxu0
    %v3302 = vadd.f32 0.0, %v3301
    %3303 = vmatmul.f32.gmra.mxu0 %v3267
    %v3304 = vpop.f32.mrf.mxu0
    %v3305 = vadd.f32 0.0, %v3304
    %3306 = vmatmul.f32.gmra.mxu0 %v3270
    %v3307 = vpop.f32.mrf.mxu0
    %v3308 = vadd.f32 0.0, %v3307
    %3309 = vmatmul.f32.gmra.mxu0 %v3273
    %v3310 = vpop.f32.mrf.mxu0
    %v3311 = vadd.f32 0.0, %v3310
    %3312 = vmatmul.f32.gmra.mxu0 %v3276
    %v3313 = vpop.f32.mrf.mxu0
    %v3314 = vadd.f32 0.0, %v3313
    %3315 = vmatmul.f32.gmra.mxu0 %v3279
    %v3316 = vpop.f32.mrf.mxu0
    %v3317 = vadd.f32 0.0, %v3316
    %3318 = vmatmul.f32.gmra.mxu0 %v3282
    %v3319 = vpop.f32.mrf.mxu0
    %v3320 = vadd.f32 0.0, %v3319
    %3321 = vdwg.mxu0
    %v3322 = vadd.f32 %v3253, %v3302
    %v3323 = vadd.f32 %v3254, %v3305
    %v3324 = vadd.f32 %v3255, %v3308
    %v3325 = vadd.f32 %v3256, %v3311
    %v3326 = vadd.f32 %v3257, %v3314
    %v3327 = vadd.f32 %v3258, %v3317
    %v3328 = vadd.f32 %v3259, %v3320
    %s3329 = scalar_lea.vmem %s2, 160
    %v3330 = vld [vmem:[%s3329] sm:$0xff]
    %v3331 = vld [vmem:[%s3329 + $0x8] sm:$0xff]
    %v3333 = vsel %vm1942, %v2549, 0
    %v3336 = vsel %vm1942, %v2550, 0
    %v3339 = vsel %vm1942, %v2551, 0
    %v3342 = vsel %vm1942, %v2552, 0
    %v3345 = vsel %vm1942, %v2553, 0
    %v3348 = vsel %vm1942, %v2554, 0
    %v3351 = vsel %vm1942, %v2555, 0
    %3353 = vmatpush.msra.mxu0 0.0
    %3354 = vmatpush.msra.mxu0 0.0
    %3355 = vmatpush.msra.mxu0 0.0
    %3356 = vmatpush.msra.mxu0 0.0
    %3357 = vmatpush.msra.mxu0 0.0
    %3358 = vmatpush.msra.mxu0 0.0
    %3359 = vmatpush.msra.mxu0 0.0
    %3360 = vmatpush.msra.mxu0 0.0
    %3361 = vmatpush.msra.mxu0 0.0
    %3362 = vmatpush.msra.mxu0 0.0
    %3363 = vmatpush.msra.mxu0 0.0
    %3364 = vmatpush.msra.mxu0 0.0
    %3365 = vmatpush.msra.mxu0 0.0
    %3366 = vmatpush.msra.mxu0 0.0
    %3367 = vmatpush.msra.mxu0 %v3331
    %3368 = vmatpush.msra.mxu0 %v3330
    %3369 = vmatmul.f32.gmra.mxu0 %v3333
    %v3370 = vpop.f32.mrf.mxu0
    %v3371 = vadd.f32 0.0, %v3370
    %3372 = vmatmul.f32.gmra.mxu0 %v3336
    %v3373 = vpop.f32.mrf.mxu0
    %v3374 = vadd.f32 0.0, %v3373
    %3375 = vmatmul.f32.gmra.mxu0 %v3339
    %v3376 = vpop.f32.mrf.mxu0
    %v3377 = vadd.f32 0.0, %v3376
    %3378 = vmatmul.f32.gmra.mxu0 %v3342
    %v3379 = vpop.f32.mrf.mxu0
    %v3380 = vadd.f32 0.0, %v3379
    %3381 = vmatmul.f32.gmra.mxu0 %v3345
    %v3382 = vpop.f32.mrf.mxu0
    %v3383 = vadd.f32 0.0, %v3382
    %3384 = vmatmul.f32.gmra.mxu0 %v3348
    %v3385 = vpop.f32.mrf.mxu0
    %v3386 = vadd.f32 0.0, %v3385
    %3387 = vmatmul.f32.gmra.mxu0 %v3351
    %v3388 = vpop.f32.mrf.mxu0
    %v3389 = vadd.f32 0.0, %v3388
    %3390 = vdwg.mxu0
    %v3391 = vadd.f32 %v3322, %v3371
    %v3392 = vadd.f32 %v3323, %v3374
    %v3393 = vadd.f32 %v3324, %v3377
    %v3394 = vadd.f32 %v3325, %v3380
    %v3395 = vadd.f32 %v3326, %v3383
    %v3396 = vadd.f32 %v3327, %v3386
    %v3397 = vadd.f32 %v3328, %v3389
    %s3398 = scalar_lea.vmem %s2, 176
    %v3399 = vld [vmem:[%s3398] sm:$0xff]
    %v3400 = vld [vmem:[%s3398 + $0x8] sm:$0xff]
    %v3402 = vsel %vm1942, %v2556, 0
    %v3405 = vsel %vm1942, %v2557, 0
    %v3408 = vsel %vm1942, %v2558, 0
    %v3411 = vsel %vm1942, %v2559, 0
    %v3414 = vsel %vm1942, %v2560, 0
    %v3417 = vsel %vm1942, %v2561, 0
    %v3420 = vsel %vm1942, %v2562, 0
    %3422 = vmatpush.msra.mxu0 0.0
    %3423 = vmatpush.msra.mxu0 0.0
    %3424 = vmatpush.msra.mxu0 0.0
    %3425 = vmatpush.msra.mxu0 0.0
    %3426 = vmatpush.msra.mxu0 0.0
    %3427 = vmatpush.msra.mxu0 0.0
    %3428 = vmatpush.msra.mxu0 0.0
    %3429 = vmatpush.msra.mxu0 0.0
    %3430 = vmatpush.msra.mxu0 0.0
    %3431 = vmatpush.msra.mxu0 0.0
    %3432 = vmatpush.msra.mxu0 0.0
    %3433 = vmatpush.msra.mxu0 0.0
    %3434 = vmatpush.msra.mxu0 0.0
    %3435 = vmatpush.msra.mxu0 0.0
    %3436 = vmatpush.msra.mxu0 %v3400
    %3437 = vmatpush.msra.mxu0 %v3399
    %3438 = vmatmul.f32.gmra.mxu0 %v3402
    %v3439 = vpop.f32.mrf.mxu0
    %v3440 = vadd.f32 0.0, %v3439
    %3441 = vmatmul.f32.gmra.mxu0 %v3405
    %v3442 = vpop.f32.mrf.mxu0
    %v3443 = vadd.f32 0.0, %v3442
    %3444 = vmatmul.f32.gmra.mxu0 %v3408
    %v3445 = vpop.f32.mrf.mxu0
    %v3446 = vadd.f32 0.0, %v3445
    %3447 = vmatmul.f32.gmra.mxu0 %v3411
    %v3448 = vpop.f32.mrf.mxu0
    %v3449 = vadd.f32 0.0, %v3448
    %3450 = vmatmul.f32.gmra.mxu0 %v3414
    %v3451 = vpop.f32.mrf.mxu0
    %v3452 = vadd.f32 0.0, %v3451
    %3453 = vmatmul.f32.gmra.mxu0 %v3417
    %v3454 = vpop.f32.mrf.mxu0
    %v3455 = vadd.f32 0.0, %v3454
    %3456 = vmatmul.f32.gmra.mxu0 %v3420
    %v3457 = vpop.f32.mrf.mxu0
    %v3458 = vadd.f32 0.0, %v3457
    %3459 = vdwg.mxu0
    %v3460 = vadd.f32 %v3391, %v3440
    %v3461 = vadd.f32 %v3392, %v3443
    %v3462 = vadd.f32 %v3393, %v3446
    %v3463 = vadd.f32 %v3394, %v3449
    %v3464 = vadd.f32 %v3395, %v3452
    %v3465 = vadd.f32 %v3396, %v3455
    %v3466 = vadd.f32 %v3397, %v3458
    %s3467 = scalar_lea.vmem %s2, 192
    %v3468 = vld [vmem:[%s3467] sm:$0xff]
    %v3469 = vld [vmem:[%s3467 + $0x8] sm:$0xff]
    %v3471 = vsel %vm1942, %v2563, 0
    %v3474 = vsel %vm1942, %v2564, 0
    %v3477 = vsel %vm1942, %v2565, 0
    %v3480 = vsel %vm1942, %v2566, 0
    %v3483 = vsel %vm1942, %v2567, 0
    %v3486 = vsel %vm1942, %v2568, 0
    %v3489 = vsel %vm1942, %v2569, 0
    %3491 = vmatpush.msra.mxu0 0.0
    %3492 = vmatpush.msra.mxu0 0.0
    %3493 = vmatpush.msra.mxu0 0.0
    %3494 = vmatpush.msra.mxu0 0.0
    %3495 = vmatpush.msra.mxu0 0.0
    %3496 = vmatpush.msra.mxu0 0.0
    %3497 = vmatpush.msra.mxu0 0.0
    %3498 = vmatpush.msra.mxu0 0.0
    %3499 = vmatpush.msra.mxu0 0.0
    %3500 = vmatpush.msra.mxu0 0.0
    %3501 = vmatpush.msra.mxu0 0.0
    %3502 = vmatpush.msra.mxu0 0.0
    %3503 = vmatpush.msra.mxu0 0.0
    %3504 = vmatpush.msra.mxu0 0.0
    %3505 = vmatpush.msra.mxu0 %v3469
    %3506 = vmatpush.msra.mxu0 %v3468
    %3507 = vmatmul.f32.gmra.mxu0 %v3471
    %v3508 = vpop.f32.mrf.mxu0
    %v3509 = vadd.f32 0.0, %v3508
    %3510 = vmatmul.f32.gmra.mxu0 %v3474
    %v3511 = vpop.f32.mrf.mxu0
    %v3512 = vadd.f32 0.0, %v3511
    %3513 = vmatmul.f32.gmra.mxu0 %v3477
    %v3514 = vpop.f32.mrf.mxu0
    %v3515 = vadd.f32 0.0, %v3514
    %3516 = vmatmul.f32.gmra.mxu0 %v3480
    %v3517 = vpop.f32.mrf.mxu0
    %v3518 = vadd.f32 0.0, %v3517
    %3519 = vmatmul.f32.gmra.mxu0 %v3483
    %v3520 = vpop.f32.mrf.mxu0
    %v3521 = vadd.f32 0.0, %v3520
    %3522 = vmatmul.f32.gmra.mxu0 %v3486
    %v3523 = vpop.f32.mrf.mxu0
    %v3524 = vadd.f32 0.0, %v3523
    %3525 = vmatmul.f32.gmra.mxu0 %v3489
    %v3526 = vpop.f32.mrf.mxu0
    %v3527 = vadd.f32 0.0, %v3526
    %3528 = vdwg.mxu0
    %v3529 = vadd.f32 %v3460, %v3509
    %v3530 = vadd.f32 %v3461, %v3512
    %v3531 = vadd.f32 %v3462, %v3515
    %v3532 = vadd.f32 %v3463, %v3518
    %v3533 = vadd.f32 %v3464, %v3521
    %v3534 = vadd.f32 %v3465, %v3524
    %v3535 = vadd.f32 %v3466, %v3527
    %s3536 = scalar_lea.vmem %s2, 208
    %v3537 = vld [vmem:[%s3536] sm:$0xff]
    %v3538 = vld [vmem:[%s3536 + $0x8] sm:$0xff]
    %v3540 = vsel %vm1942, %v2570, 0
    %v3543 = vsel %vm1942, %v2571, 0
    %v3546 = vsel %vm1942, %v2572, 0
    %v3549 = vsel %vm1942, %v2573, 0
    %v3552 = vsel %vm1942, %v2574, 0
    %v3555 = vsel %vm1942, %v2575, 0
    %v3558 = vsel %vm1942, %v2576, 0
    %3560 = vmatpush.msra.mxu0 0.0
    %3561 = vmatpush.msra.mxu0 0.0
    %3562 = vmatpush.msra.mxu0 0.0
    %3563 = vmatpush.msra.mxu0 0.0
    %3564 = vmatpush.msra.mxu0 0.0
    %3565 = vmatpush.msra.mxu0 0.0
    %3566 = vmatpush.msra.mxu0 0.0
    %3567 = vmatpush.msra.mxu0 0.0
    %3568 = vmatpush.msra.mxu0 0.0
    %3569 = vmatpush.msra.mxu0 0.0
    %3570 = vmatpush.msra.mxu0 0.0
    %3571 = vmatpush.msra.mxu0 0.0
    %3572 = vmatpush.msra.mxu0 0.0
    %3573 = vmatpush.msra.mxu0 0.0
    %3574 = vmatpush.msra.mxu0 %v3538
    %3575 = vmatpush.msra.mxu0 %v3537
    %3576 = vmatmul.f32.gmra.mxu0 %v3540
    %v3577 = vpop.f32.mrf.mxu0
    %v3578 = vadd.f32 0.0, %v3577
    %3579 = vmatmul.f32.gmra.mxu0 %v3543
    %v3580 = vpop.f32.mrf.mxu0
    %v3581 = vadd.f32 0.0, %v3580
    %3582 = vmatmul.f32.gmra.mxu0 %v3546
    %v3583 = vpop.f32.mrf.mxu0
    %v3584 = vadd.f32 0.0, %v3583
    %3585 = vmatmul.f32.gmra.mxu0 %v3549
    %v3586 = vpop.f32.mrf.mxu0
    %v3587 = vadd.f32 0.0, %v3586
    %3588 = vmatmul.f32.gmra.mxu0 %v3552
    %v3589 = vpop.f32.mrf.mxu0
    %v3590 = vadd.f32 0.0, %v3589
    %3591 = vmatmul.f32.gmra.mxu0 %v3555
    %v3592 = vpop.f32.mrf.mxu0
    %v3593 = vadd.f32 0.0, %v3592
    %3594 = vmatmul.f32.gmra.mxu0 %v3558
    %v3595 = vpop.f32.mrf.mxu0
    %v3596 = vadd.f32 0.0, %v3595
    %3597 = vdwg.mxu0
    %v3598 = vadd.f32 %v3529, %v3578
    %v3599 = vadd.f32 %v3530, %v3581
    %v3600 = vadd.f32 %v3531, %v3584
    %v3601 = vadd.f32 %v3532, %v3587
    %v3602 = vadd.f32 %v3533, %v3590
    %v3603 = vadd.f32 %v3534, %v3593
    %v3604 = vadd.f32 %v3535, %v3596
    %s3605 = scalar_lea.vmem %s2, 224
    %v3606 = vld [vmem:[%s3605] sm:$0xff]
    %v3607 = vld [vmem:[%s3605 + $0x8] sm:$0xff]
    %v3609 = vsel %vm1942, %v2577, 0
    %v3612 = vsel %vm1942, %v2578, 0
    %v3615 = vsel %vm1942, %v2579, 0
    %v3618 = vsel %vm1942, %v2580, 0
    %v3621 = vsel %vm1942, %v2581, 0
    %v3624 = vsel %vm1942, %v2582, 0
    %v3627 = vsel %vm1942, %v2583, 0
    %3629 = vmatpush.msra.mxu0 0.0
    %3630 = vmatpush.msra.mxu0 0.0
    %3631 = vmatpush.msra.mxu0 0.0
    %3632 = vmatpush.msra.mxu0 0.0
    %3633 = vmatpush.msra.mxu0 0.0
    %3634 = vmatpush.msra.mxu0 0.0
    %3635 = vmatpush.msra.mxu0 0.0
    %3636 = vmatpush.msra.mxu0 0.0
    %3637 = vmatpush.msra.mxu0 0.0
    %3638 = vmatpush.msra.mxu0 0.0
    %3639 = vmatpush.msra.mxu0 0.0
    %3640 = vmatpush.msra.mxu0 0.0
    %3641 = vmatpush.msra.mxu0 0.0
    %3642 = vmatpush.msra.mxu0 0.0
    %3643 = vmatpush.msra.mxu0 %v3607
    %3644 = vmatpush.msra.mxu0 %v3606
    %3645 = vmatmul.f32.gmra.mxu0 %v3609
    %v3646 = vpop.f32.mrf.mxu0
    %v3647 = vadd.f32 0.0, %v3646
    %3648 = vmatmul.f32.gmra.mxu0 %v3612
    %v3649 = vpop.f32.mrf.mxu0
    %v3650 = vadd.f32 0.0, %v3649
    %3651 = vmatmul.f32.gmra.mxu0 %v3615
    %v3652 = vpop.f32.mrf.mxu0
    %v3653 = vadd.f32 0.0, %v3652
    %3654 = vmatmul.f32.gmra.mxu0 %v3618
    %v3655 = vpop.f32.mrf.mxu0
    %v3656 = vadd.f32 0.0, %v3655
    %3657 = vmatmul.f32.gmra.mxu0 %v3621
    %v3658 = vpop.f32.mrf.mxu0
    %v3659 = vadd.f32 0.0, %v3658
    %3660 = vmatmul.f32.gmra.mxu0 %v3624
    %v3661 = vpop.f32.mrf.mxu0
    %v3662 = vadd.f32 0.0, %v3661
    %3663 = vmatmul.f32.gmra.mxu0 %v3627
    %v3664 = vpop.f32.mrf.mxu0
    %v3665 = vadd.f32 0.0, %v3664
    %3666 = vdwg.mxu0
    %v3667 = vadd.f32 %v3598, %v3647
    %v3668 = vadd.f32 %v3599, %v3650
    %v3669 = vadd.f32 %v3600, %v3653
    %v3670 = vadd.f32 %v3601, %v3656
    %v3671 = vadd.f32 %v3602, %v3659
    %v3672 = vadd.f32 %v3603, %v3662
    %v3673 = vadd.f32 %v3604, %v3665
    %s3674 = scalar_lea.vmem %s2, 240
    %v3675 = vld [vmem:[%s3674] sm:$0xff]
    %v3676 = vld [vmem:[%s3674 + $0x8] sm:$0xff]
    %v3678 = vsel %vm1942, %v2584, 0
    %v3681 = vsel %vm1942, %v2585, 0
    %v3684 = vsel %vm1942, %v2586, 0
    %v3687 = vsel %vm1942, %v2587, 0
    %v3690 = vsel %vm1942, %v2588, 0
    %v3693 = vsel %vm1942, %v2589, 0
    %v3696 = vsel %vm1942, %v2590, 0
    %3698 = vmatpush.msra.mxu0 0.0
    %3699 = vmatpush.msra.mxu0 0.0
    %3700 = vmatpush.msra.mxu0 0.0
    %3701 = vmatpush.msra.mxu0 0.0
    %3702 = vmatpush.msra.mxu0 0.0
    %3703 = vmatpush.msra.mxu0 0.0
    %3704 = vmatpush.msra.mxu0 0.0
    %3705 = vmatpush.msra.mxu0 0.0
    %3706 = vmatpush.msra.mxu0 0.0
    %3707 = vmatpush.msra.mxu0 0.0
    %3708 = vmatpush.msra.mxu0 0.0
    %3709 = vmatpush.msra.mxu0 0.0
    %3710 = vmatpush.msra.mxu0 0.0
    %3711 = vmatpush.msra.mxu0 0.0
    %3712 = vmatpush.msra.mxu0 %v3676
    %3713 = vmatpush.msra.mxu0 %v3675
    %3714 = vmatmul.f32.gmra.mxu0 %v3678
    %v3715 = vpop.f32.mrf.mxu0
    %v3716 = vadd.f32 0.0, %v3715
    %3717 = vmatmul.f32.gmra.mxu0 %v3681
    %v3718 = vpop.f32.mrf.mxu0
    %v3719 = vadd.f32 0.0, %v3718
    %3720 = vmatmul.f32.gmra.mxu0 %v3684
    %v3721 = vpop.f32.mrf.mxu0
    %v3722 = vadd.f32 0.0, %v3721
    %3723 = vmatmul.f32.gmra.mxu0 %v3687
    %v3724 = vpop.f32.mrf.mxu0
    %v3725 = vadd.f32 0.0, %v3724
    %3726 = vmatmul.f32.gmra.mxu0 %v3690
    %v3727 = vpop.f32.mrf.mxu0
    %v3728 = vadd.f32 0.0, %v3727
    %3729 = vmatmul.f32.gmra.mxu0 %v3693
    %v3730 = vpop.f32.mrf.mxu0
    %v3731 = vadd.f32 0.0, %v3730
    %3732 = vmatmul.f32.gmra.mxu0 %v3696
    %v3733 = vpop.f32.mrf.mxu0
    %v3734 = vadd.f32 0.0, %v3733
    %3735 = vdwg.mxu0
    %v3736 = vadd.f32 %v3667, %v3716
    %v3737 = vadd.f32 %v3668, %v3719
    %v3738 = vadd.f32 %v3669, %v3722
    %v3739 = vadd.f32 %v3670, %v3725
    %v3740 = vadd.f32 %v3671, %v3728
    %v3741 = vadd.f32 %v3672, %v3731
    %v3742 = vadd.f32 %v3673, %v3734
    %s3743 = scalar_lea.vmem %s2, 256
    %v3744 = vld [vmem:[%s3743] sm:$0xff]
    %v3745 = vld [vmem:[%s3743 + $0x8] sm:$0xff]
    %v3747 = vsel %vm1942, %v2591, 0
    %v3750 = vsel %vm1942, %v2592, 0
    %v3753 = vsel %vm1942, %v2593, 0
    %v3756 = vsel %vm1942, %v2594, 0
    %v3759 = vsel %vm1942, %v2595, 0
    %v3762 = vsel %vm1942, %v2596, 0
    %v3765 = vsel %vm1942, %v2597, 0
    %3767 = vmatpush.msra.mxu0 0.0
    %3768 = vmatpush.msra.mxu0 0.0
    %3769 = vmatpush.msra.mxu0 0.0
    %3770 = vmatpush.msra.mxu0 0.0
    %3771 = vmatpush.msra.mxu0 0.0
    %3772 = vmatpush.msra.mxu0 0.0
    %3773 = vmatpush.msra.mxu0 0.0
    %3774 = vmatpush.msra.mxu0 0.0
    %3775 = vmatpush.msra.mxu0 0.0
    %3776 = vmatpush.msra.mxu0 0.0
    %3777 = vmatpush.msra.mxu0 0.0
    %3778 = vmatpush.msra.mxu0 0.0
    %3779 = vmatpush.msra.mxu0 0.0
    %3780 = vmatpush.msra.mxu0 0.0
    %3781 = vmatpush.msra.mxu0 %v3745
    %3782 = vmatpush.msra.mxu0 %v3744
    %3783 = vmatmul.f32.gmra.mxu0 %v3747
    %v3784 = vpop.f32.mrf.mxu0
    %v3785 = vadd.f32 0.0, %v3784
    %3786 = vmatmul.f32.gmra.mxu0 %v3750
    %v3787 = vpop.f32.mrf.mxu0
    %v3788 = vadd.f32 0.0, %v3787
    %3789 = vmatmul.f32.gmra.mxu0 %v3753
    %v3790 = vpop.f32.mrf.mxu0
    %v3791 = vadd.f32 0.0, %v3790
    %3792 = vmatmul.f32.gmra.mxu0 %v3756
    %v3793 = vpop.f32.mrf.mxu0
    %v3794 = vadd.f32 0.0, %v3793
    %3795 = vmatmul.f32.gmra.mxu0 %v3759
    %v3796 = vpop.f32.mrf.mxu0
    %v3797 = vadd.f32 0.0, %v3796
    %3798 = vmatmul.f32.gmra.mxu0 %v3762
    %v3799 = vpop.f32.mrf.mxu0
    %v3800 = vadd.f32 0.0, %v3799
    %3801 = vmatmul.f32.gmra.mxu0 %v3765
    %v3802 = vpop.f32.mrf.mxu0
    %v3803 = vadd.f32 0.0, %v3802
    %3804 = vdwg.mxu0
    %v3805 = vadd.f32 %v3736, %v3785
    %v3806 = vadd.f32 %v3737, %v3788
    %v3807 = vadd.f32 %v3738, %v3791
    %v3808 = vadd.f32 %v3739, %v3794
    %v3809 = vadd.f32 %v3740, %v3797
    %v3810 = vadd.f32 %v3741, %v3800
    %v3811 = vadd.f32 %v3742, %v3803
    %s3812 = scalar_lea.vmem %s2, 272
    %v3813 = vld [vmem:[%s3812] sm:$0xff]
    %v3814 = vld [vmem:[%s3812 + $0x8] sm:$0xff]
    %v3816 = vsel %vm1942, %v2598, 0
    %v3819 = vsel %vm1942, %v2599, 0
    %v3822 = vsel %vm1942, %v2600, 0
    %v3825 = vsel %vm1942, %v2601, 0
    %v3828 = vsel %vm1942, %v2602, 0
    %v3831 = vsel %vm1942, %v2603, 0
    %v3834 = vsel %vm1942, %v2604, 0
    %3836 = vmatpush.msra.mxu0 0.0
    %3837 = vmatpush.msra.mxu0 0.0
    %3838 = vmatpush.msra.mxu0 0.0
    %3839 = vmatpush.msra.mxu0 0.0
    %3840 = vmatpush.msra.mxu0 0.0
    %3841 = vmatpush.msra.mxu0 0.0
    %3842 = vmatpush.msra.mxu0 0.0
    %3843 = vmatpush.msra.mxu0 0.0
    %3844 = vmatpush.msra.mxu0 0.0
    %3845 = vmatpush.msra.mxu0 0.0
    %3846 = vmatpush.msra.mxu0 0.0
    %3847 = vmatpush.msra.mxu0 0.0
    %3848 = vmatpush.msra.mxu0 0.0
    %3849 = vmatpush.msra.mxu0 0.0
    %3850 = vmatpush.msra.mxu0 %v3814
    %3851 = vmatpush.msra.mxu0 %v3813
    %3852 = vmatmul.f32.gmra.mxu0 %v3816
    %v3853 = vpop.f32.mrf.mxu0
    %v3854 = vadd.f32 0.0, %v3853
    %3855 = vmatmul.f32.gmra.mxu0 %v3819
    %v3856 = vpop.f32.mrf.mxu0
    %v3857 = vadd.f32 0.0, %v3856
    %3858 = vmatmul.f32.gmra.mxu0 %v3822
    %v3859 = vpop.f32.mrf.mxu0
    %v3860 = vadd.f32 0.0, %v3859
    %3861 = vmatmul.f32.gmra.mxu0 %v3825
    %v3862 = vpop.f32.mrf.mxu0
    %v3863 = vadd.f32 0.0, %v3862
    %3864 = vmatmul.f32.gmra.mxu0 %v3828
    %v3865 = vpop.f32.mrf.mxu0
    %v3866 = vadd.f32 0.0, %v3865
    %3867 = vmatmul.f32.gmra.mxu0 %v3831
    %v3868 = vpop.f32.mrf.mxu0
    %v3869 = vadd.f32 0.0, %v3868
    %3870 = vmatmul.f32.gmra.mxu0 %v3834
    %v3871 = vpop.f32.mrf.mxu0
    %v3872 = vadd.f32 0.0, %v3871
    %3873 = vdwg.mxu0
    %v3874 = vadd.f32 %v3805, %v3854
    %v3875 = vadd.f32 %v3806, %v3857
    %v3876 = vadd.f32 %v3807, %v3860
    %v3877 = vadd.f32 %v3808, %v3863
    %v3878 = vadd.f32 %v3809, %v3866
    %v3879 = vadd.f32 %v3810, %v3869
    %v3880 = vadd.f32 %v3811, %v3872
    %s3881 = scalar_lea.vmem %s2, 288
    %v3882 = vld [vmem:[%s3881] sm:$0xff]
    %v3883 = vld [vmem:[%s3881 + $0x8] sm:$0xff]
    %v3885 = vsel %vm1942, %v2605, 0
    %v3888 = vsel %vm1942, %v2606, 0
    %v3891 = vsel %vm1942, %v2607, 0
    %v3894 = vsel %vm1942, %v2608, 0
    %v3897 = vsel %vm1942, %v2609, 0
    %v3900 = vsel %vm1942, %v2610, 0
    %v3903 = vsel %vm1942, %v2611, 0
    %3905 = vmatpush.msra.mxu0 0.0
    %3906 = vmatpush.msra.mxu0 0.0
    %3907 = vmatpush.msra.mxu0 0.0
    %3908 = vmatpush.msra.mxu0 0.0
    %3909 = vmatpush.msra.mxu0 0.0
    %3910 = vmatpush.msra.mxu0 0.0
    %3911 = vmatpush.msra.mxu0 0.0
    %3912 = vmatpush.msra.mxu0 0.0
    %3913 = vmatpush.msra.mxu0 0.0
    %3914 = vmatpush.msra.mxu0 0.0
    %3915 = vmatpush.msra.mxu0 0.0
    %3916 = vmatpush.msra.mxu0 0.0
    %3917 = vmatpush.msra.mxu0 0.0
    %3918 = vmatpush.msra.mxu0 0.0
    %3919 = vmatpush.msra.mxu0 %v3883
    %3920 = vmatpush.msra.mxu0 %v3882
    %3921 = vmatmul.f32.gmra.mxu0 %v3885
    %v3922 = vpop.f32.mrf.mxu0
    %v3923 = vadd.f32 0.0, %v3922
    %3924 = vmatmul.f32.gmra.mxu0 %v3888
    %v3925 = vpop.f32.mrf.mxu0
    %v3926 = vadd.f32 0.0, %v3925
    %3927 = vmatmul.f32.gmra.mxu0 %v3891
    %v3928 = vpop.f32.mrf.mxu0
    %v3929 = vadd.f32 0.0, %v3928
    %3930 = vmatmul.f32.gmra.mxu0 %v3894
    %v3931 = vpop.f32.mrf.mxu0
    %v3932 = vadd.f32 0.0, %v3931
    %3933 = vmatmul.f32.gmra.mxu0 %v3897
    %v3934 = vpop.f32.mrf.mxu0
    %v3935 = vadd.f32 0.0, %v3934
    %3936 = vmatmul.f32.gmra.mxu0 %v3900
    %v3937 = vpop.f32.mrf.mxu0
    %v3938 = vadd.f32 0.0, %v3937
    %3939 = vmatmul.f32.gmra.mxu0 %v3903
    %v3940 = vpop.f32.mrf.mxu0
    %v3941 = vadd.f32 0.0, %v3940
    %3942 = vdwg.mxu0
    %v3943 = vadd.f32 %v3874, %v3923
    %v3944 = vadd.f32 %v3875, %v3926
    %v3945 = vadd.f32 %v3876, %v3929
    %v3946 = vadd.f32 %v3877, %v3932
    %v3947 = vadd.f32 %v3878, %v3935
    %v3948 = vadd.f32 %v3879, %v3938
    %v3949 = vadd.f32 %v3880, %v3941
    %s3950 = scalar_lea.vmem %s2, 304
    %v3951 = vld [vmem:[%s3950] sm:$0xff]
    %v3952 = vld [vmem:[%s3950 + $0x8] sm:$0xff]
    %v3954 = vsel %vm1942, %v2612, 0
    %v3957 = vsel %vm1942, %v2613, 0
    %v3960 = vsel %vm1942, %v2614, 0
    %v3963 = vsel %vm1942, %v2615, 0
    %v3966 = vsel %vm1942, %v2616, 0
    %v3969 = vsel %vm1942, %v2617, 0
    %v3972 = vsel %vm1942, %v2618, 0
    %3974 = vmatpush.msra.mxu0 0.0
    %3975 = vmatpush.msra.mxu0 0.0
    %3976 = vmatpush.msra.mxu0 0.0
    %3977 = vmatpush.msra.mxu0 0.0
    %3978 = vmatpush.msra.mxu0 0.0
    %3979 = vmatpush.msra.mxu0 0.0
    %3980 = vmatpush.msra.mxu0 0.0
    %3981 = vmatpush.msra.mxu0 0.0
    %3982 = vmatpush.msra.mxu0 0.0
    %3983 = vmatpush.msra.mxu0 0.0
    %3984 = vmatpush.msra.mxu0 0.0
    %3985 = vmatpush.msra.mxu0 0.0
    %3986 = vmatpush.msra.mxu0 0.0
    %3987 = vmatpush.msra.mxu0 0.0
    %3988 = vmatpush.msra.mxu0 %v3952
    %3989 = vmatpush.msra.mxu0 %v3951
    %3990 = vmatmul.f32.gmra.mxu0 %v3954
    %v3991 = vpop.f32.mrf.mxu0
    %v3992 = vadd.f32 0.0, %v3991
    %3993 = vmatmul.f32.gmra.mxu0 %v3957
    %v3994 = vpop.f32.mrf.mxu0
    %v3995 = vadd.f32 0.0, %v3994
    %3996 = vmatmul.f32.gmra.mxu0 %v3960
    %v3997 = vpop.f32.mrf.mxu0
    %v3998 = vadd.f32 0.0, %v3997
    %3999 = vmatmul.f32.gmra.mxu0 %v3963
    %v4000 = vpop.f32.mrf.mxu0
    %v4001 = vadd.f32 0.0, %v4000
    %4002 = vmatmul.f32.gmra.mxu0 %v3966
    %v4003 = vpop.f32.mrf.mxu0
    %v4004 = vadd.f32 0.0, %v4003
    %4005 = vmatmul.f32.gmra.mxu0 %v3969
    %v4006 = vpop.f32.mrf.mxu0
    %v4007 = vadd.f32 0.0, %v4006
    %4008 = vmatmul.f32.gmra.mxu0 %v3972
    %v4009 = vpop.f32.mrf.mxu0
    %v4010 = vadd.f32 0.0, %v4009
    %4011 = vdwg.mxu0
    %v4012 = vadd.f32 %v3943, %v3992
    %v4013 = vadd.f32 %v3944, %v3995
    %v4014 = vadd.f32 %v3945, %v3998
    %v4015 = vadd.f32 %v3946, %v4001
    %v4016 = vadd.f32 %v3947, %v4004
    %v4017 = vadd.f32 %v3948, %v4007
    %v4018 = vadd.f32 %v3949, %v4010
    %s4019 = scalar_lea.vmem %s2, 320
    %v4020 = vld [vmem:[%s4019] sm:$0xff]
    %v4021 = vld [vmem:[%s4019 + $0x8] sm:$0xff]
    %v4023 = vsel %vm1942, %v2619, 0
    %v4026 = vsel %vm1942, %v2620, 0
    %v4029 = vsel %vm1942, %v2621, 0
    %v4032 = vsel %vm1942, %v2622, 0
    %v4035 = vsel %vm1942, %v2623, 0
    %v4038 = vsel %vm1942, %v2624, 0
    %v4041 = vsel %vm1942, %v2625, 0
    %4043 = vmatpush.msra.mxu0 0.0
    %4044 = vmatpush.msra.mxu0 0.0
    %4045 = vmatpush.msra.mxu0 0.0
    %4046 = vmatpush.msra.mxu0 0.0
    %4047 = vmatpush.msra.mxu0 0.0
    %4048 = vmatpush.msra.mxu0 0.0
    %4049 = vmatpush.msra.mxu0 0.0
    %4050 = vmatpush.msra.mxu0 0.0
    %4051 = vmatpush.msra.mxu0 0.0
    %4052 = vmatpush.msra.mxu0 0.0
    %4053 = vmatpush.msra.mxu0 0.0
    %4054 = vmatpush.msra.mxu0 0.0
    %4055 = vmatpush.msra.mxu0 0.0
    %4056 = vmatpush.msra.mxu0 0.0
    %4057 = vmatpush.msra.mxu0 %v4021
    %4058 = vmatpush.msra.mxu0 %v4020
    %4059 = vmatmul.f32.gmra.mxu0 %v4023
    %v4060 = vpop.f32.mrf.mxu0
    %v4061 = vadd.f32 0.0, %v4060
    %4062 = vmatmul.f32.gmra.mxu0 %v4026
    %v4063 = vpop.f32.mrf.mxu0
    %v4064 = vadd.f32 0.0, %v4063
    %4065 = vmatmul.f32.gmra.mxu0 %v4029
    %v4066 = vpop.f32.mrf.mxu0
    %v4067 = vadd.f32 0.0, %v4066
    %4068 = vmatmul.f32.gmra.mxu0 %v4032
    %v4069 = vpop.f32.mrf.mxu0
    %v4070 = vadd.f32 0.0, %v4069
    %4071 = vmatmul.f32.gmra.mxu0 %v4035
    %v4072 = vpop.f32.mrf.mxu0
    %v4073 = vadd.f32 0.0, %v4072
    %4074 = vmatmul.f32.gmra.mxu0 %v4038
    %v4075 = vpop.f32.mrf.mxu0
    %v4076 = vadd.f32 0.0, %v4075
    %4077 = vmatmul.f32.gmra.mxu0 %v4041
    %v4078 = vpop.f32.mrf.mxu0
    %v4079 = vadd.f32 0.0, %v4078
    %4080 = vdwg.mxu0
    %v4081 = vadd.f32 %v4012, %v4061
    %v4082 = vadd.f32 %v4013, %v4064
    %v4083 = vadd.f32 %v4014, %v4067
    %v4084 = vadd.f32 %v4015, %v4070
    %v4085 = vadd.f32 %v4016, %v4073
    %v4086 = vadd.f32 %v4017, %v4076
    %v4087 = vadd.f32 %v4018, %v4079
    %s4088 = scalar_lea.vmem %s2, 336
    %v4089 = vld [vmem:[%s4088] sm:$0xff]
    %v4090 = vld [vmem:[%s4088 + $0x8] sm:$0xff]
    %v4092 = vsel %vm1942, %v2626, 0
    %v4095 = vsel %vm1942, %v2627, 0
    %v4098 = vsel %vm1942, %v2628, 0
    %v4101 = vsel %vm1942, %v2629, 0
    %v4104 = vsel %vm1942, %v2630, 0
    %v4107 = vsel %vm1942, %v2631, 0
    %v4110 = vsel %vm1942, %v2632, 0
    %4112 = vmatpush.msra.mxu0 0.0
    %4113 = vmatpush.msra.mxu0 0.0
    %4114 = vmatpush.msra.mxu0 0.0
    %4115 = vmatpush.msra.mxu0 0.0
    %4116 = vmatpush.msra.mxu0 0.0
    %4117 = vmatpush.msra.mxu0 0.0
    %4118 = vmatpush.msra.mxu0 0.0
    %4119 = vmatpush.msra.mxu0 0.0
    %4120 = vmatpush.msra.mxu0 0.0
    %4121 = vmatpush.msra.mxu0 0.0
    %4122 = vmatpush.msra.mxu0 0.0
    %4123 = vmatpush.msra.mxu0 0.0
    %4124 = vmatpush.msra.mxu0 0.0
    %4125 = vmatpush.msra.mxu0 0.0
    %4126 = vmatpush.msra.mxu0 %v4090
    %4127 = vmatpush.msra.mxu0 %v4089
    %4128 = vmatmul.f32.gmra.mxu0 %v4092
    %v4129 = vpop.f32.mrf.mxu0
    %v4130 = vadd.f32 0.0, %v4129
    %4131 = vmatmul.f32.gmra.mxu0 %v4095
    %v4132 = vpop.f32.mrf.mxu0
    %v4133 = vadd.f32 0.0, %v4132
    %4134 = vmatmul.f32.gmra.mxu0 %v4098
    %v4135 = vpop.f32.mrf.mxu0
    %v4136 = vadd.f32 0.0, %v4135
    %4137 = vmatmul.f32.gmra.mxu0 %v4101
    %v4138 = vpop.f32.mrf.mxu0
    %v4139 = vadd.f32 0.0, %v4138
    %4140 = vmatmul.f32.gmra.mxu0 %v4104
    %v4141 = vpop.f32.mrf.mxu0
    %v4142 = vadd.f32 0.0, %v4141
    %4143 = vmatmul.f32.gmra.mxu0 %v4107
    %v4144 = vpop.f32.mrf.mxu0
    %v4145 = vadd.f32 0.0, %v4144
    %4146 = vmatmul.f32.gmra.mxu0 %v4110
    %v4147 = vpop.f32.mrf.mxu0
    %v4148 = vadd.f32 0.0, %v4147
    %4149 = vdwg.mxu0
    %v4150 = vadd.f32 %v4081, %v4130
    %v4151 = vadd.f32 %v4082, %v4133
    %v4152 = vadd.f32 %v4083, %v4136
    %v4153 = vadd.f32 %v4084, %v4139
    %v4154 = vadd.f32 %v4085, %v4142
    %v4155 = vadd.f32 %v4086, %v4145
    %v4156 = vadd.f32 %v4087, %v4148
    %s4157 = scalar_lea.vmem %s2, 352
    %v4158 = vld [vmem:[%s4157] sm:$0xff]
    %v4159 = vld [vmem:[%s4157 + $0x8] sm:$0xff]
    %v4161 = vsel %vm1942, %v2633, 0
    %v4164 = vsel %vm1942, %v2634, 0
    %v4167 = vsel %vm1942, %v2635, 0
    %v4170 = vsel %vm1942, %v2636, 0
    %v4173 = vsel %vm1942, %v2637, 0
    %v4176 = vsel %vm1942, %v2638, 0
    %v4179 = vsel %vm1942, %v2639, 0
    %4181 = vmatpush.msra.mxu0 0.0
    %4182 = vmatpush.msra.mxu0 0.0
    %4183 = vmatpush.msra.mxu0 0.0
    %4184 = vmatpush.msra.mxu0 0.0
    %4185 = vmatpush.msra.mxu0 0.0
    %4186 = vmatpush.msra.mxu0 0.0
    %4187 = vmatpush.msra.mxu0 0.0
    %4188 = vmatpush.msra.mxu0 0.0
    %4189 = vmatpush.msra.mxu0 0.0
    %4190 = vmatpush.msra.mxu0 0.0
    %4191 = vmatpush.msra.mxu0 0.0
    %4192 = vmatpush.msra.mxu0 0.0
    %4193 = vmatpush.msra.mxu0 0.0
    %4194 = vmatpush.msra.mxu0 0.0
    %4195 = vmatpush.msra.mxu0 %v4159
    %4196 = vmatpush.msra.mxu0 %v4158
    %4197 = vmatmul.f32.gmra.mxu0 %v4161
    %v4198 = vpop.f32.mrf.mxu0
    %v4199 = vadd.f32 0.0, %v4198
    %4200 = vmatmul.f32.gmra.mxu0 %v4164
    %v4201 = vpop.f32.mrf.mxu0
    %v4202 = vadd.f32 0.0, %v4201
    %4203 = vmatmul.f32.gmra.mxu0 %v4167
    %v4204 = vpop.f32.mrf.mxu0
    %v4205 = vadd.f32 0.0, %v4204
    %4206 = vmatmul.f32.gmra.mxu0 %v4170
    %v4207 = vpop.f32.mrf.mxu0
    %v4208 = vadd.f32 0.0, %v4207
    %4209 = vmatmul.f32.gmra.mxu0 %v4173
    %v4210 = vpop.f32.mrf.mxu0
    %v4211 = vadd.f32 0.0, %v4210
    %4212 = vmatmul.f32.gmra.mxu0 %v4176
    %v4213 = vpop.f32.mrf.mxu0
    %v4214 = vadd.f32 0.0, %v4213
    %4215 = vmatmul.f32.gmra.mxu0 %v4179
    %v4216 = vpop.f32.mrf.mxu0
    %v4217 = vadd.f32 0.0, %v4216
    %4218 = vdwg.mxu0
    %v4219 = vadd.f32 %v4150, %v4199
    %v4220 = vadd.f32 %v4151, %v4202
    %v4221 = vadd.f32 %v4152, %v4205
    %v4222 = vadd.f32 %v4153, %v4208
    %v4223 = vadd.f32 %v4154, %v4211
    %v4224 = vadd.f32 %v4155, %v4214
    %v4225 = vadd.f32 %v4156, %v4217
    %s4226 = scalar_lea.vmem %s2, 368
    %v4227 = vld [vmem:[%s4226] sm:$0xff]
    %v4228 = vld [vmem:[%s4226 + $0x8] sm:$0xff]
    %v4230 = vsel %vm1942, %v2640, 0
    %v4233 = vsel %vm1942, %v2641, 0
    %v4236 = vsel %vm1942, %v2642, 0
    %v4239 = vsel %vm1942, %v2643, 0
    %v4242 = vsel %vm1942, %v2644, 0
    %v4245 = vsel %vm1942, %v2645, 0
    %v4248 = vsel %vm1942, %v2646, 0
    %4250 = vmatpush.msra.mxu0 0.0
    %4251 = vmatpush.msra.mxu0 0.0
    %4252 = vmatpush.msra.mxu0 0.0
    %4253 = vmatpush.msra.mxu0 0.0
    %4254 = vmatpush.msra.mxu0 0.0
    %4255 = vmatpush.msra.mxu0 0.0
    %4256 = vmatpush.msra.mxu0 0.0
    %4257 = vmatpush.msra.mxu0 0.0
    %4258 = vmatpush.msra.mxu0 0.0
    %4259 = vmatpush.msra.mxu0 0.0
    %4260 = vmatpush.msra.mxu0 0.0
    %4261 = vmatpush.msra.mxu0 0.0
    %4262 = vmatpush.msra.mxu0 0.0
    %4263 = vmatpush.msra.mxu0 0.0
    %4264 = vmatpush.msra.mxu0 %v4228
    %4265 = vmatpush.msra.mxu0 %v4227
    %4266 = vmatmul.f32.gmra.mxu0 %v4230
    %v4267 = vpop.f32.mrf.mxu0
    %v4268 = vadd.f32 0.0, %v4267
    %4269 = vmatmul.f32.gmra.mxu0 %v4233
    %v4270 = vpop.f32.mrf.mxu0
    %v4271 = vadd.f32 0.0, %v4270
    %4272 = vmatmul.f32.gmra.mxu0 %v4236
    %v4273 = vpop.f32.mrf.mxu0
    %v4274 = vadd.f32 0.0, %v4273
    %4275 = vmatmul.f32.gmra.mxu0 %v4239
    %v4276 = vpop.f32.mrf.mxu0
    %v4277 = vadd.f32 0.0, %v4276
    %4278 = vmatmul.f32.gmra.mxu0 %v4242
    %v4279 = vpop.f32.mrf.mxu0
    %v4280 = vadd.f32 0.0, %v4279
    %4281 = vmatmul.f32.gmra.mxu0 %v4245
    %v4282 = vpop.f32.mrf.mxu0
    %v4283 = vadd.f32 0.0, %v4282
    %4284 = vmatmul.f32.gmra.mxu0 %v4248
    %v4285 = vpop.f32.mrf.mxu0
    %v4286 = vadd.f32 0.0, %v4285
    %4287 = vdwg.mxu0
    %v4288 = vadd.f32 %v4219, %v4268
    %v4289 = vadd.f32 %v4220, %v4271
    %v4290 = vadd.f32 %v4221, %v4274
    %v4291 = vadd.f32 %v4222, %v4277
    %v4292 = vadd.f32 %v4223, %v4280
    %v4293 = vadd.f32 %v4224, %v4283
    %v4294 = vadd.f32 %v4225, %v4286
    %s4295 = scalar_lea.vmem %s2, 384
    %v4296 = vld [vmem:[%s4295] sm:$0xff]
    %v4297 = vld [vmem:[%s4295 + $0x8] sm:$0xff]
    %v4299 = vsel %vm1942, %v2647, 0
    %v4302 = vsel %vm1942, %v2648, 0
    %v4305 = vsel %vm1942, %v2649, 0
    %v4308 = vsel %vm1942, %v2650, 0
    %v4311 = vsel %vm1942, %v2651, 0
    %v4314 = vsel %vm1942, %v2652, 0
    %v4317 = vsel %vm1942, %v2653, 0
    %4319 = vmatpush.msra.mxu0 0.0
    %4320 = vmatpush.msra.mxu0 0.0
    %4321 = vmatpush.msra.mxu0 0.0
    %4322 = vmatpush.msra.mxu0 0.0
    %4323 = vmatpush.msra.mxu0 0.0
    %4324 = vmatpush.msra.mxu0 0.0
    %4325 = vmatpush.msra.mxu0 0.0
    %4326 = vmatpush.msra.mxu0 0.0
    %4327 = vmatpush.msra.mxu0 0.0
    %4328 = vmatpush.msra.mxu0 0.0
    %4329 = vmatpush.msra.mxu0 0.0
    %4330 = vmatpush.msra.mxu0 0.0
    %4331 = vmatpush.msra.mxu0 0.0
    %4332 = vmatpush.msra.mxu0 0.0
    %4333 = vmatpush.msra.mxu0 %v4297
    %4334 = vmatpush.msra.mxu0 %v4296
    %4335 = vmatmul.f32.gmra.mxu0 %v4299
    %v4336 = vpop.f32.mrf.mxu0
    %v4337 = vadd.f32 0.0, %v4336
    %4338 = vmatmul.f32.gmra.mxu0 %v4302
    %v4339 = vpop.f32.mrf.mxu0
    %v4340 = vadd.f32 0.0, %v4339
    %4341 = vmatmul.f32.gmra.mxu0 %v4305
    %v4342 = vpop.f32.mrf.mxu0
    %v4343 = vadd.f32 0.0, %v4342
    %4344 = vmatmul.f32.gmra.mxu0 %v4308
    %v4345 = vpop.f32.mrf.mxu0
    %v4346 = vadd.f32 0.0, %v4345
    %4347 = vmatmul.f32.gmra.mxu0 %v4311
    %v4348 = vpop.f32.mrf.mxu0
    %v4349 = vadd.f32 0.0, %v4348
    %4350 = vmatmul.f32.gmra.mxu0 %v4314
    %v4351 = vpop.f32.mrf.mxu0
    %v4352 = vadd.f32 0.0, %v4351
    %4353 = vmatmul.f32.gmra.mxu0 %v4317
    %v4354 = vpop.f32.mrf.mxu0
    %v4355 = vadd.f32 0.0, %v4354
    %4356 = vdwg.mxu0
    %v4357 = vadd.f32 %v4288, %v4337
    %v4358 = vadd.f32 %v4289, %v4340
    %v4359 = vadd.f32 %v4290, %v4343
    %v4360 = vadd.f32 %v4291, %v4346
    %v4361 = vadd.f32 %v4292, %v4349
    %v4362 = vadd.f32 %v4293, %v4352
    %v4363 = vadd.f32 %v4294, %v4355
    %v4364 = vld [vmem:[%s7] sm:$0x1]
    %v4365 = vld [vmem:[%s8] sm:$0x1]
    %v4366 = vld [vmem:[%s12] sm:$0xff]
    %v4367 = vld [vmem:[%s12 + $0x8] sm:$0xff]
    %v4368 = vld [vmem:[%s12 + $0x10] sm:$0xff]
    %v4369 = vld [vmem:[%s12 + $0x18] sm:$0xff]
    %v4370 = vld [vmem:[%s12 + $0x20] sm:$0xff]
    %v4371 = vld [vmem:[%s12 + $0x28] sm:$0xff]
    %v4372 = vld [vmem:[%s12 + $0x30] sm:$0xff]
    %v4373 = vperm.slane %v4357, 0
    %v4374 = vsub.f32 %v4357, %v4373
    %v4375 = vsub.f32 %v4358, %v4373
    %v4376 = vsub.f32 %v4359, %v4373
    %v4377 = vsub.f32 %v4360, %v4373
    %v4378 = vsub.f32 %v4361, %v4373
    %v4379 = vsub.f32 %v4362, %v4373
    %v4380 = vsub.f32 %v4363, %v4373
    %4382 = vset.pattern.permute.xlu0 0
    %4383 = vperm.xlu0 %4382, %v4366
    %v4384 = vpop.permute.xlu0 %4383
    %4387 = vset.pattern.permute.xlu0 0
    %4388 = vperm.xlu0 %4387, %v4367
    %v4389 = vpop.permute.xlu0 %4388
    %4392 = vset.pattern.permute.xlu0 0
    %4393 = vperm.xlu0 %4392, %v4368
    %v4394 = vpop.permute.xlu0 %4393
    %4397 = vset.pattern.permute.xlu0 0
    %4398 = vperm.xlu0 %4397, %v4369
    %v4399 = vpop.permute.xlu0 %4398
    %4402 = vset.pattern.permute.xlu0 0
    %4403 = vperm.xlu0 %4402, %v4370
    %v4404 = vpop.permute.xlu0 %4403
    %4407 = vset.pattern.permute.xlu0 0
    %4408 = vperm.xlu0 %4407, %v4371
    %v4409 = vpop.permute.xlu0 %4408
    %4412 = vset.pattern.permute.xlu0 0
    %4413 = vperm.xlu0 %4412, %v4372
    %v4414 = vpop.permute.xlu0 %4413
    %v4416 = vmul.f32 %v4374, %v4384
    %v4417 = vmul.f32 %v4375, %v4389
    %v4418 = vmul.f32 %v4376, %v4394
    %v4419 = vmul.f32 %v4377, %v4399
    %v4420 = vmul.f32 %v4378, %v4404
    %v4421 = vmul.f32 %v4379, %v4409
    %v4422 = vmul.f32 %v4380, %v4414
    %v4423 = vmul.f32 %v4416, %v4374
    %v4424 = vmul.f32 %v4417, %v4375
    %v4425 = vmul.f32 %v4418, %v4376
    %v4426 = vmul.f32 %v4419, %v4377
    %v4427 = vmul.f32 %v4420, %v4378
    %v4428 = vmul.f32 %v4421, %v4379
    %v4429 = vmul.f32 %v4422, %v4380
    %4437 = vrot.lane.b32.xlu0 %v4423, 32
    %v4438 = vpop.permute.xlu0 %4437
    %4439 = vrot.lane.b32.xlu0 %v4424, 32
    %v4440 = vpop.permute.xlu0 %4439
    %4441 = vrot.lane.b32.xlu0 %v4425, 32
    %v4442 = vpop.permute.xlu0 %4441
    %4443 = vrot.lane.b32.xlu0 %v4426, 32
    %v4444 = vpop.permute.xlu0 %4443
    %4445 = vrot.lane.b32.xlu0 %v4427, 32
    %v4446 = vpop.permute.xlu0 %4445
    %4447 = vrot.lane.b32.xlu0 %v4428, 32
    %v4448 = vpop.permute.xlu0 %4447
    %4449 = vrot.lane.b32.xlu0 %v4429, 32
    %v4450 = vpop.permute.xlu0 %4449
    %v4458 = vsel %vm1992, %v4416, %v4438
    %v4459 = vsel %vm1992, %v4417, %v4440
    %v4460 = vsel %vm1992, %v4418, %v4442
    %v4461 = vsel %vm1992, %v4419, %v4444
    %v4462 = vsel %vm1992, %v4420, %v4446
    %v4463 = vsel %vm1992, %v4421, %v4448
    %v4464 = vsel %vm1992, %v4422, %v4450
    %vm4465 = vcmask 523264
    %v4466 = vsel %vm4465, %v4458, 0.0
    %v4467 = vsel %vm4465, %v4459, 0.0
    %v4468 = vadd.f32 %v4466, %v4467
    %v4469 = vsel %vm4465, %v4460, 0.0
    %v4470 = vadd.f32 %v4468, %v4469
    %v4471 = vsel %vm4465, %v4461, 0.0
    %v4472 = vadd.f32 %v4470, %v4471
    %v4473 = vsel %vm4465, %v4462, 0.0
    %v4474 = vadd.f32 %v4472, %v4473
    %v4475 = vsel %vm4465, %v4463, 0.0
    %v4476 = vadd.f32 %v4474, %v4475
    %v4477 = vsel %vm4465, %v4464, 0.0
    %v4478 = vadd.f32 %v4476, %v4477
    %v4479 = vrot.slane %v4478, 4
    %v4480 = vadd.f32 %v4478, %v4479
    %v4481 = vrot.slane %v4480, 2
    %v4482 = vadd.f32 %v4480, %v4481
    %v4483 = vrot.slane %v4482, 1
    %v4484 = vadd.f32 %v4482, %v4483
    %v4485 = vmul.f32 %v4484, 0.02
    %v4486 = vmul.f32 %v4485, %v4485
    %4488 = vrot.lane.b32.xlu0 %v4486, 32
    %v4489 = vpop.permute.xlu0 %4488
    %v4491 = vsub.f32 %v4485, %v4489
    %v4492 = vmax.f32 %v4491, 0.0
    %v4493 = vadd.f32 %v4492, 1e-05
    %v4494 = vrsqrt.pop %v4493
    %v4495 = vmul.f32 %v4494, %v4493
    %v4496 = vmul.f32 %v4495, %v4494
    %v4497 = vmul.f32 0.5, %v4496
    %v4498 = vsub.f32 1.5, %v4497
    %v4499 = vmul.f32 %v4494, %v4498
    %vm4500 = vweird.f32 %v4493
    %vm4501 = vweird.f32 %v4494
    %vm4502 = vmor %vm4500, %vm4501
    %v4503 = vsel %vm4502, %v4494, %v4499
    %4505 = vrot.lane.b32.xlu0 %v4503, 96
    %v4506 = vpop.permute.xlu0 %4505
    %v4508 = vmul.f32 %v4364, %v4506
    %v4509 = vadd.f32 %v4357, %v4485
    %v4510 = vmul.f32 %v4509, %v4508
    %v4511 = vsub.f32 %v4365, %v4510
    %v4513 = vperm.slane %v4508, 0
    %v4515 = vmul.f32 %v4357, %v4513
    %v4516 = vmul.f32 %v4358, %v4513
    %v4517 = vmul.f32 %v4359, %v4513
    %v4518 = vmul.f32 %v4360, %v4513
    %v4519 = vmul.f32 %v4361, %v4513
    %v4520 = vmul.f32 %v4362, %v4513
    %v4521 = vmul.f32 %v4363, %v4513
    %v4523 = vperm.slane %v4511, 0
    %v4525 = vadd.f32 %v4515, %v4523
    %v4526 = vadd.f32 %v4516, %v4523
    %v4527 = vadd.f32 %v4517, %v4523
    %v4528 = vadd.f32 %v4518, %v4523
    %v4529 = vadd.f32 %v4519, %v4523
    %v4530 = vadd.f32 %v4520, %v4523
    %v4531 = vadd.f32 %v4521, %v4523
    %v4532 = vmax.f32 %v4525, 0.0
    %v4533 = vmax.f32 %v4526, 0.0
    %v4534 = vmax.f32 %v4527, 0.0
    %v4535 = vmax.f32 %v4528, 0.0
    %v4536 = vmax.f32 %v4529, 0.0
    %v4537 = vmax.f32 %v4530, 0.0
    %v4538 = vmax.f32 %v4531, 0.0
    %v4540 = vrot.slane %v4532, 2
    %4541 = vrot.lane.b32.xlu0 %v4540, 32
    %v4542 = vpop.permute.xlu0 %4541
    %v4544 = vrot.slane %v4532, 4
    %4545 = vrot.lane.b32.xlu0 %v4544, 64
    %v4546 = vpop.permute.xlu0 %4545
    %v4548 = vrot.slane %v4532, 6
    %4549 = vrot.lane.b32.xlu0 %v4548, 96
    %v4550 = vpop.permute.xlu0 %4549
    %v4553 = vrot.slane %v4533, 2
    %4554 = vrot.lane.b32.xlu0 %v4553, 32
    %v4555 = vpop.permute.xlu0 %4554
    %v4557 = vrot.slane %v4533, 4
    %4558 = vrot.lane.b32.xlu0 %v4557, 64
    %v4559 = vpop.permute.xlu0 %4558
    %v4561 = vrot.slane %v4533, 6
    %4562 = vrot.lane.b32.xlu0 %v4561, 96
    %v4563 = vpop.permute.xlu0 %4562
    %v4566 = vrot.slane %v4534, 2
    %4567 = vrot.lane.b32.xlu0 %v4566, 32
    %v4568 = vpop.permute.xlu0 %4567
    %v4570 = vrot.slane %v4534, 4
    %4571 = vrot.lane.b32.xlu0 %v4570, 64
    %v4572 = vpop.permute.xlu0 %4571
    %v4574 = vrot.slane %v4534, 6
    %4575 = vrot.lane.b32.xlu0 %v4574, 96
    %v4576 = vpop.permute.xlu0 %4575
    %v4579 = vrot.slane %v4535, 2
    %4580 = vrot.lane.b32.xlu0 %v4579, 32
    %v4581 = vpop.permute.xlu0 %4580
    %v4583 = vrot.slane %v4535, 4
    %4584 = vrot.lane.b32.xlu0 %v4583, 64
    %v4585 = vpop.permute.xlu0 %4584
    %v4587 = vrot.slane %v4535, 6
    %4588 = vrot.lane.b32.xlu0 %v4587, 96
    %v4589 = vpop.permute.xlu0 %4588
    %v4591 = vsel %vm1992, %v4532, %v4542
    %v4592 = vsel %vm4465, %v4591, %v4546
    %vm4593 = vcmask 785408
    %v4594 = vsel %vm4593, %v4592, %v4550
    %v4595 = vsel %vm1992, %v4533, %v4555
    %v4596 = vsel %vm4465, %v4595, %v4559
    %v4597 = vsel %vm4593, %v4596, %v4563
    %v4598 = vsel %vm1992, %v4534, %v4568
    %v4599 = vsel %vm4465, %v4598, %v4572
    %v4600 = vsel %vm4593, %v4599, %v4576
    %v4601 = vsel %vm1992, %v4535, %v4581
    %v4602 = vsel %vm4465, %v4601, %v4585
    %v4603 = vsel %vm4593, %v4602, %v4589
    %v4605 = vrot.slane %v4536, 2
    %4606 = vrot.lane.b32.xlu0 %v4605, 32
    %v4607 = vpop.permute.xlu0 %4606
    %v4609 = vrot.slane %v4536, 4
    %4610 = vrot.lane.b32.xlu0 %v4609, 64
    %v4611 = vpop.permute.xlu0 %4610
    %v4613 = vrot.slane %v4536, 6
    %4614 = vrot.lane.b32.xlu0 %v4613, 96
    %v4615 = vpop.permute.xlu0 %4614
    %v4618 = vrot.slane %v4537, 2
    %4619 = vrot.lane.b32.xlu0 %v4618, 32
    %v4620 = vpop.permute.xlu0 %4619
    %v4622 = vrot.slane %v4537, 4
    %4623 = vrot.lane.b32.xlu0 %v4622, 64
    %v4624 = vpop.permute.xlu0 %4623
    %v4626 = vrot.slane %v4537, 6
    %4627 = vrot.lane.b32.xlu0 %v4626, 96
    %v4628 = vpop.permute.xlu0 %4627
    %v4630 = vsel %vm1992, %v4536, %v4607
    %v4631 = vsel %vm4465, %v4630, %v4611
    %v4632 = vsel %vm4593, %v4631, %v4615
    %v4633 = vsel %vm1992, %v4537, %v4620
    %v4634 = vsel %vm4465, %v4633, %v4624
    %v4635 = vsel %vm4593, %v4634, %v4628
    %v4636 = vld [vmem:[%s3] sm:$0xff]
    %v4637 = vld [vmem:[%s3 + $0x8] sm:$0xff]
    %v4638 = vld [vmem:[%s3 + $0x10] sm:$0xff]
    %v4639 = vld [vmem:[%s3 + $0x18] sm:$0xff]
    %v4640 = vld [vmem:[%s3 + $0x20] sm:$0xff]
    %v4641 = vld [vmem:[%s3 + $0x28] sm:$0xff]
    %v4642 = vld [vmem:[%s3 + $0x30] sm:$0xff]
    %v4643 = vld [vmem:[%s3 + $0x38] sm:$0xff]
    %v4644 = vld [vmem:[%s3 + $0x40] sm:$0xff]
    %v4645 = vld [vmem:[%s3 + $0x48] sm:$0xff]
    %v4646 = vld [vmem:[%s3 + $0x50] sm:$0xff]
    %v4647 = vld [vmem:[%s3 + $0x58] sm:$0xff]
    %v4648 = vld [vmem:[%s3 + $0x60] sm:$0xff]
    %v4649 = vld [vmem:[%s3 + $0x68] sm:$0xff]
    %v4650 = vld [vmem:[%s3 + $0x70] sm:$0xff]
    %v4651 = vld [vmem:[%s3 + $0x78] sm:$0xff]
    %v4652 = vld [vmem:[%s3 + $0x80] sm:$0xff]
    %v4653 = vld [vmem:[%s3 + $0x88] sm:$0xff]
    %v4654 = vld [vmem:[%s3 + $0x90] sm:$0xff]
    %v4655 = vld [vmem:[%s3 + $0x98] sm:$0xff]
    %v4656 = vld [vmem:[%s3 + $0xa0] sm:$0xff]
    %v4657 = vld [vmem:[%s3 + $0xa8] sm:$0xff]
    %v4658 = vld [vmem:[%s3 + $0xb0] sm:$0xff]
    %v4659 = vld [vmem:[%s3 + $0xb8] sm:$0xff]
    %v4660 = vld [vmem:[%s3 + $0xc0] sm:$0xff]
    %v4661 = vld [vmem:[%s3 + $0xc8] sm:$0xff]
    %v4662 = vld [vmem:[%s3 + $0xd0] sm:$0xff]
    %v4663 = vld [vmem:[%s3 + $0xd8] sm:$0xff]
    %v4664 = vld [vmem:[%s3 + $0xe0] sm:$0xff]
    %v4665 = vld [vmem:[%s3 + $0xe8] sm:$0xff]
    %v4666 = vld [vmem:[%s3 + $0xf0] sm:$0xff]
    %v4667 = vld [vmem:[%s3 + $0xf8] sm:$0xff]
    %v4668 = vld [vmem:[%s3 + $0x100] sm:$0xff]
    %v4669 = vld [vmem:[%s3 + $0x108] sm:$0xff]
    %v4670 = vld [vmem:[%s3 + $0x110] sm:$0xff]
    %v4671 = vld [vmem:[%s3 + $0x118] sm:$0xff]
    %v4672 = vld [vmem:[%s3 + $0x120] sm:$0xff]
    %v4673 = vld [vmem:[%s3 + $0x128] sm:$0xff]
    %v4674 = vld [vmem:[%s3 + $0x130] sm:$0xff]
    %v4675 = vld [vmem:[%s3 + $0x138] sm:$0xff]
    %v4676 = vld [vmem:[%s3 + $0x140] sm:$0xff]
    %v4677 = vld [vmem:[%s3 + $0x148] sm:$0xff]
    %v4678 = vld [vmem:[%s3 + $0x150] sm:$0xff]
    %v4679 = vld [vmem:[%s3 + $0x158] sm:$0xff]
    %v4680 = vld [vmem:[%s3 + $0x160] sm:$0xff]
    %v4681 = vld [vmem:[%s3 + $0x168] sm:$0xff]
    %v4682 = vld [vmem:[%s3 + $0x170] sm:$0xff]
    %v4683 = vld [vmem:[%s3 + $0x178] sm:$0xff]
    %v4684 = vld [vmem:[%s3 + $0x180] sm:$0xff]
    %v4685 = vld [vmem:[%s3 + $0x188] sm:$0xff]
    %v4686 = vld [vmem:[%s3 + $0x190] sm:$0xff]
    %v4687 = vld [vmem:[%s3 + $0x198] sm:$0xff]
    %v4688 = vld [vmem:[%s3 + $0x1a0] sm:$0xff]
    %v4689 = vld [vmem:[%s3 + $0x1a8] sm:$0xff]
    %v4690 = vld [vmem:[%s3 + $0x1b0] sm:$0xff]
    %v4691 = vld [vmem:[%s3 + $0x1b8] sm:$0xff]
    %v4692 = vld [vmem:[%s3 + $0x1c0] sm:$0xff]
    %v4693 = vld [vmem:[%s3 + $0x1c8] sm:$0xff]
    %v4694 = vld [vmem:[%s3 + $0x1d0] sm:$0xff]
    %v4695 = vld [vmem:[%s3 + $0x1d8] sm:$0xff]
    %v4696 = vld [vmem:[%s3 + $0x1e0] sm:$0xff]
    %v4697 = vld [vmem:[%s3 + $0x1e8] sm:$0xff]
    %v4698 = vld [vmem:[%s3 + $0x1f0] sm:$0xff]
    %v4699 = vld [vmem:[%s3 + $0x1f8] sm:$0xff]
    %v4700 = vld [vmem:[%s3 + $0x200] sm:$0xff]
    %v4701 = vld [vmem:[%s3 + $0x208] sm:$0xff]
    %v4702 = vld [vmem:[%s3 + $0x210] sm:$0xff]
    %v4703 = vld [vmem:[%s3 + $0x218] sm:$0xff]
    %v4704 = vld [vmem:[%s3 + $0x220] sm:$0xff]
    %v4705 = vld [vmem:[%s3 + $0x228] sm:$0xff]
    %v4706 = vld [vmem:[%s3 + $0x230] sm:$0xff]
    %v4707 = vld [vmem:[%s3 + $0x238] sm:$0xff]
    %v4708 = vld [vmem:[%s3 + $0x240] sm:$0xff]
    %v4709 = vld [vmem:[%s3 + $0x248] sm:$0xff]
    %v4710 = vld [vmem:[%s3 + $0x250] sm:$0xff]
    %v4711 = vld [vmem:[%s3 + $0x258] sm:$0xff]
    %v4712 = vld [vmem:[%s3 + $0x260] sm:$0xff]
    %v4713 = vld [vmem:[%s3 + $0x268] sm:$0xff]
    %v4714 = vld [vmem:[%s3 + $0x270] sm:$0xff]
    %v4715 = vld [vmem:[%s3 + $0x278] sm:$0xff]
    %v4716 = vld [vmem:[%s3 + $0x280] sm:$0xff]
    %v4717 = vld [vmem:[%s3 + $0x288] sm:$0xff]
    %v4718 = vld [vmem:[%s3 + $0x290] sm:$0xff]
    %v4719 = vld [vmem:[%s3 + $0x298] sm:$0xff]
    %v4720 = vld [vmem:[%s3 + $0x2a0] sm:$0xff]
    %v4721 = vld [vmem:[%s3 + $0x2a8] sm:$0xff]
    %v4722 = vld [vmem:[%s3 + $0x2b0] sm:$0xff]
    %v4723 = vld [vmem:[%s3 + $0x2b8] sm:$0xff]
    %v4724 = vld [vmem:[%s3 + $0x2c0] sm:$0xff]
    %v4725 = vld [vmem:[%s3 + $0x2c8] sm:$0xff]
    %v4726 = vld [vmem:[%s3 + $0x2d0] sm:$0xff]
    %v4727 = vld [vmem:[%s3 + $0x2d8] sm:$0xff]
    %v4728 = vld [vmem:[%s3 + $0x2e0] sm:$0xff]
    %v4729 = vld [vmem:[%s3 + $0x2e8] sm:$0xff]
    %v4730 = vld [vmem:[%s3 + $0x2f0] sm:$0xff]
    %v4731 = vld [vmem:[%s3 + $0x2f8] sm:$0xff]
    %v4732 = vld [vmem:[%s3 + $0x300] sm:$0xff]
    %v4733 = vld [vmem:[%s3 + $0x308] sm:$0xff]
    %v4734 = vld [vmem:[%s3 + $0x310] sm:$0xff]
    %v4735 = vld [vmem:[%s3 + $0x318] sm:$0xff]
    %v4737 = vsel %vm1992, %v4538, 0
    %4739 = vmatpush.msra.mxu0 %v4651
    %4740 = vmatpush.msra.mxu0 %v4650
    %4741 = vmatpush.msra.mxu0 %v4649
    %4742 = vmatpush.msra.mxu0 %v4648
    %4743 = vmatpush.msra.mxu0 %v4647
    %4744 = vmatpush.msra.mxu0 %v4646
    %4745 = vmatpush.msra.mxu0 %v4645
    %4746 = vmatpush.msra.mxu0 %v4644
    %4747 = vmatpush.msra.mxu0 %v4643
    %4748 = vmatpush.msra.mxu0 %v4642
    %4749 = vmatpush.msra.mxu0 %v4641
    %4750 = vmatpush.msra.mxu0 %v4640
    %4751 = vmatpush.msra.mxu0 %v4639
    %4752 = vmatpush.msra.mxu0 %v4638
    %4753 = vmatpush.msra.mxu0 %v4637
    %4754 = vmatpush.msra.mxu0 %v4636
    %4755 = vmatmul.f32.gmra.mxu0 %v4594
    %v4756 = vpop.f32.mrf.mxu0
    %v4757 = vadd.f32 0.0, %v4756
    %4758 = vdwg.mxu0
    %4759 = vmatpush.msra.mxu0 %v4667
    %4760 = vmatpush.msra.mxu0 %v4666
    %4761 = vmatpush.msra.mxu0 %v4665
    %4762 = vmatpush.msra.mxu0 %v4664
    %4763 = vmatpush.msra.mxu0 %v4663
    %4764 = vmatpush.msra.mxu0 %v4662
    %4765 = vmatpush.msra.mxu0 %v4661
    %4766 = vmatpush.msra.mxu0 %v4660
    %4767 = vmatpush.msra.mxu0 %v4659
    %4768 = vmatpush.msra.mxu0 %v4658
    %4769 = vmatpush.msra.mxu0 %v4657
    %4770 = vmatpush.msra.mxu0 %v4656
    %4771 = vmatpush.msra.mxu0 %v4655
    %4772 = vmatpush.msra.mxu0 %v4654
    %4773 = vmatpush.msra.mxu0 %v4653
    %4774 = vmatpush.msra.mxu0 %v4652
    %4775 = vmatmul.f32.gmra.mxu0 %v4597
    %v4776 = vpop.f32.mrf.mxu0
    %v4777 = vadd.f32 %v4757, %v4776
    %4778 = vdwg.mxu0
    %4779 = vmatpush.msra.mxu0 %v4683
    %4780 = vmatpush.msra.mxu0 %v4682
    %4781 = vmatpush.msra.mxu0 %v4681
    %4782 = vmatpush.msra.mxu0 %v4680
    %4783 = vmatpush.msra.mxu0 %v4679
    %4784 = vmatpush.msra.mxu0 %v4678
    %4785 = vmatpush.msra.mxu0 %v4677
    %4786 = vmatpush.msra.mxu0 %v4676
    %4787 = vmatpush.msra.mxu0 %v4675
    %4788 = vmatpush.msra.mxu0 %v4674
    %4789 = vmatpush.msra.mxu0 %v4673
    %4790 = vmatpush.msra.mxu0 %v4672
    %4791 = vmatpush.msra.mxu0 %v4671
    %4792 = vmatpush.msra.mxu0 %v4670
    %4793 = vmatpush.msra.mxu0 %v4669
    %4794 = vmatpush.msra.mxu0 %v4668
    %4795 = vmatmul.f32.gmra.mxu0 %v4600
    %v4796 = vpop.f32.mrf.mxu0
    %v4797 = vadd.f32 %v4777, %v4796
    %4798 = vdwg.mxu0
    %4799 = vmatpush.msra.mxu0 %v4699
    %4800 = vmatpush.msra.mxu0 %v4698
    %4801 = vmatpush.msra.mxu0 %v4697
    %4802 = vmatpush.msra.mxu0 %v4696
    %4803 = vmatpush.msra.mxu0 %v4695
    %4804 = vmatpush.msra.mxu0 %v4694
    %4805 = vmatpush.msra.mxu0 %v4693
    %4806 = vmatpush.msra.mxu0 %v4692
    %4807 = vmatpush.msra.mxu0 %v4691
    %4808 = vmatpush.msra.mxu0 %v4690
    %4809 = vmatpush.msra.mxu0 %v4689
    %4810 = vmatpush.msra.mxu0 %v4688
    %4811 = vmatpush.msra.mxu0 %v4687
    %4812 = vmatpush.msra.mxu0 %v4686
    %4813 = vmatpush.msra.mxu0 %v4685
    %4814 = vmatpush.msra.mxu0 %v4684
    %4815 = vmatmul.f32.gmra.mxu0 %v4603
    %v4816 = vpop.f32.mrf.mxu0
    %v4817 = vadd.f32 %v4797, %v4816
    %4818 = vdwg.mxu0
    %4819 = vmatpush.msra.mxu0 %v4715
    %4820 = vmatpush.msra.mxu0 %v4714
    %4821 = vmatpush.msra.mxu0 %v4713
    %4822 = vmatpush.msra.mxu0 %v4712
    %4823 = vmatpush.msra.mxu0 %v4711
    %4824 = vmatpush.msra.mxu0 %v4710
    %4825 = vmatpush.msra.mxu0 %v4709
    %4826 = vmatpush.msra.mxu0 %v4708
    %4827 = vmatpush.msra.mxu0 %v4707
    %4828 = vmatpush.msra.mxu0 %v4706
    %4829 = vmatpush.msra.mxu0 %v4705
    %4830 = vmatpush.msra.mxu0 %v4704
    %4831 = vmatpush.msra.mxu0 %v4703
    %4832 = vmatpush.msra.mxu0 %v4702
    %4833 = vmatpush.msra.mxu0 %v4701
    %4834 = vmatpush.msra.mxu0 %v4700
    %4835 = vmatmul.f32.gmra.mxu0 %v4632
    %v4836 = vpop.f32.mrf.mxu0
    %v4837 = vadd.f32 %v4817, %v4836
    %4838 = vdwg.mxu0
    %4839 = vmatpush.msra.mxu0 %v4731
    %4840 = vmatpush.msra.mxu0 %v4730
    %4841 = vmatpush.msra.mxu0 %v4729
    %4842 = vmatpush.msra.mxu0 %v4728
    %4843 = vmatpush.msra.mxu0 %v4727
    %4844 = vmatpush.msra.mxu0 %v4726
    %4845 = vmatpush.msra.mxu0 %v4725
    %4846 = vmatpush.msra.mxu0 %v4724
    %4847 = vmatpush.msra.mxu0 %v4723
    %4848 = vmatpush.msra.mxu0 %v4722
    %4849 = vmatpush.msra.mxu0 %v4721
    %4850 = vmatpush.msra.mxu0 %v4720
    %4851 = vmatpush.msra.mxu0 %v4719
    %4852 = vmatpush.msra.mxu0 %v4718
    %4853 = vmatpush.msra.mxu0 %v4717
    %4854 = vmatpush.msra.mxu0 %v4716
    %4855 = vmatmul.f32.gmra.mxu0 %v4635
    %v4856 = vpop.f32.mrf.mxu0
    %v4857 = vadd.f32 %v4837, %v4856
    %4858 = vdwg.mxu0
    %4859 = vmatpush.msra.mxu0 0.0
    %4860 = vmatpush.msra.mxu0 0.0
    %4861 = vmatpush.msra.mxu0 0.0
    %4862 = vmatpush.msra.mxu0 0.0
    %4863 = vmatpush.msra.mxu0 0.0
    %4864 = vmatpush.msra.mxu0 0.0
    %4865 = vmatpush.msra.mxu0 0.0
    %4866 = vmatpush.msra.mxu0 0.0
    %4867 = vmatpush.msra.mxu0 0.0
    %4868 = vmatpush.msra.mxu0 0.0
    %4869 = vmatpush.msra.mxu0 0.0
    %4870 = vmatpush.msra.mxu0 0.0
    %4871 = vmatpush.msra.mxu0 %v4735
    %4872 = vmatpush.msra.mxu0 %v4734
    %4873 = vmatpush.msra.mxu0 %v4733
    %4874 = vmatpush.msra.mxu0 %v4732
    %4875 = vmatmul.f32.gmra.mxu0 %v4737
    %v4876 = vpop.f32.mrf.mxu0
    %v4877 = vadd.f32 %v4857, %v4876
    %4878 = vdwg.mxu0
    %v4879 = vld [vmem:[%s9] sm:$0x1]
    %v4880 = vld [vmem:[%s10] sm:$0x1]
    %v4881 = vperm.slane %v4877, 0
    %v4882 = vsub.f32 %v4877, %v4881
    %v4883 = vmul.f32 %v4882, %v4882
    %4885 = vrot.lane.b32.xlu0 %v4883, 32
    %v4886 = vpop.permute.xlu0 %4885
    %v4888 = vsel %vm1992, %v4882, %v4886
    %vm4889 = vcmask 517120
    %v4890 = vsel %vm4889, %v4888, 0.0
    %v4891 = vrot.slane %v4890, 4
    %v4892 = vadd.f32 %v4890, %v4891
    %v4893 = vrot.slane %v4892, 2
    %v4894 = vadd.f32 %v4892, %v4893
    %v4895 = vrot.slane %v4894, 1
    %v4896 = vadd.f32 %v4894, %v4895
    %v4897 = vmul.f32 %v4896, 0.5
    %v4898 = vmul.f32 %v4897, %v4897
    %4900 = vrot.lane.b32.xlu0 %v4898, 32
    %v4901 = vpop.permute.xlu0 %4900
    %v4903 = vsub.f32 %v4897, %v4901
    %v4904 = vmax.f32 %v4903, 0.0
    %v4905 = vadd.f32 %v4904, 1e-05
    %v4906 = vrsqrt.pop %v4905
    %v4907 = vmul.f32 %v4906, %v4905
    %v4908 = vmul.f32 %v4907, %v4906
    %v4909 = vmul.f32 0.5, %v4908
    %v4910 = vsub.f32 1.5, %v4909
    %v4911 = vmul.f32 %v4906, %v4910
    %vm4912 = vweird.f32 %v4905
    %vm4913 = vweird.f32 %v4906
    %vm4914 = vmor %vm4912, %vm4913
    %v4915 = vsel %vm4914, %v4906, %v4911
    %4917 = vrot.lane.b32.xlu0 %v4915, 96
    %v4918 = vpop.permute.xlu0 %4917
    %v4920 = vmul.f32 %v4879, %v4918
    %v4921 = vadd.f32 %v4877, %v4897
    %v4922 = vmul.f32 %v4921, %v4920
    %v4923 = vsub.f32 %v4880, %v4922
    %v4925 = vperm.slane %v4920, 0
    %v4927 = vmul.f32 %v4877, %v4925
    %v4929 = vperm.slane %v4923, 0
    %v4931 = vadd.f32 %v4927, %v4929
    %v4932 = vmax.f32 %v4931, 0.0
    %v4933 = vld [vmem:[%s11] sm:$0x1]
    %v4934 = vld [vmem:[%s4] sm:$0xff]
    %v4935 = vld [vmem:[%s4 + $0x8] sm:$0xff]
    %v4936 = vld [vmem:[%s4 + $0x10] sm:$0xff]
    %v4937 = vld [vmem:[%s4 + $0x18] sm:$0xff]
    %v4939 = vsel %vm1992, %v4932, 0
    %4941 = vmatpush.msra.mxu0 0.0
    %4942 = vmatpush.msra.mxu0 0.0
    %4943 = vmatpush.msra.mxu0 0.0
    %4944 = vmatpush.msra.mxu0 0.0
    %4945 = vmatpush.msra.mxu0 0.0
    %4946 = vmatpush.msra.mxu0 0.0
    %4947 = vmatpush.msra.mxu0 0.0
    %4948 = vmatpush.msra.mxu0 0.0
    %4949 = vmatpush.msra.mxu0 0.0
    %4950 = vmatpush.msra.mxu0 0.0
    %4951 = vmatpush.msra.mxu0 0.0
    %4952 = vmatpush.msra.mxu0 0.0
    %4953 = vmatpush.msra.mxu0 %v4937
    %4954 = vmatpush.msra.mxu0 %v4936
    %4955 = vmatpush.msra.mxu0 %v4935
    %4956 = vmatpush.msra.mxu0 %v4934
    %4957 = vmatmul.f32.gmra.mxu0 %v4939
    %v4958 = vpop.f32.mrf.mxu0
    %v4959 = vadd.f32 0.0, %v4958
    %4960 = vdwg.mxu0
    %v4962 = vperm.slane %v4933, 0
    %v4964 = vadd.f32 %v4962, %v4959
    %vm4965 = vcmask 25600
    %4966 = vst.msk [vmem:[#allocation2] sm:$0x3] %vm4965, %v4964
    // Predicated region
    $region54: #{dqn_forward.1} parent=1 // pred_check
      _
    $region55: #{dqn_forward.1} parent=1 // pred_check_branch
      %4968 = sbr.rel (0) target = $region57
    $region56: #{dqn_forward.1} parent=1 // pred_region
      %4970 = vsyncadd [#allocation3], 0
      %s4972 = sshll.u32 [#allocation2], 4
      %s4973 = int_to_ptr.vmem [resolvable:$true] %s4972
      %s4974 = sshll.u32 %s13, 4
      %s4975 = int_to_ptr.hbm [resolvable:$true] %s4974
      %4977 = dma.vmem_to_hbm [thread:$0]  %s4973, 32, %s4975, [#allocation3]
    $region57: #{dqn_forward.1} parent=1 // pred_fallthru
      _
    // Predicated region
    $region58: #{dqn_forward.1} parent=1 // pred_check
      _
    $region59: #{dqn_forward.1} parent=1 // pred_check_branch
      %4979 = sbr.rel (0) target = $region61
    $region60: #{dqn_forward.1} parent=1 // pred_region
      %4981 = dma.done [#allocation3], 32
    $region61: #{dqn_forward.1} parent=1 // pred_fallthru
      _
    %4982 = vsyncpa [#allocation3], 1

</llo_original>
